<compile_context>
chip_gen: v7x
topology: tpu7x:2x2x1
jax: 0.10.0
libtpu: 0.0.40
codegen_flags: <defaults>
</compile_context>

<pallas_src>
import jax
import jax.numpy as jnp
from jax.experimental import pallas as pl
from jax.experimental.pallas import tpu as pltpu


def _upsample_conv_kernel(x_ref, w_ref, b_ref, o_ref):
    # x_ref: (1, th+2, W+2, Cin)   zero-padded ORIGINAL-resolution row tile (+halo)
    # w_ref: (16, Cin, Cout)       phase-combined 2x2 taps, flat index ((py*2+px)*2+sy)*2+sx
    # b_ref: (1, Cout)             bias
    # o_ref: (th, 2, W, 2*Cout)    output rows interleave as (r, py), cols pack as (px, cout)
    th = o_ref.shape[0]
    W = o_ref.shape[2]
    cin = x_ref.shape[3]
    cout = w_ref.shape[2]

    # The column shift is the only slice that forces a sublane relayout, so load
    # the 3 distinct column-shifted slabs ONCE and reuse them for all 4 phases.
    slabs = [x_ref[0, :, cs:cs + W, :] for cs in range(3)]   # each (th+2, W, Cin)
    bias = b_ref[0]                                          # (Cout,)

    for py in range(2):            # output-row phase (static -> fully unrolled)
        halves = []
        for px in range(2):        # output-col phase
            acc = jnp.zeros((th * W, cout), jnp.float32)
            for sy in range(2):
                for sx in range(2):
                    # leading-dim slice of an already-loaded slab (cheap), then
                    # a (th, W, Cin) -> (th*W, Cin) merge of leading dims.
                    lhs = slabs[px + sx][py + sy:py + sy + th].reshape(th * W, cin)
                    tap = ((py * 2 + px) * 2 + sy) * 2 + sx
                    acc = acc + jnp.dot(lhs, w_ref[tap],
                                        preferred_element_type=jnp.float32)
            halves.append((acc + bias[None, :]).reshape(th, W, cout))
        # pack the two column phases along lanes -> one full-width (unmasked) store
        o_ref[:, py, :, :] = jnp.concatenate(halves, axis=-1).astype(o_ref.dtype)


def _pick_tile_h(H, W, C, itemsize):
    """Largest row tile whose double-buffered blocks fit a conservative VMEM budget."""
    budget = 32 << 20   # safe on v5e/v6e (128 MiB phys) and v7x (64 MiB phys)

    def block_bytes(th):
        in_blk = (th + 2) * (W + 2) * C * itemsize
        out_blk = th * 2 * W * 2 * C * itemsize
        w_blk = 16 * C * C * itemsize
        b_blk = C * itemsize
        return 2 * (in_blk + out_blk + b_blk) + 2 * w_blk

    divs = [d for d in range(1, H + 1) if H % d == 0]
    fitting = [d for d in divs if block_bytes(d) <= budget]
    if not fitting:
        return 1
    # prefer >=2 row tiles so the software pipeline has depth
    multi = [d for d in fitting if H // d >= 2]
    return max(multi) if multi else max(fitting)


@jax.jit
def upsample_forward(x_nchw, weight_oihw, bias):
    """Matches PyTorch: F.interpolate(x, 2, 'nearest') -> Conv2d(C, C, 3, padding=1)."""
    B, C, H, W = x_nchw.shape
    dtype = x_nchw.dtype

    # NCHW -> NHWC (original resolution; the 2x upsample is fused into the kernel)
    x = jnp.transpose(x_nchw, (0, 2, 3, 1))
    xp = jnp.pad(x, ((0, 0), (1, 1), (1, 1), (0, 0)))        # (B, H+2, W+2, C)

    th = _pick_tile_h(H, W, C, jnp.dtype(dtype).itemsize)
    nT = H // th
    # Row tiles with a +2 halo (non-overlapping blocks for the BlockSpec).
    xt = jnp.stack([xp[:, t * th: t * th + th + 2] for t in range(nT)], axis=1)
    xt = xt.reshape(B * nT, th + 2, W + 2, C)

    # Phase-combined weights: (Cout, Cin, 3, 3) -> (3, 3, Cin, Cout) ->
    # W_eff[py, px, sy, sx] = sum_{ky,kx} A[py,sy,ky] * A[px,sx,kx] * w[ky,kx]
    w = jnp.transpose(weight_oihw, (2, 3, 1, 0))
    A = jnp.array([[[1., 0., 0.], [0., 1., 1.]],
                   [[1., 1., 0.], [0., 0., 1.]]], dtype=w.dtype)
    w_eff = jnp.einsum('pik,qjl,klcd->pqijcd', A, A, w)       # (2,2,2,2,Cin,Cout)
    w_eff = w_eff.reshape(16, C, C)
    b2 = bias.reshape(1, C).astype(dtype)

    out = pl.pallas_call(
        _upsample_conv_kernel,
        out_shape=jax.ShapeDtypeStruct((B * H, 2, W, 2 * C), dtype),
        grid_spec=pltpu.PrefetchScalarGridSpec(
            num_scalar_prefetch=0,
            grid=(B, nT),
            in_specs=[
                pl.BlockSpec((1, th + 2, W + 2, C),
                             lambda b, t: (b * nT + t, 0, 0, 0)),
                pl.BlockSpec((16, C, C), lambda b, t: (0, 0, 0)),
                pl.BlockSpec((1, C), lambda b, t: (0, 0)),
            ],
            out_specs=pl.BlockSpec((th, 2, W, 2 * C),
                                   lambda b, t: (b * nT + t, 0, 0, 0)),
        ),
        compiler_params=pltpu.CompilerParams(
            dimension_semantics=("parallel", "parallel"),
            vmem_limit_bytes=48 * 1024 * 1024,
        ),
    )(xt, w_eff, b2)

    # (B*H, 2, W, 2C) row-major == (B, 2H, 2W, C) interleaved -> FREE reshape.
    out_nhwc = out.reshape(B, 2 * H, 2 * W, C)
    return jnp.transpose(out_nhwc, (0, 3, 1, 2))              # NHWC -> NCHW


if __name__ == "__main__":
    key = jax.random.PRNGKey(0)
    k_x, k_w, k_b = jax.random.split(key, 3)

    B, C, Hin, Win = 2, 4, 16, 16
    x = jax.random.normal(k_x, (B, C, Hin, Win), dtype=jnp.float32)
    # Deterministic synthetic parameters (Conv2d(C, C, 3): weight (C, C, 3, 3), bias (C,))
    fan_in = C * 3 * 3
    bound = 1.0 / (fan_in ** 0.5)
    weight = jax.random.uniform(k_w, (C, C, 3, 3), jnp.float32, -bound, bound)
    bias = jax.random.uniform(k_b, (C,), jnp.float32, -bound, bound)

    out = jax.block_until_ready(upsample_forward(x, weight, bias))

    # Reference check: XLA conv on the explicitly upsampled input.
    x_nhwc = jnp.transpose(x, (0, 2, 3, 1))
    x_up = jnp.repeat(jnp.repeat(x_nhwc, 2, axis=1), 2, axis=2)
    w_hwio = jnp.transpose(weight, (2, 3, 1, 0))
    ref = jax.lax.conv_general_dilated(
        x_up, w_hwio, window_strides=(1, 1), padding="SAME",
        dimension_numbers=("NHWC", "HWIO", "NHWC")) + bias[None, None, None, :]
    ref = jnp.transpose(ref, (0, 3, 1, 2))

    assert out.shape == (B, C, 2 * Hin, 2 * Win)
    assert jnp.allclose(out, ref, atol=1e-4, rtol=1e-4)

    print("KERNEL_OK")
</pallas_src>

<mosaic_0001>
module attributes {stable_mosaic.version = 11 : i64} {
  func.func @_upsample_conv_kernel(%arg0: i32, %arg1: i32, %arg2: memref<1x10x18x4xf32, #tpu.memory_space<vmem>>, %arg3: memref<16x4x4xf32, #tpu.memory_space<vmem>>, %arg4: memref<1x4xf32, #tpu.memory_space<vmem>>, %arg5: memref<8x2x16x8xf32, #tpu.memory_space<vmem>>) attributes {dimension_semantics = [#tpu.dimension_semantics<parallel>, #tpu.dimension_semantics<parallel>], iteration_bounds = array<i64: 2, 2>, scalar_prefetch = 0 : i64, scratch_operands = 0 : i64, tpu.core_type = #tpu.core_type<tc>, window_params = [{transform_indices = @transform_0, window_bounds = array<i64: 1, 10, 18, 4>}, {pipeline_mode = #tpu.pipeline_mode<synchronous>, transform_indices = @transform_1, window_bounds = array<i64: 16, 4, 4>}, {pipeline_mode = #tpu.pipeline_mode<synchronous>, transform_indices = @transform_2, window_bounds = array<i64: 1, 4>}, {transform_indices = @transform_3, window_bounds = array<i64: 8, 2, 16, 8>}]} {
    %c0 = arith.constant 0 : index
    %c0_0 = arith.constant 0 : index
    %c0_1 = arith.constant 0 : index
    %c0_2 = arith.constant 0 : index
    %0 = vector.load %arg2[%c0, %c0_0, %c0_1, %c0_2] : memref<1x10x18x4xf32, #tpu.memory_space<vmem>>, vector<1x10x16x4xf32>
    %1 = vector.shape_cast %0 : vector<1x10x16x4xf32> to vector<10x16x4xf32>
    %c0_3 = arith.constant 0 : index
    %c0_4 = arith.constant 0 : index
    %c1 = arith.constant 1 : index
    %c0_5 = arith.constant 0 : index
    %2 = vector.load %arg2[%c0_3, %c0_4, %c1, %c0_5] : memref<1x10x18x4xf32, #tpu.memory_space<vmem>>, vector<1x10x16x4xf32>
    %3 = vector.shape_cast %2 : vector<1x10x16x4xf32> to vector<10x16x4xf32>
    %c0_6 = arith.constant 0 : index
    %c0_7 = arith.constant 0 : index
    %c2 = arith.constant 2 : index
    %c0_8 = arith.constant 0 : index
    %4 = vector.load %arg2[%c0_6, %c0_7, %c2, %c0_8] : memref<1x10x18x4xf32, #tpu.memory_space<vmem>>, vector<1x10x16x4xf32>
    %5 = vector.shape_cast %4 : vector<1x10x16x4xf32> to vector<10x16x4xf32>
    %c0_9 = arith.constant 0 : index
    %c0_10 = arith.constant 0 : index
    %6 = vector.load %arg4[%c0_9, %c0_10] : memref<1x4xf32, #tpu.memory_space<vmem>>, vector<1x4xf32>
    %7 = vector.shape_cast %6 : vector<1x4xf32> to vector<4xf32>
    %cst = arith.constant 0.000000e+00 : f32
    %8 = vector.broadcast %cst : f32 to vector<128x4xf32>
    %9 = vector.extract_strided_slice %1 {offsets = [0, 0, 0], sizes = [8, 16, 4], strides = [1, 1, 1]} : vector<10x16x4xf32> to vector<8x16x4xf32>
    %10 = vector.shape_cast %9 : vector<8x16x4xf32> to vector<128x4xf32>
    %c0_11 = arith.constant 0 : index
    %c0_12 = arith.constant 0 : index
    %c0_13 = arith.constant 0 : index
    %11 = vector.load %arg3[%c0_11, %c0_12, %c0_13] : memref<16x4x4xf32, #tpu.memory_space<vmem>>, vector<1x4x4xf32>
    %12 = vector.shape_cast %11 : vector<1x4x4xf32> to vector<4x4xf32>
    %cst_14 = arith.constant dense<0.000000e+00> : vector<128x4xf32>
    %13 = tpu.matmul %10, %12, %cst_14 {dimension_numbers = #tpu.dot_dimension_numbers<[1], [0], [0], [1], [0, 0, 1, 1], [], []>} : vector<128x4xf32>, vector<4x4xf32>, vector<128x4xf32> -> vector<128x4xf32>
    %14 = arith.addf %8, %13 : vector<128x4xf32>
    %15 = vector.extract_strided_slice %3 {offsets = [0, 0, 0], sizes = [8, 16, 4], strides = [1, 1, 1]} : vector<10x16x4xf32> to vector<8x16x4xf32>
    %16 = vector.shape_cast %15 : vector<8x16x4xf32> to vector<128x4xf32>
    %c1_15 = arith.constant 1 : index
    %c0_16 = arith.constant 0 : index
    %c0_17 = arith.constant 0 : index
    %17 = vector.load %arg3[%c1_15, %c0_16, %c0_17] : memref<16x4x4xf32, #tpu.memory_space<vmem>>, vector<1x4x4xf32>
    %18 = vector.shape_cast %17 : vector<1x4x4xf32> to vector<4x4xf32>
    %cst_18 = arith.constant dense<0.000000e+00> : vector<128x4xf32>
    %19 = tpu.matmul %16, %18, %cst_18 {dimension_numbers = #tpu.dot_dimension_numbers<[1], [0], [0], [1], [0, 0, 1, 1], [], []>} : vector<128x4xf32>, vector<4x4xf32>, vector<128x4xf32> -> vector<128x4xf32>
    %20 = arith.addf %14, %19 : vector<128x4xf32>
    %21 = vector.extract_strided_slice %1 {offsets = [1, 0, 0], sizes = [8, 16, 4], strides = [1, 1, 1]} : vector<10x16x4xf32> to vector<8x16x4xf32>
    %22 = vector.shape_cast %21 : vector<8x16x4xf32> to vector<128x4xf32>
    %c2_19 = arith.constant 2 : index
    %c0_20 = arith.constant 0 : index
    %c0_21 = arith.constant 0 : index
    %23 = vector.load %arg3[%c2_19, %c0_20, %c0_21] : memref<16x4x4xf32, #tpu.memory_space<vmem>>, vector<1x4x4xf32>
    %24 = vector.shape_cast %23 : vector<1x4x4xf32> to vector<4x4xf32>
    %cst_22 = arith.constant dense<0.000000e+00> : vector<128x4xf32>
    %25 = tpu.matmul %22, %24, %cst_22 {dimension_numbers = #tpu.dot_dimension_numbers<[1], [0], [0], [1], [0, 0, 1, 1], [], []>} : vector<128x4xf32>, vector<4x4xf32>, vector<128x4xf32> -> vector<128x4xf32>
    %26 = arith.addf %20, %25 : vector<128x4xf32>
    %27 = vector.extract_strided_slice %3 {offsets = [1, 0, 0], sizes = [8, 16, 4], strides = [1, 1, 1]} : vector<10x16x4xf32> to vector<8x16x4xf32>
    %28 = vector.shape_cast %27 : vector<8x16x4xf32> to vector<128x4xf32>
    %c3 = arith.constant 3 : index
    %c0_23 = arith.constant 0 : index
    %c0_24 = arith.constant 0 : index
    %29 = vector.load %arg3[%c3, %c0_23, %c0_24] : memref<16x4x4xf32, #tpu.memory_space<vmem>>, vector<1x4x4xf32>
    %30 = vector.shape_cast %29 : vector<1x4x4xf32> to vector<4x4xf32>
    %cst_25 = arith.constant dense<0.000000e+00> : vector<128x4xf32>
    %31 = tpu.matmul %28, %30, %cst_25 {dimension_numbers = #tpu.dot_dimension_numbers<[1], [0], [0], [1], [0, 0, 1, 1], [], []>} : vector<128x4xf32>, vector<4x4xf32>, vector<128x4xf32> -> vector<128x4xf32>
    %32 = arith.addf %26, %31 : vector<128x4xf32>
    %33 = vector.shape_cast %7 : vector<4xf32> to vector<1x4xf32>
    %34 = vector.broadcast %33 : vector<1x4xf32> to vector<128x4xf32>
    %35 = arith.addf %32, %34 : vector<128x4xf32>
    %36 = vector.shape_cast %35 : vector<128x4xf32> to vector<8x16x4xf32>
    %cst_26 = arith.constant 0.000000e+00 : f32
    %37 = vector.broadcast %cst_26 : f32 to vector<128x4xf32>
    %38 = vector.extract_strided_slice %3 {offsets = [0, 0, 0], sizes = [8, 16, 4], strides = [1, 1, 1]} : vector<10x16x4xf32> to vector<8x16x4xf32>
    %39 = vector.shape_cast %38 : vector<8x16x4xf32> to vector<128x4xf32>
    %c4 = arith.constant 4 : index
    %c0_27 = arith.constant 0 : index
    %c0_28 = arith.constant 0 : index
    %40 = vector.load %arg3[%c4, %c0_27, %c0_28] : memref<16x4x4xf32, #tpu.memory_space<vmem>>, vector<1x4x4xf32>
    %41 = vector.shape_cast %40 : vector<1x4x4xf32> to vector<4x4xf32>
    %cst_29 = arith.constant dense<0.000000e+00> : vector<128x4xf32>
    %42 = tpu.matmul %39, %41, %cst_29 {dimension_numbers = #tpu.dot_dimension_numbers<[1], [0], [0], [1], [0, 0, 1, 1], [], []>} : vector<128x4xf32>, vector<4x4xf32>, vector<128x4xf32> -> vector<128x4xf32>
    %43 = arith.addf %37, %42 : vector<128x4xf32>
    %44 = vector.extract_strided_slice %5 {offsets = [0, 0, 0], sizes = [8, 16, 4], strides = [1, 1, 1]} : vector<10x16x4xf32> to vector<8x16x4xf32>
    %45 = vector.shape_cast %44 : vector<8x16x4xf32> to vector<128x4xf32>
    %c5 = arith.constant 5 : index
    %c0_30 = arith.constant 0 : index
    %c0_31 = arith.constant 0 : index
    %46 = vector.load %arg3[%c5, %c0_30, %c0_31] : memref<16x4x4xf32, #tpu.memory_space<vmem>>, vector<1x4x4xf32>
    %47 = vector.shape_cast %46 : vector<1x4x4xf32> to vector<4x4xf32>
    %cst_32 = arith.constant dense<0.000000e+00> : vector<128x4xf32>
    %48 = tpu.matmul %45, %47, %cst_32 {dimension_numbers = #tpu.dot_dimension_numbers<[1], [0], [0], [1], [0, 0, 1, 1], [], []>} : vector<128x4xf32>, vector<4x4xf32>, vector<128x4xf32> -> vector<128x4xf32>
    %49 = arith.addf %43, %48 : vector<128x4xf32>
    %50 = vector.extract_strided_slice %3 {offsets = [1, 0, 0], sizes = [8, 16, 4], strides = [1, 1, 1]} : vector<10x16x4xf32> to vector<8x16x4xf32>
    %51 = vector.shape_cast %50 : vector<8x16x4xf32> to vector<128x4xf32>
    %c6 = arith.constant 6 : index
    %c0_33 = arith.constant 0 : index
    %c0_34 = arith.constant 0 : index
    %52 = vector.load %arg3[%c6, %c0_33, %c0_34] : memref<16x4x4xf32, #tpu.memory_space<vmem>>, vector<1x4x4xf32>
    %53 = vector.shape_cast %52 : vector<1x4x4xf32> to vector<4x4xf32>
    %cst_35 = arith.constant dense<0.000000e+00> : vector<128x4xf32>
    %54 = tpu.matmul %51, %53, %cst_35 {dimension_numbers = #tpu.dot_dimension_numbers<[1], [0], [0], [1], [0, 0, 1, 1], [], []>} : vector<128x4xf32>, vector<4x4xf32>, vector<128x4xf32> -> vector<128x4xf32>
    %55 = arith.addf %49, %54 : vector<128x4xf32>
    %56 = vector.extract_strided_slice %5 {offsets = [1, 0, 0], sizes = [8, 16, 4], strides = [1, 1, 1]} : vector<10x16x4xf32> to vector<8x16x4xf32>
    %57 = vector.shape_cast %56 : vector<8x16x4xf32> to vector<128x4xf32>
    %c7 = arith.constant 7 : index
    %c0_36 = arith.constant 0 : index
    %c0_37 = arith.constant 0 : index
    %58 = vector.load %arg3[%c7, %c0_36, %c0_37] : memref<16x4x4xf32, #tpu.memory_space<vmem>>, vector<1x4x4xf32>
    %59 = vector.shape_cast %58 : vector<1x4x4xf32> to vector<4x4xf32>
    %cst_38 = arith.constant dense<0.000000e+00> : vector<128x4xf32>
    %60 = tpu.matmul %57, %59, %cst_38 {dimension_numbers = #tpu.dot_dimension_numbers<[1], [0], [0], [1], [0, 0, 1, 1], [], []>} : vector<128x4xf32>, vector<4x4xf32>, vector<128x4xf32> -> vector<128x4xf32>
    %61 = arith.addf %55, %60 : vector<128x4xf32>
    %62 = vector.shape_cast %7 : vector<4xf32> to vector<1x4xf32>
    %63 = vector.broadcast %62 : vector<1x4xf32> to vector<128x4xf32>
    %64 = arith.addf %61, %63 : vector<128x4xf32>
    %65 = vector.shape_cast %64 : vector<128x4xf32> to vector<8x16x4xf32>
    %66 = tpu.concatenate %36, %65 in 2 : vector<8x16x4xf32>, vector<8x16x4xf32> -> vector<8x16x8xf32>
    %c0_39 = arith.constant 0 : index
    %c0_40 = arith.constant 0 : index
    %c0_41 = arith.constant 0 : index
    %c0_42 = arith.constant 0 : index
    %67 = vector.load %arg5[%c0_39, %c0_40, %c0_41, %c0_42] : memref<8x2x16x8xf32, #tpu.memory_space<vmem>>, vector<8x1x16x8xf32>
    %68 = vector.shape_cast %67 : vector<8x1x16x8xf32> to vector<8x16x8xf32>
    %69 = vector.shape_cast %66 : vector<8x16x8xf32> to vector<8x1x16x8xf32>
    tpu.vector_store %arg5[%c0_39, %c0_40, %c0_41, %c0_42], %69 {strides = array<i32>} : memref<8x2x16x8xf32, #tpu.memory_space<vmem>>, vector<8x1x16x8xf32>,
    %cst_43 = arith.constant 0.000000e+00 : f32
    %70 = vector.broadcast %cst_43 : f32 to vector<128x4xf32>
    %71 = vector.extract_strided_slice %1 {offsets = [1, 0, 0], sizes = [8, 16, 4], strides = [1, 1, 1]} : vector<10x16x4xf32> to vector<8x16x4xf32>
    %72 = vector.shape_cast %71 : vector<8x16x4xf32> to vector<128x4xf32>
    %c8 = arith.constant 8 : index
    %c0_44 = arith.constant 0 : index
    %c0_45 = arith.constant 0 : index
    %73 = vector.load %arg3[%c8, %c0_44, %c0_45] : memref<16x4x4xf32, #tpu.memory_space<vmem>>, vector<1x4x4xf32>
    %74 = vector.shape_cast %73 : vector<1x4x4xf32> to vector<4x4xf32>
    %cst_46 = arith.constant dense<0.000000e+00> : vector<128x4xf32>
    %75 = tpu.matmul %72, %74, %cst_46 {dimension_numbers = #tpu.dot_dimension_numbers<[1], [0], [0], [1], [0, 0, 1, 1], [], []>} : vector<128x4xf32>, vector<4x4xf32>, vector<128x4xf32> -> vector<128x4xf32>
    %76 = arith.addf %70, %75 : vector<128x4xf32>
    %77 = vector.extract_strided_slice %3 {offsets = [1, 0, 0], sizes = [8, 16, 4], strides = [1, 1, 1]} : vector<10x16x4xf32> to vector<8x16x4xf32>
    %78 = vector.shape_cast %77 : vector<8x16x4xf32> to vector<128x4xf32>
    %c9 = arith.constant 9 : index
    %c0_47 = arith.constant 0 : index
    %c0_48 = arith.constant 0 : index
    %79 = vector.load %arg3[%c9, %c0_47, %c0_48] : memref<16x4x4xf32, #tpu.memory_space<vmem>>, vector<1x4x4xf32>
    %80 = vector.shape_cast %79 : vector<1x4x4xf32> to vector<4x4xf32>
    %cst_49 = arith.constant dense<0.000000e+00> : vector<128x4xf32>
    %81 = tpu.matmul %78, %80, %cst_49 {dimension_numbers = #tpu.dot_dimension_numbers<[1], [0], [0], [1], [0, 0, 1, 1], [], []>} : vector<128x4xf32>, vector<4x4xf32>, vector<128x4xf32> -> vector<128x4xf32>
    %82 = arith.addf %76, %81 : vector<128x4xf32>
    %83 = vector.extract_strided_slice %1 {offsets = [2, 0, 0], sizes = [8, 16, 4], strides = [1, 1, 1]} : vector<10x16x4xf32> to vector<8x16x4xf32>
    %84 = vector.shape_cast %83 : vector<8x16x4xf32> to vector<128x4xf32>
    %c10 = arith.constant 10 : index
    %c0_50 = arith.constant 0 : index
    %c0_51 = arith.constant 0 : index
    %85 = vector.load %arg3[%c10, %c0_50, %c0_51] : memref<16x4x4xf32, #tpu.memory_space<vmem>>, vector<1x4x4xf32>
    %86 = vector.shape_cast %85 : vector<1x4x4xf32> to vector<4x4xf32>
    %cst_52 = arith.constant dense<0.000000e+00> : vector<128x4xf32>
    %87 = tpu.matmul %84, %86, %cst_52 {dimension_numbers = #tpu.dot_dimension_numbers<[1], [0], [0], [1], [0, 0, 1, 1], [], []>} : vector<128x4xf32>, vector<4x4xf32>, vector<128x4xf32> -> vector<128x4xf32>
    %88 = arith.addf %82, %87 : vector<128x4xf32>
    %89 = vector.extract_strided_slice %3 {offsets = [2, 0, 0], sizes = [8, 16, 4], strides = [1, 1, 1]} : vector<10x16x4xf32> to vector<8x16x4xf32>
    %90 = vector.shape_cast %89 : vector<8x16x4xf32> to vector<128x4xf32>
    %c11 = arith.constant 11 : index
    %c0_53 = arith.constant 0 : index
    %c0_54 = arith.constant 0 : index
    %91 = vector.load %arg3[%c11, %c0_53, %c0_54] : memref<16x4x4xf32, #tpu.memory_space<vmem>>, vector<1x4x4xf32>
    %92 = vector.shape_cast %91 : vector<1x4x4xf32> to vector<4x4xf32>
    %cst_55 = arith.constant dense<0.000000e+00> : vector<128x4xf32>
    %93 = tpu.matmul %90, %92, %cst_55 {dimension_numbers = #tpu.dot_dimension_numbers<[1], [0], [0], [1], [0, 0, 1, 1], [], []>} : vector<128x4xf32>, vector<4x4xf32>, vector<128x4xf32> -> vector<128x4xf32>
    %94 = arith.addf %88, %93 : vector<128x4xf32>
    %95 = vector.shape_cast %7 : vector<4xf32> to vector<1x4xf32>
    %96 = vector.broadcast %95 : vector<1x4xf32> to vector<128x4xf32>
    %97 = arith.addf %94, %96 : vector<128x4xf32>
    %98 = vector.shape_cast %97 : vector<128x4xf32> to vector<8x16x4xf32>
    %cst_56 = arith.constant 0.000000e+00 : f32
    %99 = vector.broadcast %cst_56 : f32 to vector<128x4xf32>
    %100 = vector.extract_strided_slice %3 {offsets = [1, 0, 0], sizes = [8, 16, 4], strides = [1, 1, 1]} : vector<10x16x4xf32> to vector<8x16x4xf32>
    %101 = vector.shape_cast %100 : vector<8x16x4xf32> to vector<128x4xf32>
    %c12 = arith.constant 12 : index
    %c0_57 = arith.constant 0 : index
    %c0_58 = arith.constant 0 : index
    %102 = vector.load %arg3[%c12, %c0_57, %c0_58] : memref<16x4x4xf32, #tpu.memory_space<vmem>>, vector<1x4x4xf32>
    %103 = vector.shape_cast %102 : vector<1x4x4xf32> to vector<4x4xf32>
    %cst_59 = arith.constant dense<0.000000e+00> : vector<128x4xf32>
    %104 = tpu.matmul %101, %103, %cst_59 {dimension_numbers = #tpu.dot_dimension_numbers<[1], [0], [0], [1], [0, 0, 1, 1], [], []>} : vector<128x4xf32>, vector<4x4xf32>, vector<128x4xf32> -> vector<128x4xf32>
    %105 = arith.addf %99, %104 : vector<128x4xf32>
    %106 = vector.extract_strided_slice %5 {offsets = [1, 0, 0], sizes = [8, 16, 4], strides = [1, 1, 1]} : vector<10x16x4xf32> to vector<8x16x4xf32>
    %107 = vector.shape_cast %106 : vector<8x16x4xf32> to vector<128x4xf32>
    %c13 = arith.constant 13 : index
    %c0_60 = arith.constant 0 : index
    %c0_61 = arith.constant 0 : index
    %108 = vector.load %arg3[%c13, %c0_60, %c0_61] : memref<16x4x4xf32, #tpu.memory_space<vmem>>, vector<1x4x4xf32>
    %109 = vector.shape_cast %108 : vector<1x4x4xf32> to vector<4x4xf32>
    %cst_62 = arith.constant dense<0.000000e+00> : vector<128x4xf32>
    %110 = tpu.matmul %107, %109, %cst_62 {dimension_numbers = #tpu.dot_dimension_numbers<[1], [0], [0], [1], [0, 0, 1, 1], [], []>} : vector<128x4xf32>, vector<4x4xf32>, vector<128x4xf32> -> vector<128x4xf32>
    %111 = arith.addf %105, %110 : vector<128x4xf32>
    %112 = vector.extract_strided_slice %3 {offsets = [2, 0, 0], sizes = [8, 16, 4], strides = [1, 1, 1]} : vector<10x16x4xf32> to vector<8x16x4xf32>
    %113 = vector.shape_cast %112 : vector<8x16x4xf32> to vector<128x4xf32>
    %c14 = arith.constant 14 : index
    %c0_63 = arith.constant 0 : index
    %c0_64 = arith.constant 0 : index
    %114 = vector.load %arg3[%c14, %c0_63, %c0_64] : memref<16x4x4xf32, #tpu.memory_space<vmem>>, vector<1x4x4xf32>
    %115 = vector.shape_cast %114 : vector<1x4x4xf32> to vector<4x4xf32>
    %cst_65 = arith.constant dense<0.000000e+00> : vector<128x4xf32>
    %116 = tpu.matmul %113, %115, %cst_65 {dimension_numbers = #tpu.dot_dimension_numbers<[1], [0], [0], [1], [0, 0, 1, 1], [], []>} : vector<128x4xf32>, vector<4x4xf32>, vector<128x4xf32> -> vector<128x4xf32>
    %117 = arith.addf %111, %116 : vector<128x4xf32>
    %118 = vector.extract_strided_slice %5 {offsets = [2, 0, 0], sizes = [8, 16, 4], strides = [1, 1, 1]} : vector<10x16x4xf32> to vector<8x16x4xf32>
    %119 = vector.shape_cast %118 : vector<8x16x4xf32> to vector<128x4xf32>
    %c15 = arith.constant 15 : index
    %c0_66 = arith.constant 0 : index
    %c0_67 = arith.constant 0 : index
    %120 = vector.load %arg3[%c15, %c0_66, %c0_67] : memref<16x4x4xf32, #tpu.memory_space<vmem>>, vector<1x4x4xf32>
    %121 = vector.shape_cast %120 : vector<1x4x4xf32> to vector<4x4xf32>
    %cst_68 = arith.constant dense<0.000000e+00> : vector<128x4xf32>
    %122 = tpu.matmul %119, %121, %cst_68 {dimension_numbers = #tpu.dot_dimension_numbers<[1], [0], [0], [1], [0, 0, 1, 1], [], []>} : vector<128x4xf32>, vector<4x4xf32>, vector<128x4xf32> -> vector<128x4xf32>
    %123 = arith.addf %117, %122 : vector<128x4xf32>
    %124 = vector.shape_cast %7 : vector<4xf32> to vector<1x4xf32>
    %125 = vector.broadcast %124 : vector<1x4xf32> to vector<128x4xf32>
    %126 = arith.addf %123, %125 : vector<128x4xf32>
    %127 = vector.shape_cast %126 : vector<128x4xf32> to vector<8x16x4xf32>
    %128 = tpu.concatenate %98, %127 in 2 : vector<8x16x4xf32>, vector<8x16x4xf32> -> vector<8x16x8xf32>
    %c0_69 = arith.constant 0 : index
    %c1_70 = arith.constant 1 : index
    %c0_71 = arith.constant 0 : index
    %c0_72 = arith.constant 0 : index
    %129 = vector.load %arg5[%c0_69, %c1_70, %c0_71, %c0_72] : memref<8x2x16x8xf32, #tpu.memory_space<vmem>>, vector<8x1x16x8xf32>
    %130 = vector.shape_cast %129 : vector<8x1x16x8xf32> to vector<8x16x8xf32>
    %131 = vector.shape_cast %128 : vector<8x16x8xf32> to vector<8x1x16x8xf32>
    tpu.vector_store %arg5[%c0_69, %c1_70, %c0_71, %c0_72], %131 {strides = array<i32>} : memref<8x2x16x8xf32, #tpu.memory_space<vmem>>, vector<8x1x16x8xf32>,
    return
  }
  func.func @transform_0(%arg0: i32, %arg1: i32) -> (i32, i32, i32, i32) {
    %c2_i32 = arith.constant 2 : i32
    %0 = arith.muli %arg0, %c2_i32 : i32
    %1 = arith.addi %0, %arg1 : i32
    %c0_i32 = arith.constant 0 : i32
    %c0_i32_0 = arith.constant 0 : i32
    %c0_i32_1 = arith.constant 0 : i32
    %c0_i32_2 = arith.constant 0 : i32
    return %1, %c0_i32, %c0_i32_0, %c0_i32_1 : i32, i32, i32, i32
  }
  func.func @transform_1(%arg0: i32, %arg1: i32) -> (i32, i32, i32) {
    %c0_i32 = arith.constant 0 : i32
    %c0_i32_0 = arith.constant 0 : i32
    %c0_i32_1 = arith.constant 0 : i32
    %c0_i32_2 = arith.constant 0 : i32
    return %c0_i32, %c0_i32_0, %c0_i32_1 : i32, i32, i32
  }
  func.func @transform_2(%arg0: i32, %arg1: i32) -> (i32, i32) {
    %c0_i32 = arith.constant 0 : i32
    %c0_i32_0 = arith.constant 0 : i32
    %c0_i32_1 = arith.constant 0 : i32
    return %c0_i32, %c0_i32_0 : i32, i32
  }
  func.func @transform_3(%arg0: i32, %arg1: i32) -> (i32, i32, i32, i32) {
    %c2_i32 = arith.constant 2 : i32
    %0 = arith.muli %arg0, %c2_i32 : i32
    %1 = arith.addi %0, %arg1 : i32
    %c0_i32 = arith.constant 0 : i32
    %c0_i32_0 = arith.constant 0 : i32
    %c0_i32_1 = arith.constant 0 : i32
    %c0_i32_2 = arith.constant 0 : i32
    return %1, %c0_i32, %c0_i32_0, %c0_i32_1 : i32, i32, i32, i32
  }
}

</mosaic_0001>

<llo_original>
// kernel: upsample_forward.1
$region0: #{upsample_forward.1}
  #allocation0 [shape = 'u32[]', space=smem, size = 0x4, offset = 0x4, fixed_abs, tag = 'smem constant byte address 0x4 - core index']
  #allocation1 [shape = 'u32[144,128]{1,0:T(1,128)}', space=vmem, size = 0x12000, scoped, tag = 'internal scratch']
  %s0 = inlined_call_operand.vmem [shape: f32[4,10,18,4], index: 0, kind: input, shape index: {}]
  %s1 = inlined_call_operand.vmem [shape: f32[16,4,4], index: 1, kind: input, shape index: {}]
  %s2 = inlined_call_operand.vmem [shape: f32[1,4], index: 2, kind: input, shape index: {}]
  %s3 = inlined_call_operand.vmem [shape: f32[32,2,16,8], index: 3, kind: output, shape index: {}]
  %s4 = sld [smem:[#allocation0]]
  $region45: #{upsample_forward.1} parent=0
    _
  %s6 = ssub.s32 1, %s4
  %s7 = scalar_select 0, %s6, %s4
  loop: start=0, step=1, limit=6
  $region2: #{upsample_forward.1} parent=0 // loop_pre_header
    _
  $region3: #{upsample_forward.1} parent=0 // loop_header
    %s9 = sphi 0, %s13
    %p10 = scmp.ge.s32.totalorder %s9, 6
    %s16 = sphi 0, %s28
    %s17 = sphi 0, %s24
    %s18 = sphi 0, %s16
    %s19 = sphi 0, %s17
    %s20 = sphi 0, %s18
    %s21 = sphi 0, %s19
    %s35 = sphi 0, %s37
    %s38 = sphi 0, %s35
    %s39 = sphi 0, %s38
    %s55 = sphi 0, %s39
    %s59 = sphi 0, %s59
    %s61 = sphi 0, %s59
    %s62 = sphi 0, %s61
    %s76 = sphi 0, %s62
    %s80 = sphi 0, %s80
    %s82 = sphi 0, %s80
    %s83 = sphi 0, %s82
    %s97 = sphi 0, %s83
    %s107 = sphi 0, %s109
    %s110 = sphi 0, %s107
    %s111 = sphi 0, %s110
    %s127 = sphi 0, %s111
  $region4: #{upsample_forward.1} parent=0 // loop_header_branch
    %12 = sbr.rel (%p10) target = $region8
  $region5: #{upsample_forward.1} parent=0 // loop_body
    %s14 = ssub.s32 %s9, 1
    %s15 = ssub.s32 %s9, 2
    %s22 = sadd.s32 1, %s17
    %p23 = scmp.ge.s32.totalorder %s22, 2
    %s24 = scalar_select %p23, 0, %s22
    %s25 = sadd.s32 1, %s16
    %s26 = scalar_select %p23, %s25, %s16
    %p27 = scmp.ge.s32.totalorder %s26, 2
    %s28 = scalar_select %p27, 0, %s26
    %s29 = smul.u32 %s16, 2
    %s30 = sadd.s32 %s29, %s17
    %s31 = smul.u32 %s28, 2
    %s32 = sadd.s32 %s31, %s24
    %s33 = ssub.s32 %s30, %s32
    %p34 = scmp.eq.s32.totalorder %s33, 0
    %s36 = sadd.s32 %s35, 1
    %s37 = scalar_select %p34, %s35, %s36
    %p40 = pneg %p34
    %p41 = scmp.eq.s32.totalorder %s9, 3
    %p42 = por %p40, %p41
    %p43 = scmp.ne.s32.totalorder %s35, %s38
    %p44 = scmp.eq.s32.totalorder %s9, 0
    %p45 = por %p43, %p44
    %p46 = scmp.ne.s32.totalorder %s35, %s38
    %p47 = scmp.eq.s32.totalorder %s14, 3
    %p48 = por %p46, %p47
    %p49 = scmp.ne.s32.totalorder %s38, %s39
    %p50 = scmp.eq.s32.totalorder %s14, 0
    %p51 = por %p49, %p50
    %p52 = scmp.ne.s32.totalorder %s38, %s39
    %p53 = scmp.eq.s32.totalorder %s15, 3
    %p54 = por %p52, %p53
    %p56 = scmp.ne.s32.totalorder %s39, %s55
    %p57 = scmp.eq.s32.totalorder %s15, 0
    %p58 = por %p56, %p57
    %s60 = sadd.s32 %s59, 1
    %p63 = scmp.eq.s32.totalorder %s9, 3
    %p64 = scmp.ne.s32.totalorder %s59, %s61
    %p65 = scmp.eq.s32.totalorder %s9, 0
    %p66 = por %p64, %p65
    %p67 = scmp.ne.s32.totalorder %s59, %s61
    %p68 = scmp.eq.s32.totalorder %s14, 3
    %p69 = por %p67, %p68
    %p70 = scmp.ne.s32.totalorder %s61, %s62
    %p71 = scmp.eq.s32.totalorder %s14, 0
    %p72 = por %p70, %p71
    %p73 = scmp.ne.s32.totalorder %s61, %s62
    %p74 = scmp.eq.s32.totalorder %s15, 3
    %p75 = por %p73, %p74
    %p77 = scmp.ne.s32.totalorder %s62, %s76
    %p78 = scmp.eq.s32.totalorder %s15, 0
    %p79 = por %p77, %p78
    %s81 = sadd.s32 %s80, 1
    %p84 = scmp.eq.s32.totalorder %s9, 3
    %p85 = scmp.ne.s32.totalorder %s80, %s82
    %p86 = scmp.eq.s32.totalorder %s9, 0
    %p87 = por %p85, %p86
    %p88 = scmp.ne.s32.totalorder %s80, %s82
    %p89 = scmp.eq.s32.totalorder %s14, 3
    %p90 = por %p88, %p89
    %p91 = scmp.ne.s32.totalorder %s82, %s83
    %p92 = scmp.eq.s32.totalorder %s14, 0
    %p93 = por %p91, %p92
    %p94 = scmp.ne.s32.totalorder %s82, %s83
    %p95 = scmp.eq.s32.totalorder %s15, 3
    %p96 = por %p94, %p95
    %p98 = scmp.ne.s32.totalorder %s83, %s97
    %p99 = scmp.eq.s32.totalorder %s15, 0
    %p100 = por %p98, %p99
    %s101 = smul.u32 %s16, 2
    %s102 = sadd.s32 %s101, %s17
    %s103 = smul.u32 %s28, 2
    %s104 = sadd.s32 %s103, %s24
    %s105 = ssub.s32 %s102, %s104
    %p106 = scmp.eq.s32.totalorder %s105, 0
    %s108 = sadd.s32 %s107, 1
    %s109 = scalar_select %p106, %s107, %s108
    %p112 = pneg %p106
    %p113 = scmp.eq.s32.totalorder %s9, 3
    %p114 = por %p112, %p113
    %p115 = scmp.ne.s32.totalorder %s107, %s110
    %p116 = scmp.eq.s32.totalorder %s9, 0
    %p117 = por %p115, %p116
    %p118 = scmp.ne.s32.totalorder %s107, %s110
    %p119 = scmp.eq.s32.totalorder %s14, 3
    %p120 = por %p118, %p119
    %p121 = scmp.ne.s32.totalorder %s110, %s111
    %p122 = scmp.eq.s32.totalorder %s14, 0
    %p123 = por %p121, %p122
    %p124 = scmp.ne.s32.totalorder %s110, %s111
    %p125 = scmp.eq.s32.totalorder %s15, 3
    %p126 = por %p124, %p125
    %p128 = scmp.ne.s32.totalorder %s111, %s127
    %p129 = scmp.eq.s32.totalorder %s15, 0
    %p130 = por %p128, %p129
    %p131 = scmp.le.s32.totalorder 1, %s9
    %p132 = scmp.lt.s32.totalorder %s9, 5
    %p133 = pnand %p131, %p132
    %p134 = pneg %p133
    // Predicated region
    $region9: #{upsample_forward.1} parent=5 // pred_check
      _
    $region10: #{upsample_forward.1} parent=5 // pred_check_branch
      %136 = sbr.rel (%p133) target = $region12
    $region11: #{upsample_forward.1} parent=5 // pred_region
      %s137 = ssub.s32 %s9, 1
      // Predicated region
      $region13: #{upsample_forward.1} parent=11 // pred_check
        %p138 = pneg %p72
      $region14: #{upsample_forward.1} parent=11 // pred_check_branch
        %140 = sbr.rel (%p138) target = $region16
      $region15: #{upsample_forward.1} parent=11 // pred_region
        _
      $region16: #{upsample_forward.1} parent=11 // pred_fallthru
        _
      // Predicated region
      $region17: #{upsample_forward.1} parent=11 // pred_check
        %p141 = pneg %p93
      $region18: #{upsample_forward.1} parent=11 // pred_check_branch
        %143 = sbr.rel (%p141) target = $region20
      $region19: #{upsample_forward.1} parent=11 // pred_region
        _
      $region20: #{upsample_forward.1} parent=11 // pred_fallthru
        _
    $region12: #{upsample_forward.1} parent=5 // pred_fallthru
      _
    %p144 = scmp.lt.s32.totalorder %s9, 4
    // Predicated region
    $region21: #{upsample_forward.1} parent=5 // pred_check
      %p145 = pneg %p144
    $region22: #{upsample_forward.1} parent=5 // pred_check_branch
      %147 = sbr.rel (%p145) target = $region24
    $region23: #{upsample_forward.1} parent=5 // pred_region
      // Predicated region
      $region25: #{upsample_forward.1} parent=23 // pred_check
        %p148 = pneg %p45
      $region26: #{upsample_forward.1} parent=23 // pred_check_branch
        %150 = sbr.rel (%p148) target = $region28
      $region27: #{upsample_forward.1} parent=23 // pred_region
        %s151 = smul.u32 %s16, 2
        %s152 = sadd.s32 %s151, %s17
        %p153 = scmp.lt.s32.totalorder %s152, 3
        %s154 = scalar_select %p153, %s152, 3
        %s155 = smul.addr %s154, 30
        %s156 = smul.addr %s155, 8
        %s157 = scalar_lea.vmem %s0, %s156
        %s158 = smul.u32 %s16, 2
        %s159 = sadd.s32 %s158, %s17
      $region28: #{upsample_forward.1} parent=23 // pred_fallthru
        _
    $region24: #{upsample_forward.1} parent=5 // pred_fallthru
      _
    %p160 = scmp.le.s32.totalorder 1, %s9
    %p161 = scmp.lt.s32.totalorder %s9, 5
    %p162 = pnand %p160, %p161
    %p163 = pneg %p162
    // Predicated region
    $region29: #{upsample_forward.1} parent=5 // pred_check
      _
    $region30: #{upsample_forward.1} parent=5 // pred_check_branch
      %165 = sbr.rel (%p162) target = $region32
    $region31: #{upsample_forward.1} parent=5 // pred_region
      %s166 = ssub.s32 %s9, 1
      %s167 = smul.u32 %s18, 2
      %s168 = sadd.s32 %s167, %s19
      %p169 = scmp.lt.s32.totalorder %s168, 3
      %s170 = scalar_select %p169, %s168, 3
      %s171 = smul.addr %s170, 30
      %s172 = smul.addr %s171, 8
      %s173 = scalar_lea.vmem %s0, %s172
      %p174 = pneg %p51
      %p175 = pneg %p48
      %p176 = pneg %p72
      %p177 = pneg %p69
      %p178 = pneg %p93
      %p179 = pneg %p90
      %p180 = pneg %p123
      %p181 = pneg %p120
      %s182 = smul.u32 %s18, 2
      %s183 = sadd.s32 %s182, %s19
      %s184 = smul.u32 8, %s183
      %p185 = scmp.lt.s32.totalorder %s184, 31
      %s186 = scalar_select %p185, %s184, 31
      %s187 = smul.addr %s186, 4
      %s188 = smul.addr %s187, 8
      %s189 = scalar_lea.vmem %s3, %s188
      %s190 = smul.u32 %s18, 2
      %s191 = sadd.s32 %s190, %s19
      %p192 = scmp.lt.s32.totalorder %s191, 3
      %s193 = scalar_select %p192, %s191, 3
      %s194 = smul.addr %s193, 30
      %s195 = smul.addr %s194, 8
      %s196 = scalar_lea.vmem %s0, %s195
      %s197 = smul.u32 %s18, 2
      %s198 = sadd.s32 %s197, %s19
      %s199 = smul.u32 %s18, 2
      %s200 = sadd.s32 %s199, %s19
      %s201 = smul.u32 8, %s200
      %p202 = scmp.lt.s32.totalorder %s201, 31
      %s203 = scalar_select %p202, %s201, 31
      %s204 = smul.addr %s203, 4
      %s205 = smul.addr %s204, 8
      %s206 = scalar_lea.vmem %s3, %s205
      %s207 = smul.u32 %s18, 2
      %s208 = sadd.s32 %s207, %s19
      %s209 = smul.u32 8, %s208
      %v210 = vld [vmem:[%s196] sm:$0xff]
      %v211 = vld [vmem:[%s196 + $0x8] sm:$0xff]
      %v212 = vld [vmem:[%s196 + $0x18] sm:$0xff]
      %v213 = vld [vmem:[%s196 + $0x20] sm:$0xff]
      %v214 = vld [vmem:[%s196 + $0x30] sm:$0xff]
      %v215 = vld [vmem:[%s196 + $0x38] sm:$0xff]
      %v216 = vld [vmem:[%s196 + $0x48] sm:$0xff]
      %v217 = vld [vmem:[%s196 + $0x50] sm:$0xff]
      %v218 = vld [vmem:[%s196 + $0x60] sm:$0xff]
      %v219 = vld [vmem:[%s196 + $0x68] sm:$0xff]
      %v220 = vld [vmem:[%s196 + $0x78] sm:$0xff]
      %v221 = vld [vmem:[%s196 + $0x80] sm:$0xff]
      %v222 = vld [vmem:[%s196 + $0x90] sm:$0xff]
      %v223 = vld [vmem:[%s196 + $0x98] sm:$0xff]
      %v224 = vld [vmem:[%s196 + $0xa8] sm:$0xff]
      %v225 = vld [vmem:[%s196 + $0xb0] sm:$0xff]
      %v226 = vld [vmem:[%s196 + $0xc0] sm:$0xff]
      %v227 = vld [vmem:[%s196 + $0xc8] sm:$0xff]
      %v228 = vld [vmem:[%s196 + $0xd8] sm:$0xff]
      %v229 = vld [vmem:[%s196 + $0xe0] sm:$0xff]
      %v230 = vld [vmem:[%s196 + $0x1] sm:$0xff]
      %v231 = vld [vmem:[%s196 + $0x9] sm:$0xff]
      %v232 = vld [vmem:[%s196 + $0x19] sm:$0xff]
      %v233 = vld [vmem:[%s196 + $0x21] sm:$0xff]
      %v234 = vld [vmem:[%s196 + $0x31] sm:$0xff]
      %v235 = vld [vmem:[%s196 + $0x39] sm:$0xff]
      %v236 = vld [vmem:[%s196 + $0x49] sm:$0xff]
      %v237 = vld [vmem:[%s196 + $0x51] sm:$0xff]
      %v238 = vld [vmem:[%s196 + $0x61] sm:$0xff]
      %v239 = vld [vmem:[%s196 + $0x69] sm:$0xff]
      %v240 = vld [vmem:[%s196 + $0x79] sm:$0xff]
      %v241 = vld [vmem:[%s196 + $0x81] sm:$0xff]
      %v242 = vld [vmem:[%s196 + $0x91] sm:$0xff]
      %v243 = vld [vmem:[%s196 + $0x99] sm:$0xff]
      %v244 = vld [vmem:[%s196 + $0xa9] sm:$0xff]
      %v245 = vld [vmem:[%s196 + $0xb1] sm:$0xff]
      %v246 = vld [vmem:[%s196 + $0xc1] sm:$0xff]
      %v247 = vld [vmem:[%s196 + $0xc9] sm:$0xff]
      %v248 = vld [vmem:[%s196 + $0xd9] sm:$0xff]
      %v249 = vld [vmem:[%s196 + $0xe1] sm:$0xff]
      %v250 = vld [vmem:[%s196 + $0x2] sm:$0xff]
      %v251 = vld [vmem:[%s196 + $0xa] sm:$0xff]
      %v252 = vld [vmem:[%s196 + $0x1a] sm:$0xff]
      %v253 = vld [vmem:[%s196 + $0x22] sm:$0xff]
      %v254 = vld [vmem:[%s196 + $0x32] sm:$0xff]
      %v255 = vld [vmem:[%s196 + $0x3a] sm:$0xff]
      %v256 = vld [vmem:[%s196 + $0x4a] sm:$0xff]
      %v257 = vld [vmem:[%s196 + $0x52] sm:$0xff]
      %v258 = vld [vmem:[%s196 + $0x62] sm:$0xff]
      %v259 = vld [vmem:[%s196 + $0x6a] sm:$0xff]
      %v260 = vld [vmem:[%s196 + $0x7a] sm:$0xff]
      %v261 = vld [vmem:[%s196 + $0x82] sm:$0xff]
      %v262 = vld [vmem:[%s196 + $0x92] sm:$0xff]
      %v263 = vld [vmem:[%s196 + $0x9a] sm:$0xff]
      %v264 = vld [vmem:[%s196 + $0xaa] sm:$0xff]
      %v265 = vld [vmem:[%s196 + $0xb2] sm:$0xff]
      %v266 = vld [vmem:[%s196 + $0xc2] sm:$0xff]
      %v267 = vld [vmem:[%s196 + $0xca] sm:$0xff]
      %v268 = vld [vmem:[%s196 + $0xda] sm:$0xff]
      %v269 = vld [vmem:[%s196 + $0xe2] sm:$0xff]
      %v270 = vld [vmem:[%s2] sm:$0x1]
      %v271 = vld [vmem:[%s1] sm:$0xf]
      %s272 = scalar_lea.vmem %s1, 4
      %v273 = vld [vmem:[%s272] sm:$0xf]
      %vm274 = vcmask 31744
      %v276 = vsel %vm274, %v230, 0
      %v279 = vsel %vm274, %v231, 0
      %v282 = vsel %vm274, %v232, 0
      %v285 = vsel %vm274, %v233, 0
      %v288 = vsel %vm274, %v234, 0
      %v291 = vsel %vm274, %v235, 0
      %v294 = vsel %vm274, %v236, 0
      %v297 = vsel %vm274, %v237, 0
      %v300 = vsel %vm274, %v238, 0
      %v303 = vsel %vm274, %v239, 0
      %v306 = vsel %vm274, %v240, 0
      %v309 = vsel %vm274, %v241, 0
      %v312 = vsel %vm274, %v242, 0
      %v315 = vsel %vm274, %v243, 0
      %v318 = vsel %vm274, %v244, 0
      %v321 = vsel %vm274, %v245, 0
      %vm323 = vcmask 1043456
      %v325 = vsel %vm323, %v273, 0
      %327 = vmatprep.subr.mxu0 0.0
      %328 = vmatpush1.msra.mxu0 %v325
      %329 = vmatprep.subr.mxu0 0.0
      %330 = vmatpush1.msra.mxu0 0.0
      %331 = vmatprep.subr.mxu0 0.0
      %332 = vmatpush1.msra.mxu0 0.0
      %333 = vmatprep.subr.mxu0 0.0
      %334 = vmatpush1.msra.mxu0 0.0
      %335 = vmatprep.subr.mxu0 0.0
      %336 = vmatpush1.msra.mxu0 0.0
      %337 = vmatprep.subr.mxu0 0.0
      %338 = vmatpush1.msra.mxu0 0.0
      %339 = vmatprep.subr.mxu0 0.0
      %340 = vmatpush1.msra.mxu0 0.0
      %341 = vmatprep.subr.mxu0 0.0
      %342 = vmatpush1.msra.mxu0 0.0
      %343 = vmatprep.subr.mxu0 0.0
      %344 = vmatpush1.msra.mxu0 0.0
      %345 = vmatprep.subr.mxu0 0.0
      %346 = vmatpush1.msra.mxu0 0.0
      %347 = vmatprep.subr.mxu0 0.0
      %348 = vmatpush1.msra.mxu0 0.0
      %349 = vmatprep.subr.mxu0 0.0
      %350 = vmatpush1.msra.mxu0 0.0
      %351 = vmatprep.subr.mxu0 0.0
      %352 = vmatpush1.msra.mxu0 0.0
      %353 = vmatprep.subr.mxu0 0.0
      %354 = vmatpush1.msra.mxu0 0.0
      %355 = vmatprep.subr.mxu0 0.0
      %356 = vmatpush1.msra.mxu0 0.0
      %357 = vmatprep.subr.mxu0 0.0
      %358 = vmatpush1.msra.mxu0 0.0
      %359 = vmatprep.subr.mxu0 0.0
      %360 = vmatpush1.msra.mxu0 0.0
      %361 = vmatprep.subr.mxu0 0.0
      %362 = vmatpush1.msra.mxu0 0.0
      %363 = vmatprep.subr.mxu0 0.0
      %364 = vmatpush1.msra.mxu0 0.0
      %365 = vmatprep.subr.mxu0 0.0
      %366 = vmatpush1.msra.mxu0 0.0
      %367 = vmatprep.subr.mxu0 0.0
      %368 = vmatpush1.msra.mxu0 0.0
      %369 = vmatprep.subr.mxu0 0.0
      %370 = vmatpush1.msra.mxu0 0.0
      %371 = vmatprep.subr.mxu0 0.0
      %372 = vmatpush1.msra.mxu0 0.0
      %373 = vmatprep.subr.mxu0 0.0
      %374 = vmatpush1.msra.mxu0 0.0
      %375 = vmatprep.subr.mxu0 0.0
      %376 = vmatpush1.msra.mxu0 0.0
      %377 = vmatprep.subr.mxu0 0.0
      %378 = vmatpush1.msra.mxu0 0.0
      %379 = vmatprep.subr.mxu0 0.0
      %380 = vmatpush1.msra.mxu0 0.0
      %381 = vmatprep.subr.mxu0 0.0
      %382 = vmatpush1.msra.mxu0 0.0
      %383 = vmatprep.subr.mxu0 0.0
      %384 = vmatpush1.msra.mxu0 0.0
      %385 = vmatprep.subr.mxu0 0.0
      %386 = vmatpush1.msra.mxu0 0.0
      %387 = vmatprep.subr.mxu0 0.0
      %388 = vmatpush1.msra.mxu0 0.0
      %389 = vmatprep.subr.mxu0 0.0
      %390 = vmatpush1.msra.mxu0 0.0
      %391 = vmatprep.mubr.f32.mxu0 0.0
      %392 = vmatmul.mubr.f32.gmra.mrb[0].mxu0 %v276
      %v393 = vpop.f32.mrb[0].mxu0
      %v394 = vadd.f32 0.0, %v393
      %v395 = vpop.f32.mrb[0].mxu0
      %396 = vmatprep.mubr.f32.mxu0 0.0
      %397 = vmatmul.mubr.f32.gmra.mrb[0].mxu0 %v279
      %v398 = vpop.f32.mrb[0].mxu0
      %v399 = vadd.f32 0.0, %v398
      %v400 = vpop.f32.mrb[0].mxu0
      %401 = vmatprep.mubr.f32.mxu0 0.0
      %402 = vmatmul.mubr.f32.gmra.mrb[0].mxu0 %v282
      %v403 = vpop.f32.mrb[0].mxu0
      %v404 = vadd.f32 0.0, %v403
      %v405 = vpop.f32.mrb[0].mxu0
      %406 = vmatprep.mubr.f32.mxu0 0.0
      %407 = vmatmul.mubr.f32.gmra.mrb[0].mxu0 %v285
      %v408 = vpop.f32.mrb[0].mxu0
      %v409 = vadd.f32 0.0, %v408
      %v410 = vpop.f32.mrb[0].mxu0
      %411 = vmatprep.mubr.f32.mxu0 0.0
      %412 = vmatmul.mubr.f32.gmra.mrb[0].mxu0 %v288
      %v413 = vpop.f32.mrb[0].mxu0
      %v414 = vadd.f32 0.0, %v413
      %v415 = vpop.f32.mrb[0].mxu0
      %416 = vmatprep.mubr.f32.mxu0 0.0
      %417 = vmatmul.mubr.f32.gmra.mrb[0].mxu0 %v291
      %v418 = vpop.f32.mrb[0].mxu0
      %v419 = vadd.f32 0.0, %v418
      %v420 = vpop.f32.mrb[0].mxu0
      %421 = vmatprep.mubr.f32.mxu0 0.0
      %422 = vmatmul.mubr.f32.gmra.mrb[0].mxu0 %v294
      %v423 = vpop.f32.mrb[0].mxu0
      %v424 = vadd.f32 0.0, %v423
      %v425 = vpop.f32.mrb[0].mxu0
      %426 = vmatprep.mubr.f32.mxu0 0.0
      %427 = vmatmul.mubr.f32.gmra.mrb[0].mxu0 %v297
      %v428 = vpop.f32.mrb[0].mxu0
      %v429 = vadd.f32 0.0, %v428
      %v430 = vpop.f32.mrb[0].mxu0
      %431 = vmatprep.mubr.f32.mxu0 0.0
      %432 = vmatmul.mubr.f32.gmra.mrb[0].mxu0 %v300
      %v433 = vpop.f32.mrb[0].mxu0
      %v434 = vadd.f32 0.0, %v433
      %v435 = vpop.f32.mrb[0].mxu0
      %436 = vmatprep.mubr.f32.mxu0 0.0
      %437 = vmatmul.mubr.f32.gmra.mrb[0].mxu0 %v303
      %v438 = vpop.f32.mrb[0].mxu0
      %v439 = vadd.f32 0.0, %v438
      %v440 = vpop.f32.mrb[0].mxu0
      %441 = vmatprep.mubr.f32.mxu0 0.0
      %442 = vmatmul.mubr.f32.gmra.mrb[0].mxu0 %v306
      %v443 = vpop.f32.mrb[0].mxu0
      %v444 = vadd.f32 0.0, %v443
      %v445 = vpop.f32.mrb[0].mxu0
      %446 = vmatprep.mubr.f32.mxu0 0.0
      %447 = vmatmul.mubr.f32.gmra.mrb[0].mxu0 %v309
      %v448 = vpop.f32.mrb[0].mxu0
      %v449 = vadd.f32 0.0, %v448
      %v450 = vpop.f32.mrb[0].mxu0
      %451 = vmatprep.mubr.f32.mxu0 0.0
      %452 = vmatmul.mubr.f32.gmra.mrb[0].mxu0 %v312
      %v453 = vpop.f32.mrb[0].mxu0
      %v454 = vadd.f32 0.0, %v453
      %v455 = vpop.f32.mrb[0].mxu0
      %456 = vmatprep.mubr.f32.mxu0 0.0
      %457 = vmatmul.mubr.f32.gmra.mrb[0].mxu0 %v315
      %v458 = vpop.f32.mrb[0].mxu0
      %v459 = vadd.f32 0.0, %v458
      %v460 = vpop.f32.mrb[0].mxu0
      %461 = vmatprep.mubr.f32.mxu0 0.0
      %462 = vmatmul.mubr.f32.gmra.mrb[0].mxu0 %v318
      %v463 = vpop.f32.mrb[0].mxu0
      %v464 = vadd.f32 0.0, %v463
      %v465 = vpop.f32.mrb[0].mxu0
      %466 = vmatprep.mubr.f32.mxu0 0.0
      %467 = vmatmul.mubr.f32.gmra.mrb[0].mxu0 %v321
      %v468 = vpop.f32.mrb[0].mxu0
      %v469 = vadd.f32 0.0, %v468
      %v470 = vpop.f32.mrb[0].mxu0
      %471 = vdwg.mxu0
      %v473 = vsel %vm274, %v210, 0
      %v476 = vsel %vm274, %v211, 0
      %v479 = vsel %vm274, %v212, 0
      %v482 = vsel %vm274, %v213, 0
      %v485 = vsel %vm274, %v214, 0
      %v488 = vsel %vm274, %v215, 0
      %v491 = vsel %vm274, %v216, 0
      %v494 = vsel %vm274, %v217, 0
      %v497 = vsel %vm274, %v218, 0
      %v500 = vsel %vm274, %v219, 0
      %v503 = vsel %vm274, %v220, 0
      %v506 = vsel %vm274, %v221, 0
      %v509 = vsel %vm274, %v222, 0
      %v512 = vsel %vm274, %v223, 0
      %v515 = vsel %vm274, %v224, 0
      %v518 = vsel %vm274, %v225, 0
      %v521 = vsel %vm323, %v271, 0
      %523 = vmatprep.subr.mxu0 0.0
      %524 = vmatpush1.msra.mxu0 %v521
      %525 = vmatprep.subr.mxu0 0.0
      %526 = vmatpush1.msra.mxu0 0.0
      %527 = vmatprep.subr.mxu0 0.0
      %528 = vmatpush1.msra.mxu0 0.0
      %529 = vmatprep.subr.mxu0 0.0
      %530 = vmatpush1.msra.mxu0 0.0
      %531 = vmatprep.subr.mxu0 0.0
      %532 = vmatpush1.msra.mxu0 0.0
      %533 = vmatprep.subr.mxu0 0.0
      %534 = vmatpush1.msra.mxu0 0.0
      %535 = vmatprep.subr.mxu0 0.0
      %536 = vmatpush1.msra.mxu0 0.0
      %537 = vmatprep.subr.mxu0 0.0
      %538 = vmatpush1.msra.mxu0 0.0
      %539 = vmatprep.subr.mxu0 0.0
      %540 = vmatpush1.msra.mxu0 0.0
      %541 = vmatprep.subr.mxu0 0.0
      %542 = vmatpush1.msra.mxu0 0.0
      %543 = vmatprep.subr.mxu0 0.0
      %544 = vmatpush1.msra.mxu0 0.0
      %545 = vmatprep.subr.mxu0 0.0
      %546 = vmatpush1.msra.mxu0 0.0
      %547 = vmatprep.subr.mxu0 0.0
      %548 = vmatpush1.msra.mxu0 0.0
      %549 = vmatprep.subr.mxu0 0.0
      %550 = vmatpush1.msra.mxu0 0.0
      %551 = vmatprep.subr.mxu0 0.0
      %552 = vmatpush1.msra.mxu0 0.0
      %553 = vmatprep.subr.mxu0 0.0
      %554 = vmatpush1.msra.mxu0 0.0
      %555 = vmatprep.subr.mxu0 0.0
      %556 = vmatpush1.msra.mxu0 0.0
      %557 = vmatprep.subr.mxu0 0.0
      %558 = vmatpush1.msra.mxu0 0.0
      %559 = vmatprep.subr.mxu0 0.0
      %560 = vmatpush1.msra.mxu0 0.0
      %561 = vmatprep.subr.mxu0 0.0
      %562 = vmatpush1.msra.mxu0 0.0
      %563 = vmatprep.subr.mxu0 0.0
      %564 = vmatpush1.msra.mxu0 0.0
      %565 = vmatprep.subr.mxu0 0.0
      %566 = vmatpush1.msra.mxu0 0.0
      %567 = vmatprep.subr.mxu0 0.0
      %568 = vmatpush1.msra.mxu0 0.0
      %569 = vmatprep.subr.mxu0 0.0
      %570 = vmatpush1.msra.mxu0 0.0
      %571 = vmatprep.subr.mxu0 0.0
      %572 = vmatpush1.msra.mxu0 0.0
      %573 = vmatprep.subr.mxu0 0.0
      %574 = vmatpush1.msra.mxu0 0.0
      %575 = vmatprep.subr.mxu0 0.0
      %576 = vmatpush1.msra.mxu0 0.0
      %577 = vmatprep.subr.mxu0 0.0
      %578 = vmatpush1.msra.mxu0 0.0
      %579 = vmatprep.subr.mxu0 0.0
      %580 = vmatpush1.msra.mxu0 0.0
      %581 = vmatprep.subr.mxu0 0.0
      %582 = vmatpush1.msra.mxu0 0.0
      %583 = vmatprep.subr.mxu0 0.0
      %584 = vmatpush1.msra.mxu0 0.0
      %585 = vmatprep.subr.mxu0 0.0
      %586 = vmatpush1.msra.mxu0 0.0
      %587 = vmatprep.mubr.f32.mxu0 0.0
      %588 = vmatmul.mubr.f32.gmra.mrb[0].mxu0 %v473
      %v589 = vpop.f32.mrb[0].mxu0
      %v590 = vadd.f32 %v394, %v589
      %v591 = vpop.f32.mrb[0].mxu0
      %592 = vmatprep.mubr.f32.mxu0 0.0
      %593 = vmatmul.mubr.f32.gmra.mrb[0].mxu0 %v476
      %v594 = vpop.f32.mrb[0].mxu0
      %v595 = vadd.f32 %v399, %v594
      %v596 = vpop.f32.mrb[0].mxu0
      %597 = vmatprep.mubr.f32.mxu0 0.0
      %598 = vmatmul.mubr.f32.gmra.mrb[0].mxu0 %v479
      %v599 = vpop.f32.mrb[0].mxu0
      %v600 = vadd.f32 %v404, %v599
      %v601 = vpop.f32.mrb[0].mxu0
      %602 = vmatprep.mubr.f32.mxu0 0.0
      %603 = vmatmul.mubr.f32.gmra.mrb[0].mxu0 %v482
      %v604 = vpop.f32.mrb[0].mxu0
      %v605 = vadd.f32 %v409, %v604
      %v606 = vpop.f32.mrb[0].mxu0
      %607 = vmatprep.mubr.f32.mxu0 0.0
      %608 = vmatmul.mubr.f32.gmra.mrb[0].mxu0 %v485
      %v609 = vpop.f32.mrb[0].mxu0
      %v610 = vadd.f32 %v414, %v609
      %v611 = vpop.f32.mrb[0].mxu0
      %612 = vmatprep.mubr.f32.mxu0 0.0
      %613 = vmatmul.mubr.f32.gmra.mrb[0].mxu0 %v488
      %v614 = vpop.f32.mrb[0].mxu0
      %v615 = vadd.f32 %v419, %v614
      %v616 = vpop.f32.mrb[0].mxu0
      %617 = vmatprep.mubr.f32.mxu0 0.0
      %618 = vmatmul.mubr.f32.gmra.mrb[0].mxu0 %v491
      %v619 = vpop.f32.mrb[0].mxu0
      %v620 = vadd.f32 %v424, %v619
      %v621 = vpop.f32.mrb[0].mxu0
      %622 = vmatprep.mubr.f32.mxu0 0.0
      %623 = vmatmul.mubr.f32.gmra.mrb[0].mxu0 %v494
      %v624 = vpop.f32.mrb[0].mxu0
      %v625 = vadd.f32 %v429, %v624
      %v626 = vpop.f32.mrb[0].mxu0
      %627 = vmatprep.mubr.f32.mxu0 0.0
      %628 = vmatmul.mubr.f32.gmra.mrb[0].mxu0 %v497
      %v629 = vpop.f32.mrb[0].mxu0
      %v630 = vadd.f32 %v434, %v629
      %v631 = vpop.f32.mrb[0].mxu0
      %632 = vmatprep.mubr.f32.mxu0 0.0
      %633 = vmatmul.mubr.f32.gmra.mrb[0].mxu0 %v500
      %v634 = vpop.f32.mrb[0].mxu0
      %v635 = vadd.f32 %v439, %v634
      %v636 = vpop.f32.mrb[0].mxu0
      %637 = vmatprep.mubr.f32.mxu0 0.0
      %638 = vmatmul.mubr.f32.gmra.mrb[0].mxu0 %v503
      %v639 = vpop.f32.mrb[0].mxu0
      %v640 = vadd.f32 %v444, %v639
      %v641 = vpop.f32.mrb[0].mxu0
      %642 = vmatprep.mubr.f32.mxu0 0.0
      %643 = vmatmul.mubr.f32.gmra.mrb[0].mxu0 %v506
      %v644 = vpop.f32.mrb[0].mxu0
      %v645 = vadd.f32 %v449, %v644
      %v646 = vpop.f32.mrb[0].mxu0
      %647 = vmatprep.mubr.f32.mxu0 0.0
      %648 = vmatmul.mubr.f32.gmra.mrb[0].mxu0 %v509
      %v649 = vpop.f32.mrb[0].mxu0
      %v650 = vadd.f32 %v454, %v649
      %v651 = vpop.f32.mrb[0].mxu0
      %652 = vmatprep.mubr.f32.mxu0 0.0
      %653 = vmatmul.mubr.f32.gmra.mrb[0].mxu0 %v512
      %v654 = vpop.f32.mrb[0].mxu0
      %v655 = vadd.f32 %v459, %v654
      %v656 = vpop.f32.mrb[0].mxu0
      %657 = vmatprep.mubr.f32.mxu0 0.0
      %658 = vmatmul.mubr.f32.gmra.mrb[0].mxu0 %v515
      %v659 = vpop.f32.mrb[0].mxu0
      %v660 = vadd.f32 %v464, %v659
      %v661 = vpop.f32.mrb[0].mxu0
      %662 = vmatprep.mubr.f32.mxu0 0.0
      %663 = vmatmul.mubr.f32.gmra.mrb[0].mxu0 %v518
      %v664 = vpop.f32.mrb[0].mxu0
      %v665 = vadd.f32 %v469, %v664
      %v666 = vpop.f32.mrb[0].mxu0
      %667 = vdwg.mxu0
      %s668 = scalar_lea.vmem %s1, 8
      %v669 = vld [vmem:[%s668] sm:$0xf]
      %v671 = vsel %vm274, %v226, 0
      %v674 = vsel %vm274, %v227, 0
      %v677 = vsel %vm323, %v669, 0
      %679 = vmatprep.subr.mxu0 0.0
      %680 = vmatpush1.msra.mxu0 %v677
      %681 = vmatprep.subr.mxu0 0.0
      %682 = vmatpush1.msra.mxu0 0.0
      %683 = vmatprep.subr.mxu0 0.0
      %684 = vmatpush1.msra.mxu0 0.0
      %685 = vmatprep.subr.mxu0 0.0
      %686 = vmatpush1.msra.mxu0 0.0
      %687 = vmatprep.subr.mxu0 0.0
      %688 = vmatpush1.msra.mxu0 0.0
      %689 = vmatprep.subr.mxu0 0.0
      %690 = vmatpush1.msra.mxu0 0.0
      %691 = vmatprep.subr.mxu0 0.0
      %692 = vmatpush1.msra.mxu0 0.0
      %693 = vmatprep.subr.mxu0 0.0
      %694 = vmatpush1.msra.mxu0 0.0
      %695 = vmatprep.subr.mxu0 0.0
      %696 = vmatpush1.msra.mxu0 0.0
      %697 = vmatprep.subr.mxu0 0.0
      %698 = vmatpush1.msra.mxu0 0.0
      %699 = vmatprep.subr.mxu0 0.0
      %700 = vmatpush1.msra.mxu0 0.0
      %701 = vmatprep.subr.mxu0 0.0
      %702 = vmatpush1.msra.mxu0 0.0
      %703 = vmatprep.subr.mxu0 0.0
      %704 = vmatpush1.msra.mxu0 0.0
      %705 = vmatprep.subr.mxu0 0.0
      %706 = vmatpush1.msra.mxu0 0.0
      %707 = vmatprep.subr.mxu0 0.0
      %708 = vmatpush1.msra.mxu0 0.0
      %709 = vmatprep.subr.mxu0 0.0
      %710 = vmatpush1.msra.mxu0 0.0
      %711 = vmatprep.subr.mxu0 0.0
      %712 = vmatpush1.msra.mxu0 0.0
      %713 = vmatprep.subr.mxu0 0.0
      %714 = vmatpush1.msra.mxu0 0.0
      %715 = vmatprep.subr.mxu0 0.0
      %716 = vmatpush1.msra.mxu0 0.0
      %717 = vmatprep.subr.mxu0 0.0
      %718 = vmatpush1.msra.mxu0 0.0
      %719 = vmatprep.subr.mxu0 0.0
      %720 = vmatpush1.msra.mxu0 0.0
      %721 = vmatprep.subr.mxu0 0.0
      %722 = vmatpush1.msra.mxu0 0.0
      %723 = vmatprep.subr.mxu0 0.0
      %724 = vmatpush1.msra.mxu0 0.0
      %725 = vmatprep.subr.mxu0 0.0
      %726 = vmatpush1.msra.mxu0 0.0
      %727 = vmatprep.subr.mxu0 0.0
      %728 = vmatpush1.msra.mxu0 0.0
      %729 = vmatprep.subr.mxu0 0.0
      %730 = vmatpush1.msra.mxu0 0.0
      %731 = vmatprep.subr.mxu0 0.0
      %732 = vmatpush1.msra.mxu0 0.0
      %733 = vmatprep.subr.mxu0 0.0
      %734 = vmatpush1.msra.mxu0 0.0
      %735 = vmatprep.subr.mxu0 0.0
      %736 = vmatpush1.msra.mxu0 0.0
      %737 = vmatprep.subr.mxu0 0.0
      %738 = vmatpush1.msra.mxu0 0.0
      %739 = vmatprep.subr.mxu0 0.0
      %740 = vmatpush1.msra.mxu0 0.0
      %741 = vmatprep.subr.mxu0 0.0
      %742 = vmatpush1.msra.mxu0 0.0
      %743 = vmatprep.mubr.f32.mxu0 0.0
      %744 = vmatmul.mubr.f32.gmra.mrb[0].mxu0 %v479
      %v745 = vpop.f32.mrb[0].mxu0
      %v746 = vadd.f32 0.0, %v745
      %v747 = vpop.f32.mrb[0].mxu0
      %748 = vmatprep.mubr.f32.mxu0 0.0
      %749 = vmatmul.mubr.f32.gmra.mrb[0].mxu0 %v482
      %v750 = vpop.f32.mrb[0].mxu0
      %v751 = vadd.f32 0.0, %v750
      %v752 = vpop.f32.mrb[0].mxu0
      %753 = vmatprep.mubr.f32.mxu0 0.0
      %754 = vmatmul.mubr.f32.gmra.mrb[0].mxu0 %v485
      %v755 = vpop.f32.mrb[0].mxu0
      %v756 = vadd.f32 0.0, %v755
      %v757 = vpop.f32.mrb[0].mxu0
      %758 = vmatprep.mubr.f32.mxu0 0.0
      %759 = vmatmul.mubr.f32.gmra.mrb[0].mxu0 %v488
      %v760 = vpop.f32.mrb[0].mxu0
      %v761 = vadd.f32 0.0, %v760
      %v762 = vpop.f32.mrb[0].mxu0
      %763 = vmatprep.mubr.f32.mxu0 0.0
      %764 = vmatmul.mubr.f32.gmra.mrb[0].mxu0 %v491
      %v765 = vpop.f32.mrb[0].mxu0
      %v766 = vadd.f32 0.0, %v765
      %v767 = vpop.f32.mrb[0].mxu0
      %768 = vmatprep.mubr.f32.mxu0 0.0
      %769 = vmatmul.mubr.f32.gmra.mrb[0].mxu0 %v494
      %v770 = vpop.f32.mrb[0].mxu0
      %v771 = vadd.f32 0.0, %v770
      %v772 = vpop.f32.mrb[0].mxu0
      %773 = vmatprep.mubr.f32.mxu0 0.0
      %774 = vmatmul.mubr.f32.gmra.mrb[0].mxu0 %v497
      %v775 = vpop.f32.mrb[0].mxu0
      %v776 = vadd.f32 0.0, %v775
      %v777 = vpop.f32.mrb[0].mxu0
      %778 = vmatprep.mubr.f32.mxu0 0.0
      %779 = vmatmul.mubr.f32.gmra.mrb[0].mxu0 %v500
      %v780 = vpop.f32.mrb[0].mxu0
      %v781 = vadd.f32 0.0, %v780
      %v782 = vpop.f32.mrb[0].mxu0
      %783 = vmatprep.mubr.f32.mxu0 0.0
      %784 = vmatmul.mubr.f32.gmra.mrb[0].mxu0 %v503
      %v785 = vpop.f32.mrb[0].mxu0
      %v786 = vadd.f32 0.0, %v785
      %v787 = vpop.f32.mrb[0].mxu0
      %788 = vmatprep.mubr.f32.mxu0 0.0
      %789 = vmatmul.mubr.f32.gmra.mrb[0].mxu0 %v506
      %v790 = vpop.f32.mrb[0].mxu0
      %v791 = vadd.f32 0.0, %v790
      %v792 = vpop.f32.mrb[0].mxu0
      %793 = vmatprep.mubr.f32.mxu0 0.0
      %794 = vmatmul.mubr.f32.gmra.mrb[0].mxu0 %v509
      %v795 = vpop.f32.mrb[0].mxu0
      %v796 = vadd.f32 0.0, %v795
      %v797 = vpop.f32.mrb[0].mxu0
      %798 = vmatprep.mubr.f32.mxu0 0.0
      %799 = vmatmul.mubr.f32.gmra.mrb[0].mxu0 %v512
      %v800 = vpop.f32.mrb[0].mxu0
      %v801 = vadd.f32 0.0, %v800
      %v802 = vpop.f32.mrb[0].mxu0
      %803 = vmatprep.mubr.f32.mxu0 0.0
      %804 = vmatmul.mubr.f32.gmra.mrb[0].mxu0 %v515
      %v805 = vpop.f32.mrb[0].mxu0
      %v806 = vadd.f32 0.0, %v805
      %v807 = vpop.f32.mrb[0].mxu0
      %808 = vmatprep.mubr.f32.mxu0 0.0
      %809 = vmatmul.mubr.f32.gmra.mrb[0].mxu0 %v518
      %v810 = vpop.f32.mrb[0].mxu0
      %v811 = vadd.f32 0.0, %v810
      %v812 = vpop.f32.mrb[0].mxu0
      %813 = vmatprep.mubr.f32.mxu0 0.0
      %814 = vmatmul.mubr.f32.gmra.mrb[0].mxu0 %v671
      %v815 = vpop.f32.mrb[0].mxu0
      %v816 = vadd.f32 0.0, %v815
      %v817 = vpop.f32.mrb[0].mxu0
      %818 = vmatprep.mubr.f32.mxu0 0.0
      %819 = vmatmul.mubr.f32.gmra.mrb[0].mxu0 %v674
      %v820 = vpop.f32.mrb[0].mxu0
      %v821 = vadd.f32 0.0, %v820
      %v822 = vpop.f32.mrb[0].mxu0
      %823 = vdwg.mxu0
      %v824 = vadd.f32 %v590, %v746
      %v825 = vadd.f32 %v595, %v751
      %v826 = vadd.f32 %v600, %v756
      %v827 = vadd.f32 %v605, %v761
      %v828 = vadd.f32 %v610, %v766
      %v829 = vadd.f32 %v615, %v771
      %v830 = vadd.f32 %v620, %v776
      %v831 = vadd.f32 %v625, %v781
      %v832 = vadd.f32 %v630, %v786
      %v833 = vadd.f32 %v635, %v791
      %v834 = vadd.f32 %v640, %v796
      %v835 = vadd.f32 %v645, %v801
      %v836 = vadd.f32 %v650, %v806
      %v837 = vadd.f32 %v655, %v811
      %v838 = vadd.f32 %v660, %v816
      %v839 = vadd.f32 %v665, %v821
      %s840 = scalar_lea.vmem %s1, 12
      %v841 = vld [vmem:[%s840] sm:$0xf]
      %v843 = vsel %vm274, %v246, 0
      %v846 = vsel %vm274, %v247, 0
      %v849 = vsel %vm323, %v841, 0
      %851 = vmatprep.subr.mxu0 0.0
      %852 = vmatpush1.msra.mxu0 %v849
      %853 = vmatprep.subr.mxu0 0.0
      %854 = vmatpush1.msra.mxu0 0.0
      %855 = vmatprep.subr.mxu0 0.0
      %856 = vmatpush1.msra.mxu0 0.0
      %857 = vmatprep.subr.mxu0 0.0
      %858 = vmatpush1.msra.mxu0 0.0
      %859 = vmatprep.subr.mxu0 0.0
      %860 = vmatpush1.msra.mxu0 0.0
      %861 = vmatprep.subr.mxu0 0.0
      %862 = vmatpush1.msra.mxu0 0.0
      %863 = vmatprep.subr.mxu0 0.0
      %864 = vmatpush1.msra.mxu0 0.0
      %865 = vmatprep.subr.mxu0 0.0
      %866 = vmatpush1.msra.mxu0 0.0
      %867 = vmatprep.subr.mxu0 0.0
      %868 = vmatpush1.msra.mxu0 0.0
      %869 = vmatprep.subr.mxu0 0.0
      %870 = vmatpush1.msra.mxu0 0.0
      %871 = vmatprep.subr.mxu0 0.0
      %872 = vmatpush1.msra.mxu0 0.0
      %873 = vmatprep.subr.mxu0 0.0
      %874 = vmatpush1.msra.mxu0 0.0
      %875 = vmatprep.subr.mxu0 0.0
      %876 = vmatpush1.msra.mxu0 0.0
      %877 = vmatprep.subr.mxu0 0.0
      %878 = vmatpush1.msra.mxu0 0.0
      %879 = vmatprep.subr.mxu0 0.0
      %880 = vmatpush1.msra.mxu0 0.0
      %881 = vmatprep.subr.mxu0 0.0
      %882 = vmatpush1.msra.mxu0 0.0
      %883 = vmatprep.subr.mxu0 0.0
      %884 = vmatpush1.msra.mxu0 0.0
      %885 = vmatprep.subr.mxu0 0.0
      %886 = vmatpush1.msra.mxu0 0.0
      %887 = vmatprep.subr.mxu0 0.0
      %888 = vmatpush1.msra.mxu0 0.0
      %889 = vmatprep.subr.mxu0 0.0
      %890 = vmatpush1.msra.mxu0 0.0
      %891 = vmatprep.subr.mxu0 0.0
      %892 = vmatpush1.msra.mxu0 0.0
      %893 = vmatprep.subr.mxu0 0.0
      %894 = vmatpush1.msra.mxu0 0.0
      %895 = vmatprep.subr.mxu0 0.0
      %896 = vmatpush1.msra.mxu0 0.0
      %897 = vmatprep.subr.mxu0 0.0
      %898 = vmatpush1.msra.mxu0 0.0
      %899 = vmatprep.subr.mxu0 0.0
      %900 = vmatpush1.msra.mxu0 0.0
      %901 = vmatprep.subr.mxu0 0.0
      %902 = vmatpush1.msra.mxu0 0.0
      %903 = vmatprep.subr.mxu0 0.0
      %904 = vmatpush1.msra.mxu0 0.0
      %905 = vmatprep.subr.mxu0 0.0
      %906 = vmatpush1.msra.mxu0 0.0
      %907 = vmatprep.subr.mxu0 0.0
      %908 = vmatpush1.msra.mxu0 0.0
      %909 = vmatprep.subr.mxu0 0.0
      %910 = vmatpush1.msra.mxu0 0.0
      %911 = vmatprep.subr.mxu0 0.0
      %912 = vmatpush1.msra.mxu0 0.0
      %913 = vmatprep.subr.mxu0 0.0
      %914 = vmatpush1.msra.mxu0 0.0
      %915 = vmatprep.mubr.f32.mxu0 0.0
      %916 = vmatmul.mubr.f32.gmra.mrb[0].mxu0 %v282
      %v917 = vpop.f32.mrb[0].mxu0
      %v918 = vadd.f32 0.0, %v917
      %v919 = vpop.f32.mrb[0].mxu0
      %920 = vmatprep.mubr.f32.mxu0 0.0
      %921 = vmatmul.mubr.f32.gmra.mrb[0].mxu0 %v285
      %v922 = vpop.f32.mrb[0].mxu0
      %v923 = vadd.f32 0.0, %v922
      %v924 = vpop.f32.mrb[0].mxu0
      %925 = vmatprep.mubr.f32.mxu0 0.0
      %926 = vmatmul.mubr.f32.gmra.mrb[0].mxu0 %v288
      %v927 = vpop.f32.mrb[0].mxu0
      %v928 = vadd.f32 0.0, %v927
      %v929 = vpop.f32.mrb[0].mxu0
      %930 = vmatprep.mubr.f32.mxu0 0.0
      %931 = vmatmul.mubr.f32.gmra.mrb[0].mxu0 %v291
      %v932 = vpop.f32.mrb[0].mxu0
      %v933 = vadd.f32 0.0, %v932
      %v934 = vpop.f32.mrb[0].mxu0
      %935 = vmatprep.mubr.f32.mxu0 0.0
      %936 = vmatmul.mubr.f32.gmra.mrb[0].mxu0 %v294
      %v937 = vpop.f32.mrb[0].mxu0
      %v938 = vadd.f32 0.0, %v937
      %v939 = vpop.f32.mrb[0].mxu0
      %940 = vmatprep.mubr.f32.mxu0 0.0
      %941 = vmatmul.mubr.f32.gmra.mrb[0].mxu0 %v297
      %v942 = vpop.f32.mrb[0].mxu0
      %v943 = vadd.f32 0.0, %v942
      %v944 = vpop.f32.mrb[0].mxu0
      %945 = vmatprep.mubr.f32.mxu0 0.0
      %946 = vmatmul.mubr.f32.gmra.mrb[0].mxu0 %v300
      %v947 = vpop.f32.mrb[0].mxu0
      %v948 = vadd.f32 0.0, %v947
      %v949 = vpop.f32.mrb[0].mxu0
      %950 = vmatprep.mubr.f32.mxu0 0.0
      %951 = vmatmul.mubr.f32.gmra.mrb[0].mxu0 %v303
      %v952 = vpop.f32.mrb[0].mxu0
      %v953 = vadd.f32 0.0, %v952
      %v954 = vpop.f32.mrb[0].mxu0
      %955 = vmatprep.mubr.f32.mxu0 0.0
      %956 = vmatmul.mubr.f32.gmra.mrb[0].mxu0 %v306
      %v957 = vpop.f32.mrb[0].mxu0
      %v958 = vadd.f32 0.0, %v957
      %v959 = vpop.f32.mrb[0].mxu0
      %960 = vmatprep.mubr.f32.mxu0 0.0
      %961 = vmatmul.mubr.f32.gmra.mrb[0].mxu0 %v309
      %v962 = vpop.f32.mrb[0].mxu0
      %v963 = vadd.f32 0.0, %v962
      %v964 = vpop.f32.mrb[0].mxu0
      %965 = vmatprep.mubr.f32.mxu0 0.0
      %966 = vmatmul.mubr.f32.gmra.mrb[0].mxu0 %v312
      %v967 = vpop.f32.mrb[0].mxu0
      %v968 = vadd.f32 0.0, %v967
      %v969 = vpop.f32.mrb[0].mxu0
      %970 = vmatprep.mubr.f32.mxu0 0.0
      %971 = vmatmul.mubr.f32.gmra.mrb[0].mxu0 %v315
      %v972 = vpop.f32.mrb[0].mxu0
      %v973 = vadd.f32 0.0, %v972
      %v974 = vpop.f32.mrb[0].mxu0
      %975 = vmatprep.mubr.f32.mxu0 0.0
      %976 = vmatmul.mubr.f32.gmra.mrb[0].mxu0 %v318
      %v977 = vpop.f32.mrb[0].mxu0
      %v978 = vadd.f32 0.0, %v977
      %v979 = vpop.f32.mrb[0].mxu0
      %980 = vmatprep.mubr.f32.mxu0 0.0
      %981 = vmatmul.mubr.f32.gmra.mrb[0].mxu0 %v321
      %v982 = vpop.f32.mrb[0].mxu0
      %v983 = vadd.f32 0.0, %v982
      %v984 = vpop.f32.mrb[0].mxu0
      %985 = vmatprep.mubr.f32.mxu0 0.0
      %986 = vmatmul.mubr.f32.gmra.mrb[0].mxu0 %v843
      %v987 = vpop.f32.mrb[0].mxu0
      %v988 = vadd.f32 0.0, %v987
      %v989 = vpop.f32.mrb[0].mxu0
      %990 = vmatprep.mubr.f32.mxu0 0.0
      %991 = vmatmul.mubr.f32.gmra.mrb[0].mxu0 %v846
      %v992 = vpop.f32.mrb[0].mxu0
      %v993 = vadd.f32 0.0, %v992
      %v994 = vpop.f32.mrb[0].mxu0
      %995 = vdwg.mxu0
      %v996 = vadd.f32 %v824, %v918
      %v997 = vadd.f32 %v825, %v923
      %v998 = vadd.f32 %v826, %v928
      %v999 = vadd.f32 %v827, %v933
      %v1000 = vadd.f32 %v828, %v938
      %v1001 = vadd.f32 %v829, %v943
      %v1002 = vadd.f32 %v830, %v948
      %v1003 = vadd.f32 %v831, %v953
      %v1004 = vadd.f32 %v832, %v958
      %v1005 = vadd.f32 %v833, %v963
      %v1006 = vadd.f32 %v834, %v968
      %v1007 = vadd.f32 %v835, %v973
      %v1008 = vadd.f32 %v836, %v978
      %v1009 = vadd.f32 %v837, %v983
      %v1010 = vadd.f32 %v838, %v988
      %v1011 = vadd.f32 %v839, %v993
      %v1013 = vlaneseq
      %v1014 = vshrl.u32 %v1013, 7
      %v1015 = vsub.s32 0, %v1014
      %v1016 = vrot.slane %v270, %v1015
      %v1018 = vadd.f32 %v996, %v1016
      %v1019 = vadd.f32 %v997, %v1016
      %v1020 = vadd.f32 %v998, %v1016
      %v1021 = vadd.f32 %v999, %v1016
      %v1022 = vadd.f32 %v1000, %v1016
      %v1023 = vadd.f32 %v1001, %v1016
      %v1024 = vadd.f32 %v1002, %v1016
      %v1025 = vadd.f32 %v1003, %v1016
      %v1026 = vadd.f32 %v1004, %v1016
      %v1027 = vadd.f32 %v1005, %v1016
      %v1028 = vadd.f32 %v1006, %v1016
      %v1029 = vadd.f32 %v1007, %v1016
      %v1030 = vadd.f32 %v1008, %v1016
      %v1031 = vadd.f32 %v1009, %v1016
      %v1032 = vadd.f32 %v1010, %v1016
      %v1033 = vadd.f32 %v1011, %v1016
      %s1034 = scalar_lea.vmem %s1, 16
      %v1035 = vld [vmem:[%s1034] sm:$0xf]
      %s1036 = scalar_lea.vmem %s1, 20
      %v1037 = vld [vmem:[%s1036] sm:$0xf]
      %v1039 = vsel %vm274, %v250, 0
      %v1042 = vsel %vm274, %v251, 0
      %v1045 = vsel %vm274, %v252, 0
      %v1048 = vsel %vm274, %v253, 0
      %v1051 = vsel %vm274, %v254, 0
      %v1054 = vsel %vm274, %v255, 0
      %v1057 = vsel %vm274, %v256, 0
      %v1060 = vsel %vm274, %v257, 0
      %v1063 = vsel %vm274, %v258, 0
      %v1066 = vsel %vm274, %v259, 0
      %v1069 = vsel %vm274, %v260, 0
      %v1072 = vsel %vm274, %v261, 0
      %v1075 = vsel %vm274, %v262, 0
      %v1078 = vsel %vm274, %v263, 0
      %v1081 = vsel %vm274, %v264, 0
      %v1084 = vsel %vm274, %v265, 0
      %v1087 = vsel %vm323, %v1037, 0
      %1089 = vmatprep.subr.mxu0 0.0
      %1090 = vmatpush1.msra.mxu0 %v1087
      %1091 = vmatprep.subr.mxu0 0.0
      %1092 = vmatpush1.msra.mxu0 0.0
      %1093 = vmatprep.subr.mxu0 0.0
      %1094 = vmatpush1.msra.mxu0 0.0
      %1095 = vmatprep.subr.mxu0 0.0
      %1096 = vmatpush1.msra.mxu0 0.0
      %1097 = vmatprep.subr.mxu0 0.0
      %1098 = vmatpush1.msra.mxu0 0.0
      %1099 = vmatprep.subr.mxu0 0.0
      %1100 = vmatpush1.msra.mxu0 0.0
      %1101 = vmatprep.subr.mxu0 0.0
      %1102 = vmatpush1.msra.mxu0 0.0
      %1103 = vmatprep.subr.mxu0 0.0
      %1104 = vmatpush1.msra.mxu0 0.0
      %1105 = vmatprep.subr.mxu0 0.0
      %1106 = vmatpush1.msra.mxu0 0.0
      %1107 = vmatprep.subr.mxu0 0.0
      %1108 = vmatpush1.msra.mxu0 0.0
      %1109 = vmatprep.subr.mxu0 0.0
      %1110 = vmatpush1.msra.mxu0 0.0
      %1111 = vmatprep.subr.mxu0 0.0
      %1112 = vmatpush1.msra.mxu0 0.0
      %1113 = vmatprep.subr.mxu0 0.0
      %1114 = vmatpush1.msra.mxu0 0.0
      %1115 = vmatprep.subr.mxu0 0.0
      %1116 = vmatpush1.msra.mxu0 0.0
      %1117 = vmatprep.subr.mxu0 0.0
      %1118 = vmatpush1.msra.mxu0 0.0
      %1119 = vmatprep.subr.mxu0 0.0
      %1120 = vmatpush1.msra.mxu0 0.0
      %1121 = vmatprep.subr.mxu0 0.0
      %1122 = vmatpush1.msra.mxu0 0.0
      %1123 = vmatprep.subr.mxu0 0.0
      %1124 = vmatpush1.msra.mxu0 0.0
      %1125 = vmatprep.subr.mxu0 0.0
      %1126 = vmatpush1.msra.mxu0 0.0
      %1127 = vmatprep.subr.mxu0 0.0
      %1128 = vmatpush1.msra.mxu0 0.0
      %1129 = vmatprep.subr.mxu0 0.0
      %1130 = vmatpush1.msra.mxu0 0.0
      %1131 = vmatprep.subr.mxu0 0.0
      %1132 = vmatpush1.msra.mxu0 0.0
      %1133 = vmatprep.subr.mxu0 0.0
      %1134 = vmatpush1.msra.mxu0 0.0
      %1135 = vmatprep.subr.mxu0 0.0
      %1136 = vmatpush1.msra.mxu0 0.0
      %1137 = vmatprep.subr.mxu0 0.0
      %1138 = vmatpush1.msra.mxu0 0.0
      %1139 = vmatprep.subr.mxu0 0.0
      %1140 = vmatpush1.msra.mxu0 0.0
      %1141 = vmatprep.subr.mxu0 0.0
      %1142 = vmatpush1.msra.mxu0 0.0
      %1143 = vmatprep.subr.mxu0 0.0
      %1144 = vmatpush1.msra.mxu0 0.0
      %1145 = vmatprep.subr.mxu0 0.0
      %1146 = vmatpush1.msra.mxu0 0.0
      %1147 = vmatprep.subr.mxu0 0.0
      %1148 = vmatpush1.msra.mxu0 0.0
      %1149 = vmatprep.subr.mxu0 0.0
      %1150 = vmatpush1.msra.mxu0 0.0
      %1151 = vmatprep.subr.mxu0 0.0
      %1152 = vmatpush1.msra.mxu0 0.0
      %1153 = vmatprep.mubr.f32.mxu0 0.0
      %1154 = vmatmul.mubr.f32.gmra.mrb[0].mxu0 %v1039
      %v1155 = vpop.f32.mrb[0].mxu0
      %v1156 = vadd.f32 0.0, %v1155
      %v1157 = vpop.f32.mrb[0].mxu0
      %1158 = vmatprep.mubr.f32.mxu0 0.0
      %1159 = vmatmul.mubr.f32.gmra.mrb[0].mxu0 %v1042
      %v1160 = vpop.f32.mrb[0].mxu0
      %v1161 = vadd.f32 0.0, %v1160
      %v1162 = vpop.f32.mrb[0].mxu0
      %1163 = vmatprep.mubr.f32.mxu0 0.0
      %1164 = vmatmul.mubr.f32.gmra.mrb[0].mxu0 %v1045
      %v1165 = vpop.f32.mrb[0].mxu0
      %v1166 = vadd.f32 0.0, %v1165
      %v1167 = vpop.f32.mrb[0].mxu0
      %1168 = vmatprep.mubr.f32.mxu0 0.0
      %1169 = vmatmul.mubr.f32.gmra.mrb[0].mxu0 %v1048
      %v1170 = vpop.f32.mrb[0].mxu0
      %v1171 = vadd.f32 0.0, %v1170
      %v1172 = vpop.f32.mrb[0].mxu0
      %1173 = vmatprep.mubr.f32.mxu0 0.0
      %1174 = vmatmul.mubr.f32.gmra.mrb[0].mxu0 %v1051
      %v1175 = vpop.f32.mrb[0].mxu0
      %v1176 = vadd.f32 0.0, %v1175
      %v1177 = vpop.f32.mrb[0].mxu0
      %1178 = vmatprep.mubr.f32.mxu0 0.0
      %1179 = vmatmul.mubr.f32.gmra.mrb[0].mxu0 %v1054
      %v1180 = vpop.f32.mrb[0].mxu0
      %v1181 = vadd.f32 0.0, %v1180
      %v1182 = vpop.f32.mrb[0].mxu0
      %1183 = vmatprep.mubr.f32.mxu0 0.0
      %1184 = vmatmul.mubr.f32.gmra.mrb[0].mxu0 %v1057
      %v1185 = vpop.f32.mrb[0].mxu0
      %v1186 = vadd.f32 0.0, %v1185
      %v1187 = vpop.f32.mrb[0].mxu0
      %1188 = vmatprep.mubr.f32.mxu0 0.0
      %1189 = vmatmul.mubr.f32.gmra.mrb[0].mxu0 %v1060
      %v1190 = vpop.f32.mrb[0].mxu0
      %v1191 = vadd.f32 0.0, %v1190
      %v1192 = vpop.f32.mrb[0].mxu0
      %1193 = vmatprep.mubr.f32.mxu0 0.0
      %1194 = vmatmul.mubr.f32.gmra.mrb[0].mxu0 %v1063
      %v1195 = vpop.f32.mrb[0].mxu0
      %v1196 = vadd.f32 0.0, %v1195
      %v1197 = vpop.f32.mrb[0].mxu0
      %1198 = vmatprep.mubr.f32.mxu0 0.0
      %1199 = vmatmul.mubr.f32.gmra.mrb[0].mxu0 %v1066
      %v1200 = vpop.f32.mrb[0].mxu0
      %v1201 = vadd.f32 0.0, %v1200
      %v1202 = vpop.f32.mrb[0].mxu0
      %1203 = vmatprep.mubr.f32.mxu0 0.0
      %1204 = vmatmul.mubr.f32.gmra.mrb[0].mxu0 %v1069
      %v1205 = vpop.f32.mrb[0].mxu0
      %v1206 = vadd.f32 0.0, %v1205
      %v1207 = vpop.f32.mrb[0].mxu0
      %1208 = vmatprep.mubr.f32.mxu0 0.0
      %1209 = vmatmul.mubr.f32.gmra.mrb[0].mxu0 %v1072
      %v1210 = vpop.f32.mrb[0].mxu0
      %v1211 = vadd.f32 0.0, %v1210
      %v1212 = vpop.f32.mrb[0].mxu0
      %1213 = vmatprep.mubr.f32.mxu0 0.0
      %1214 = vmatmul.mubr.f32.gmra.mrb[0].mxu0 %v1075
      %v1215 = vpop.f32.mrb[0].mxu0
      %v1216 = vadd.f32 0.0, %v1215
      %v1217 = vpop.f32.mrb[0].mxu0
      %1218 = vmatprep.mubr.f32.mxu0 0.0
      %1219 = vmatmul.mubr.f32.gmra.mrb[0].mxu0 %v1078
      %v1220 = vpop.f32.mrb[0].mxu0
      %v1221 = vadd.f32 0.0, %v1220
      %v1222 = vpop.f32.mrb[0].mxu0
      %1223 = vmatprep.mubr.f32.mxu0 0.0
      %1224 = vmatmul.mubr.f32.gmra.mrb[0].mxu0 %v1081
      %v1225 = vpop.f32.mrb[0].mxu0
      %v1226 = vadd.f32 0.0, %v1225
      %v1227 = vpop.f32.mrb[0].mxu0
      %1228 = vmatprep.mubr.f32.mxu0 0.0
      %1229 = vmatmul.mubr.f32.gmra.mrb[0].mxu0 %v1084
      %v1230 = vpop.f32.mrb[0].mxu0
      %v1231 = vadd.f32 0.0, %v1230
      %v1232 = vpop.f32.mrb[0].mxu0
      %1233 = vdwg.mxu0
      %v1235 = vsel %vm323, %v1035, 0
      %1237 = vmatprep.subr.mxu0 0.0
      %1238 = vmatpush1.msra.mxu0 %v1235
      %1239 = vmatprep.subr.mxu0 0.0
      %1240 = vmatpush1.msra.mxu0 0.0
      %1241 = vmatprep.subr.mxu0 0.0
      %1242 = vmatpush1.msra.mxu0 0.0
      %1243 = vmatprep.subr.mxu0 0.0
      %1244 = vmatpush1.msra.mxu0 0.0
      %1245 = vmatprep.subr.mxu0 0.0
      %1246 = vmatpush1.msra.mxu0 0.0
      %1247 = vmatprep.subr.mxu0 0.0
      %1248 = vmatpush1.msra.mxu0 0.0
      %1249 = vmatprep.subr.mxu0 0.0
      %1250 = vmatpush1.msra.mxu0 0.0
      %1251 = vmatprep.subr.mxu0 0.0
      %1252 = vmatpush1.msra.mxu0 0.0
      %1253 = vmatprep.subr.mxu0 0.0
      %1254 = vmatpush1.msra.mxu0 0.0
      %1255 = vmatprep.subr.mxu0 0.0
      %1256 = vmatpush1.msra.mxu0 0.0
      %1257 = vmatprep.subr.mxu0 0.0
      %1258 = vmatpush1.msra.mxu0 0.0
      %1259 = vmatprep.subr.mxu0 0.0
      %1260 = vmatpush1.msra.mxu0 0.0
      %1261 = vmatprep.subr.mxu0 0.0
      %1262 = vmatpush1.msra.mxu0 0.0
      %1263 = vmatprep.subr.mxu0 0.0
      %1264 = vmatpush1.msra.mxu0 0.0
      %1265 = vmatprep.subr.mxu0 0.0
      %1266 = vmatpush1.msra.mxu0 0.0
      %1267 = vmatprep.subr.mxu0 0.0
      %1268 = vmatpush1.msra.mxu0 0.0
      %1269 = vmatprep.subr.mxu0 0.0
      %1270 = vmatpush1.msra.mxu0 0.0
      %1271 = vmatprep.subr.mxu0 0.0
      %1272 = vmatpush1.msra.mxu0 0.0
      %1273 = vmatprep.subr.mxu0 0.0
      %1274 = vmatpush1.msra.mxu0 0.0
      %1275 = vmatprep.subr.mxu0 0.0
      %1276 = vmatpush1.msra.mxu0 0.0
      %1277 = vmatprep.subr.mxu0 0.0
      %1278 = vmatpush1.msra.mxu0 0.0
      %1279 = vmatprep.subr.mxu0 0.0
      %1280 = vmatpush1.msra.mxu0 0.0
      %1281 = vmatprep.subr.mxu0 0.0
      %1282 = vmatpush1.msra.mxu0 0.0
      %1283 = vmatprep.subr.mxu0 0.0
      %1284 = vmatpush1.msra.mxu0 0.0
      %1285 = vmatprep.subr.mxu0 0.0
      %1286 = vmatpush1.msra.mxu0 0.0
      %1287 = vmatprep.subr.mxu0 0.0
      %1288 = vmatpush1.msra.mxu0 0.0
      %1289 = vmatprep.subr.mxu0 0.0
      %1290 = vmatpush1.msra.mxu0 0.0
      %1291 = vmatprep.subr.mxu0 0.0
      %1292 = vmatpush1.msra.mxu0 0.0
      %1293 = vmatprep.subr.mxu0 0.0
      %1294 = vmatpush1.msra.mxu0 0.0
      %1295 = vmatprep.subr.mxu0 0.0
      %1296 = vmatpush1.msra.mxu0 0.0
      %1297 = vmatprep.subr.mxu0 0.0
      %1298 = vmatpush1.msra.mxu0 0.0
      %1299 = vmatprep.subr.mxu0 0.0
      %1300 = vmatpush1.msra.mxu0 0.0
      %1301 = vmatprep.mubr.f32.mxu0 0.0
      %1302 = vmatmul.mubr.f32.gmra.mrb[0].mxu0 %v276
      %v1303 = vpop.f32.mrb[0].mxu0
      %v1304 = vadd.f32 %v1156, %v1303
      %v1305 = vpop.f32.mrb[0].mxu0
      %1306 = vmatprep.mubr.f32.mxu0 0.0
      %1307 = vmatmul.mubr.f32.gmra.mrb[0].mxu0 %v279
      %v1308 = vpop.f32.mrb[0].mxu0
      %v1309 = vadd.f32 %v1161, %v1308
      %v1310 = vpop.f32.mrb[0].mxu0
      %1311 = vmatprep.mubr.f32.mxu0 0.0
      %1312 = vmatmul.mubr.f32.gmra.mrb[0].mxu0 %v282
      %v1313 = vpop.f32.mrb[0].mxu0
      %v1314 = vadd.f32 %v1166, %v1313
      %v1315 = vpop.f32.mrb[0].mxu0
      %1316 = vmatprep.mubr.f32.mxu0 0.0
      %1317 = vmatmul.mubr.f32.gmra.mrb[0].mxu0 %v285
      %v1318 = vpop.f32.mrb[0].mxu0
      %v1319 = vadd.f32 %v1171, %v1318
      %v1320 = vpop.f32.mrb[0].mxu0
      %1321 = vmatprep.mubr.f32.mxu0 0.0
      %1322 = vmatmul.mubr.f32.gmra.mrb[0].mxu0 %v288
      %v1323 = vpop.f32.mrb[0].mxu0
      %v1324 = vadd.f32 %v1176, %v1323
      %v1325 = vpop.f32.mrb[0].mxu0
      %1326 = vmatprep.mubr.f32.mxu0 0.0
      %1327 = vmatmul.mubr.f32.gmra.mrb[0].mxu0 %v291
      %v1328 = vpop.f32.mrb[0].mxu0
      %v1329 = vadd.f32 %v1181, %v1328
      %v1330 = vpop.f32.mrb[0].mxu0
      %1331 = vmatprep.mubr.f32.mxu0 0.0
      %1332 = vmatmul.mubr.f32.gmra.mrb[0].mxu0 %v294
      %v1333 = vpop.f32.mrb[0].mxu0
      %v1334 = vadd.f32 %v1186, %v1333
      %v1335 = vpop.f32.mrb[0].mxu0
      %1336 = vmatprep.mubr.f32.mxu0 0.0
      %1337 = vmatmul.mubr.f32.gmra.mrb[0].mxu0 %v297
      %v1338 = vpop.f32.mrb[0].mxu0
      %v1339 = vadd.f32 %v1191, %v1338
      %v1340 = vpop.f32.mrb[0].mxu0
      %1341 = vmatprep.mubr.f32.mxu0 0.0
      %1342 = vmatmul.mubr.f32.gmra.mrb[0].mxu0 %v300
      %v1343 = vpop.f32.mrb[0].mxu0
      %v1344 = vadd.f32 %v1196, %v1343
      %v1345 = vpop.f32.mrb[0].mxu0
      %1346 = vmatprep.mubr.f32.mxu0 0.0
      %1347 = vmatmul.mubr.f32.gmra.mrb[0].mxu0 %v303
      %v1348 = vpop.f32.mrb[0].mxu0
      %v1349 = vadd.f32 %v1201, %v1348
      %v1350 = vpop.f32.mrb[0].mxu0
      %1351 = vmatprep.mubr.f32.mxu0 0.0
      %1352 = vmatmul.mubr.f32.gmra.mrb[0].mxu0 %v306
      %v1353 = vpop.f32.mrb[0].mxu0
      %v1354 = vadd.f32 %v1206, %v1353
      %v1355 = vpop.f32.mrb[0].mxu0
      %1356 = vmatprep.mubr.f32.mxu0 0.0
      %1357 = vmatmul.mubr.f32.gmra.mrb[0].mxu0 %v309
      %v1358 = vpop.f32.mrb[0].mxu0
      %v1359 = vadd.f32 %v1211, %v1358
      %v1360 = vpop.f32.mrb[0].mxu0
      %1361 = vmatprep.mubr.f32.mxu0 0.0
      %1362 = vmatmul.mubr.f32.gmra.mrb[0].mxu0 %v312
      %v1363 = vpop.f32.mrb[0].mxu0
      %v1364 = vadd.f32 %v1216, %v1363
      %v1365 = vpop.f32.mrb[0].mxu0
      %1366 = vmatprep.mubr.f32.mxu0 0.0
      %1367 = vmatmul.mubr.f32.gmra.mrb[0].mxu0 %v315
      %v1368 = vpop.f32.mrb[0].mxu0
      %v1369 = vadd.f32 %v1221, %v1368
      %v1370 = vpop.f32.mrb[0].mxu0
      %1371 = vmatprep.mubr.f32.mxu0 0.0
      %1372 = vmatmul.mubr.f32.gmra.mrb[0].mxu0 %v318
      %v1373 = vpop.f32.mrb[0].mxu0
      %v1374 = vadd.f32 %v1226, %v1373
      %v1375 = vpop.f32.mrb[0].mxu0
      %1376 = vmatprep.mubr.f32.mxu0 0.0
      %1377 = vmatmul.mubr.f32.gmra.mrb[0].mxu0 %v321
      %v1378 = vpop.f32.mrb[0].mxu0
      %v1379 = vadd.f32 %v1231, %v1378
      %v1380 = vpop.f32.mrb[0].mxu0
      %1381 = vdwg.mxu0
      %s1382 = scalar_lea.vmem %s1, 24
      %v1383 = vld [vmem:[%s1382] sm:$0xf]
      %v1385 = vsel %vm323, %v1383, 0
      %1387 = vmatprep.subr.mxu0 0.0
      %1388 = vmatpush1.msra.mxu0 %v1385
      %1389 = vmatprep.subr.mxu0 0.0
      %1390 = vmatpush1.msra.mxu0 0.0
      %1391 = vmatprep.subr.mxu0 0.0
      %1392 = vmatpush1.msra.mxu0 0.0
      %1393 = vmatprep.subr.mxu0 0.0
      %1394 = vmatpush1.msra.mxu0 0.0
      %1395 = vmatprep.subr.mxu0 0.0
      %1396 = vmatpush1.msra.mxu0 0.0
      %1397 = vmatprep.subr.mxu0 0.0
      %1398 = vmatpush1.msra.mxu0 0.0
      %1399 = vmatprep.subr.mxu0 0.0
      %1400 = vmatpush1.msra.mxu0 0.0
      %1401 = vmatprep.subr.mxu0 0.0
      %1402 = vmatpush1.msra.mxu0 0.0
      %1403 = vmatprep.subr.mxu0 0.0
      %1404 = vmatpush1.msra.mxu0 0.0
      %1405 = vmatprep.subr.mxu0 0.0
      %1406 = vmatpush1.msra.mxu0 0.0
      %1407 = vmatprep.subr.mxu0 0.0
      %1408 = vmatpush1.msra.mxu0 0.0
      %1409 = vmatprep.subr.mxu0 0.0
      %1410 = vmatpush1.msra.mxu0 0.0
      %1411 = vmatprep.subr.mxu0 0.0
      %1412 = vmatpush1.msra.mxu0 0.0
      %1413 = vmatprep.subr.mxu0 0.0
      %1414 = vmatpush1.msra.mxu0 0.0
      %1415 = vmatprep.subr.mxu0 0.0
      %1416 = vmatpush1.msra.mxu0 0.0
      %1417 = vmatprep.subr.mxu0 0.0
      %1418 = vmatpush1.msra.mxu0 0.0
      %1419 = vmatprep.subr.mxu0 0.0
      %1420 = vmatpush1.msra.mxu0 0.0
      %1421 = vmatprep.subr.mxu0 0.0
      %1422 = vmatpush1.msra.mxu0 0.0
      %1423 = vmatprep.subr.mxu0 0.0
      %1424 = vmatpush1.msra.mxu0 0.0
      %1425 = vmatprep.subr.mxu0 0.0
      %1426 = vmatpush1.msra.mxu0 0.0
      %1427 = vmatprep.subr.mxu0 0.0
      %1428 = vmatpush1.msra.mxu0 0.0
      %1429 = vmatprep.subr.mxu0 0.0
      %1430 = vmatpush1.msra.mxu0 0.0
      %1431 = vmatprep.subr.mxu0 0.0
      %1432 = vmatpush1.msra.mxu0 0.0
      %1433 = vmatprep.subr.mxu0 0.0
      %1434 = vmatpush1.msra.mxu0 0.0
      %1435 = vmatprep.subr.mxu0 0.0
      %1436 = vmatpush1.msra.mxu0 0.0
      %1437 = vmatprep.subr.mxu0 0.0
      %1438 = vmatpush1.msra.mxu0 0.0
      %1439 = vmatprep.subr.mxu0 0.0
      %1440 = vmatpush1.msra.mxu0 0.0
      %1441 = vmatprep.subr.mxu0 0.0
      %1442 = vmatpush1.msra.mxu0 0.0
      %1443 = vmatprep.subr.mxu0 0.0
      %1444 = vmatpush1.msra.mxu0 0.0
      %1445 = vmatprep.subr.mxu0 0.0
      %1446 = vmatpush1.msra.mxu0 0.0
      %1447 = vmatprep.subr.mxu0 0.0
      %1448 = vmatpush1.msra.mxu0 0.0
      %1449 = vmatprep.subr.mxu0 0.0
      %1450 = vmatpush1.msra.mxu0 0.0
      %1451 = vmatprep.mubr.f32.mxu0 0.0
      %1452 = vmatmul.mubr.f32.gmra.mrb[0].mxu0 %v282
      %v1453 = vpop.f32.mrb[0].mxu0
      %v1454 = vadd.f32 0.0, %v1453
      %v1455 = vpop.f32.mrb[0].mxu0
      %1456 = vmatprep.mubr.f32.mxu0 0.0
      %1457 = vmatmul.mubr.f32.gmra.mrb[0].mxu0 %v285
      %v1458 = vpop.f32.mrb[0].mxu0
      %v1459 = vadd.f32 0.0, %v1458
      %v1460 = vpop.f32.mrb[0].mxu0
      %1461 = vmatprep.mubr.f32.mxu0 0.0
      %1462 = vmatmul.mubr.f32.gmra.mrb[0].mxu0 %v288
      %v1463 = vpop.f32.mrb[0].mxu0
      %v1464 = vadd.f32 0.0, %v1463
      %v1465 = vpop.f32.mrb[0].mxu0
      %1466 = vmatprep.mubr.f32.mxu0 0.0
      %1467 = vmatmul.mubr.f32.gmra.mrb[0].mxu0 %v291
      %v1468 = vpop.f32.mrb[0].mxu0
      %v1469 = vadd.f32 0.0, %v1468
      %v1470 = vpop.f32.mrb[0].mxu0
      %1471 = vmatprep.mubr.f32.mxu0 0.0
      %1472 = vmatmul.mubr.f32.gmra.mrb[0].mxu0 %v294
      %v1473 = vpop.f32.mrb[0].mxu0
      %v1474 = vadd.f32 0.0, %v1473
      %v1475 = vpop.f32.mrb[0].mxu0
      %1476 = vmatprep.mubr.f32.mxu0 0.0
      %1477 = vmatmul.mubr.f32.gmra.mrb[0].mxu0 %v297
      %v1478 = vpop.f32.mrb[0].mxu0
      %v1479 = vadd.f32 0.0, %v1478
      %v1480 = vpop.f32.mrb[0].mxu0
      %1481 = vmatprep.mubr.f32.mxu0 0.0
      %1482 = vmatmul.mubr.f32.gmra.mrb[0].mxu0 %v300
      %v1483 = vpop.f32.mrb[0].mxu0
      %v1484 = vadd.f32 0.0, %v1483
      %v1485 = vpop.f32.mrb[0].mxu0
      %1486 = vmatprep.mubr.f32.mxu0 0.0
      %1487 = vmatmul.mubr.f32.gmra.mrb[0].mxu0 %v303
      %v1488 = vpop.f32.mrb[0].mxu0
      %v1489 = vadd.f32 0.0, %v1488
      %v1490 = vpop.f32.mrb[0].mxu0
      %1491 = vmatprep.mubr.f32.mxu0 0.0
      %1492 = vmatmul.mubr.f32.gmra.mrb[0].mxu0 %v306
      %v1493 = vpop.f32.mrb[0].mxu0
      %v1494 = vadd.f32 0.0, %v1493
      %v1495 = vpop.f32.mrb[0].mxu0
      %1496 = vmatprep.mubr.f32.mxu0 0.0
      %1497 = vmatmul.mubr.f32.gmra.mrb[0].mxu0 %v309
      %v1498 = vpop.f32.mrb[0].mxu0
      %v1499 = vadd.f32 0.0, %v1498
      %v1500 = vpop.f32.mrb[0].mxu0
      %1501 = vmatprep.mubr.f32.mxu0 0.0
      %1502 = vmatmul.mubr.f32.gmra.mrb[0].mxu0 %v312
      %v1503 = vpop.f32.mrb[0].mxu0
      %v1504 = vadd.f32 0.0, %v1503
      %v1505 = vpop.f32.mrb[0].mxu0
      %1506 = vmatprep.mubr.f32.mxu0 0.0
      %1507 = vmatmul.mubr.f32.gmra.mrb[0].mxu0 %v315
      %v1508 = vpop.f32.mrb[0].mxu0
      %v1509 = vadd.f32 0.0, %v1508
      %v1510 = vpop.f32.mrb[0].mxu0
      %1511 = vmatprep.mubr.f32.mxu0 0.0
      %1512 = vmatmul.mubr.f32.gmra.mrb[0].mxu0 %v318
      %v1513 = vpop.f32.mrb[0].mxu0
      %v1514 = vadd.f32 0.0, %v1513
      %v1515 = vpop.f32.mrb[0].mxu0
      %1516 = vmatprep.mubr.f32.mxu0 0.0
      %1517 = vmatmul.mubr.f32.gmra.mrb[0].mxu0 %v321
      %v1518 = vpop.f32.mrb[0].mxu0
      %v1519 = vadd.f32 0.0, %v1518
      %v1520 = vpop.f32.mrb[0].mxu0
      %1521 = vmatprep.mubr.f32.mxu0 0.0
      %1522 = vmatmul.mubr.f32.gmra.mrb[0].mxu0 %v843
      %v1523 = vpop.f32.mrb[0].mxu0
      %v1524 = vadd.f32 0.0, %v1523
      %v1525 = vpop.f32.mrb[0].mxu0
      %1526 = vmatprep.mubr.f32.mxu0 0.0
      %1527 = vmatmul.mubr.f32.gmra.mrb[0].mxu0 %v846
      %v1528 = vpop.f32.mrb[0].mxu0
      %v1529 = vadd.f32 0.0, %v1528
      %v1530 = vpop.f32.mrb[0].mxu0
      %1531 = vdwg.mxu0
      %v1532 = vadd.f32 %v1304, %v1454
      %v1533 = vadd.f32 %v1309, %v1459
      %v1534 = vadd.f32 %v1314, %v1464
      %v1535 = vadd.f32 %v1319, %v1469
      %v1536 = vadd.f32 %v1324, %v1474
      %v1537 = vadd.f32 %v1329, %v1479
      %v1538 = vadd.f32 %v1334, %v1484
      %v1539 = vadd.f32 %v1339, %v1489
      %v1540 = vadd.f32 %v1344, %v1494
      %v1541 = vadd.f32 %v1349, %v1499
      %v1542 = vadd.f32 %v1354, %v1504
      %v1543 = vadd.f32 %v1359, %v1509
      %v1544 = vadd.f32 %v1364, %v1514
      %v1545 = vadd.f32 %v1369, %v1519
      %v1546 = vadd.f32 %v1374, %v1524
      %v1547 = vadd.f32 %v1379, %v1529
      %s1548 = scalar_lea.vmem %s1, 28
      %v1549 = vld [vmem:[%s1548] sm:$0xf]
      %v1551 = vsel %vm274, %v266, 0
      %v1554 = vsel %vm274, %v267, 0
      %v1557 = vsel %vm323, %v1549, 0
      %1559 = vmatprep.subr.mxu0 0.0
      %1560 = vmatpush1.msra.mxu0 %v1557
      %1561 = vmatprep.subr.mxu0 0.0
      %1562 = vmatpush1.msra.mxu0 0.0
      %1563 = vmatprep.subr.mxu0 0.0
      %1564 = vmatpush1.msra.mxu0 0.0
      %1565 = vmatprep.subr.mxu0 0.0
      %1566 = vmatpush1.msra.mxu0 0.0
      %1567 = vmatprep.subr.mxu0 0.0
      %1568 = vmatpush1.msra.mxu0 0.0
      %1569 = vmatprep.subr.mxu0 0.0
      %1570 = vmatpush1.msra.mxu0 0.0
      %1571 = vmatprep.subr.mxu0 0.0
      %1572 = vmatpush1.msra.mxu0 0.0
      %1573 = vmatprep.subr.mxu0 0.0
      %1574 = vmatpush1.msra.mxu0 0.0
      %1575 = vmatprep.subr.mxu0 0.0
      %1576 = vmatpush1.msra.mxu0 0.0
      %1577 = vmatprep.subr.mxu0 0.0
      %1578 = vmatpush1.msra.mxu0 0.0
      %1579 = vmatprep.subr.mxu0 0.0
      %1580 = vmatpush1.msra.mxu0 0.0
      %1581 = vmatprep.subr.mxu0 0.0
      %1582 = vmatpush1.msra.mxu0 0.0
      %1583 = vmatprep.subr.mxu0 0.0
      %1584 = vmatpush1.msra.mxu0 0.0
      %1585 = vmatprep.subr.mxu0 0.0
      %1586 = vmatpush1.msra.mxu0 0.0
      %1587 = vmatprep.subr.mxu0 0.0
      %1588 = vmatpush1.msra.mxu0 0.0
      %1589 = vmatprep.subr.mxu0 0.0
      %1590 = vmatpush1.msra.mxu0 0.0
      %1591 = vmatprep.subr.mxu0 0.0
      %1592 = vmatpush1.msra.mxu0 0.0
      %1593 = vmatprep.subr.mxu0 0.0
      %1594 = vmatpush1.msra.mxu0 0.0
      %1595 = vmatprep.subr.mxu0 0.0
      %1596 = vmatpush1.msra.mxu0 0.0
      %1597 = vmatprep.subr.mxu0 0.0
      %1598 = vmatpush1.msra.mxu0 0.0
      %1599 = vmatprep.subr.mxu0 0.0
      %1600 = vmatpush1.msra.mxu0 0.0
      %1601 = vmatprep.subr.mxu0 0.0
      %1602 = vmatpush1.msra.mxu0 0.0
      %1603 = vmatprep.subr.mxu0 0.0
      %1604 = vmatpush1.msra.mxu0 0.0
      %1605 = vmatprep.subr.mxu0 0.0
      %1606 = vmatpush1.msra.mxu0 0.0
      %1607 = vmatprep.subr.mxu0 0.0
      %1608 = vmatpush1.msra.mxu0 0.0
      %1609 = vmatprep.subr.mxu0 0.0
      %1610 = vmatpush1.msra.mxu0 0.0
      %1611 = vmatprep.subr.mxu0 0.0
      %1612 = vmatpush1.msra.mxu0 0.0
      %1613 = vmatprep.subr.mxu0 0.0
      %1614 = vmatpush1.msra.mxu0 0.0
      %1615 = vmatprep.subr.mxu0 0.0
      %1616 = vmatpush1.msra.mxu0 0.0
      %1617 = vmatprep.subr.mxu0 0.0
      %1618 = vmatpush1.msra.mxu0 0.0
      %1619 = vmatprep.subr.mxu0 0.0
      %1620 = vmatpush1.msra.mxu0 0.0
      %1621 = vmatprep.subr.mxu0 0.0
      %1622 = vmatpush1.msra.mxu0 0.0
      %1623 = vmatprep.mubr.f32.mxu0 0.0
      %1624 = vmatmul.mubr.f32.gmra.mrb[0].mxu0 %v1045
      %v1625 = vpop.f32.mrb[0].mxu0
      %v1626 = vadd.f32 0.0, %v1625
      %v1627 = vpop.f32.mrb[0].mxu0
      %1628 = vmatprep.mubr.f32.mxu0 0.0
      %1629 = vmatmul.mubr.f32.gmra.mrb[0].mxu0 %v1048
      %v1630 = vpop.f32.mrb[0].mxu0
      %v1631 = vadd.f32 0.0, %v1630
      %v1632 = vpop.f32.mrb[0].mxu0
      %1633 = vmatprep.mubr.f32.mxu0 0.0
      %1634 = vmatmul.mubr.f32.gmra.mrb[0].mxu0 %v1051
      %v1635 = vpop.f32.mrb[0].mxu0
      %v1636 = vadd.f32 0.0, %v1635
      %v1637 = vpop.f32.mrb[0].mxu0
      %1638 = vmatprep.mubr.f32.mxu0 0.0
      %1639 = vmatmul.mubr.f32.gmra.mrb[0].mxu0 %v1054
      %v1640 = vpop.f32.mrb[0].mxu0
      %v1641 = vadd.f32 0.0, %v1640
      %v1642 = vpop.f32.mrb[0].mxu0
      %1643 = vmatprep.mubr.f32.mxu0 0.0
      %1644 = vmatmul.mubr.f32.gmra.mrb[0].mxu0 %v1057
      %v1645 = vpop.f32.mrb[0].mxu0
      %v1646 = vadd.f32 0.0, %v1645
      %v1647 = vpop.f32.mrb[0].mxu0
      %1648 = vmatprep.mubr.f32.mxu0 0.0
      %1649 = vmatmul.mubr.f32.gmra.mrb[0].mxu0 %v1060
      %v1650 = vpop.f32.mrb[0].mxu0
      %v1651 = vadd.f32 0.0, %v1650
      %v1652 = vpop.f32.mrb[0].mxu0
      %1653 = vmatprep.mubr.f32.mxu0 0.0
      %1654 = vmatmul.mubr.f32.gmra.mrb[0].mxu0 %v1063
      %v1655 = vpop.f32.mrb[0].mxu0
      %v1656 = vadd.f32 0.0, %v1655
      %v1657 = vpop.f32.mrb[0].mxu0
      %1658 = vmatprep.mubr.f32.mxu0 0.0
      %1659 = vmatmul.mubr.f32.gmra.mrb[0].mxu0 %v1066
      %v1660 = vpop.f32.mrb[0].mxu0
      %v1661 = vadd.f32 0.0, %v1660
      %v1662 = vpop.f32.mrb[0].mxu0
      %1663 = vmatprep.mubr.f32.mxu0 0.0
      %1664 = vmatmul.mubr.f32.gmra.mrb[0].mxu0 %v1069
      %v1665 = vpop.f32.mrb[0].mxu0
      %v1666 = vadd.f32 0.0, %v1665
      %v1667 = vpop.f32.mrb[0].mxu0
      %1668 = vmatprep.mubr.f32.mxu0 0.0
      %1669 = vmatmul.mubr.f32.gmra.mrb[0].mxu0 %v1072
      %v1670 = vpop.f32.mrb[0].mxu0
      %v1671 = vadd.f32 0.0, %v1670
      %v1672 = vpop.f32.mrb[0].mxu0
      %1673 = vmatprep.mubr.f32.mxu0 0.0
      %1674 = vmatmul.mubr.f32.gmra.mrb[0].mxu0 %v1075
      %v1675 = vpop.f32.mrb[0].mxu0
      %v1676 = vadd.f32 0.0, %v1675
      %v1677 = vpop.f32.mrb[0].mxu0
      %1678 = vmatprep.mubr.f32.mxu0 0.0
      %1679 = vmatmul.mubr.f32.gmra.mrb[0].mxu0 %v1078
      %v1680 = vpop.f32.mrb[0].mxu0
      %v1681 = vadd.f32 0.0, %v1680
      %v1682 = vpop.f32.mrb[0].mxu0
      %1683 = vmatprep.mubr.f32.mxu0 0.0
      %1684 = vmatmul.mubr.f32.gmra.mrb[0].mxu0 %v1081
      %v1685 = vpop.f32.mrb[0].mxu0
      %v1686 = vadd.f32 0.0, %v1685
      %v1687 = vpop.f32.mrb[0].mxu0
      %1688 = vmatprep.mubr.f32.mxu0 0.0
      %1689 = vmatmul.mubr.f32.gmra.mrb[0].mxu0 %v1084
      %v1690 = vpop.f32.mrb[0].mxu0
      %v1691 = vadd.f32 0.0, %v1690
      %v1692 = vpop.f32.mrb[0].mxu0
      %1693 = vmatprep.mubr.f32.mxu0 0.0
      %1694 = vmatmul.mubr.f32.gmra.mrb[0].mxu0 %v1551
      %v1695 = vpop.f32.mrb[0].mxu0
      %v1696 = vadd.f32 0.0, %v1695
      %v1697 = vpop.f32.mrb[0].mxu0
      %1698 = vmatprep.mubr.f32.mxu0 0.0
      %1699 = vmatmul.mubr.f32.gmra.mrb[0].mxu0 %v1554
      %v1700 = vpop.f32.mrb[0].mxu0
      %v1701 = vadd.f32 0.0, %v1700
      %v1702 = vpop.f32.mrb[0].mxu0
      %1703 = vdwg.mxu0
      %v1704 = vadd.f32 %v1532, %v1626
      %v1705 = vadd.f32 %v1533, %v1631
      %v1706 = vadd.f32 %v1534, %v1636
      %v1707 = vadd.f32 %v1535, %v1641
      %v1708 = vadd.f32 %v1536, %v1646
      %v1709 = vadd.f32 %v1537, %v1651
      %v1710 = vadd.f32 %v1538, %v1656
      %v1711 = vadd.f32 %v1539, %v1661
      %v1712 = vadd.f32 %v1540, %v1666
      %v1713 = vadd.f32 %v1541, %v1671
      %v1714 = vadd.f32 %v1542, %v1676
      %v1715 = vadd.f32 %v1543, %v1681
      %v1716 = vadd.f32 %v1544, %v1686
      %v1717 = vadd.f32 %v1545, %v1691
      %v1718 = vadd.f32 %v1546, %v1696
      %v1719 = vadd.f32 %v1547, %v1701
      %v1720 = vadd.f32 %v1704, %v1016
      %v1721 = vadd.f32 %v1705, %v1016
      %v1722 = vadd.f32 %v1706, %v1016
      %v1723 = vadd.f32 %v1707, %v1016
      %v1724 = vadd.f32 %v1708, %v1016
      %v1725 = vadd.f32 %v1709, %v1016
      %v1726 = vadd.f32 %v1710, %v1016
      %v1727 = vadd.f32 %v1711, %v1016
      %v1728 = vadd.f32 %v1712, %v1016
      %v1729 = vadd.f32 %v1713, %v1016
      %v1730 = vadd.f32 %v1714, %v1016
      %v1731 = vadd.f32 %v1715, %v1016
      %v1732 = vadd.f32 %v1716, %v1016
      %v1733 = vadd.f32 %v1717, %v1016
      %v1734 = vadd.f32 %v1718, %v1016
      %v1735 = vadd.f32 %v1719, %v1016
      %1752 = vrot.lane.b32.xlu0 %v1720, 4
      %v1753 = vpop.permute.xlu0 %1752
      %1754 = vrot.lane.b32.xlu0 %v1721, 4
      %v1755 = vpop.permute.xlu0 %1754
      %1756 = vrot.lane.b32.xlu0 %v1722, 4
      %v1757 = vpop.permute.xlu0 %1756
      %1758 = vrot.lane.b32.xlu0 %v1723, 4
      %v1759 = vpop.permute.xlu0 %1758
      %1760 = vrot.lane.b32.xlu0 %v1724, 4
      %v1761 = vpop.permute.xlu0 %1760
      %1762 = vrot.lane.b32.xlu0 %v1725, 4
      %v1763 = vpop.permute.xlu0 %1762
      %1764 = vrot.lane.b32.xlu0 %v1726, 4
      %v1765 = vpop.permute.xlu0 %1764
      %1766 = vrot.lane.b32.xlu0 %v1727, 4
      %v1767 = vpop.permute.xlu0 %1766
      %1768 = vrot.lane.b32.xlu0 %v1728, 4
      %v1769 = vpop.permute.xlu0 %1768
      %1770 = vrot.lane.b32.xlu0 %v1729, 4
      %v1771 = vpop.permute.xlu0 %1770
      %1772 = vrot.lane.b32.xlu0 %v1730, 4
      %v1773 = vpop.permute.xlu0 %1772
      %1774 = vrot.lane.b32.xlu0 %v1731, 4
      %v1775 = vpop.permute.xlu0 %1774
      %1776 = vrot.lane.b32.xlu0 %v1732, 4
      %v1777 = vpop.permute.xlu0 %1776
      %1778 = vrot.lane.b32.xlu0 %v1733, 4
      %v1779 = vpop.permute.xlu0 %1778
      %1780 = vrot.lane.b32.xlu0 %v1734, 4
      %v1781 = vpop.permute.xlu0 %1780
      %1782 = vrot.lane.b32.xlu0 %v1735, 4
      %v1783 = vpop.permute.xlu0 %1782
      %v1800 = vsel %vm274, %v1018, %v1753
      %v1801 = vsel %vm274, %v1019, %v1755
      %v1802 = vsel %vm274, %v1020, %v1757
      %v1803 = vsel %vm274, %v1021, %v1759
      %v1804 = vsel %vm274, %v1022, %v1761
      %v1805 = vsel %vm274, %v1023, %v1763
      %v1806 = vsel %vm274, %v1024, %v1765
      %v1807 = vsel %vm274, %v1025, %v1767
      %v1808 = vsel %vm274, %v1026, %v1769
      %v1809 = vsel %vm274, %v1027, %v1771
      %v1810 = vsel %vm274, %v1028, %v1773
      %v1811 = vsel %vm274, %v1029, %v1775
      %v1812 = vsel %vm274, %v1030, %v1777
      %v1813 = vsel %vm274, %v1031, %v1779
      %v1814 = vsel %vm274, %v1032, %v1781
      %v1815 = vsel %vm274, %v1033, %v1783
      %vm1816 = vcmask 64512
      %1817 = vst.msk [vmem:[%s206] sm:$0xff] %vm1816, %v1800
      %1818 = vst.msk [vmem:[%s206 + $0x8] sm:$0xff] %vm1816, %v1801
      %1819 = vst.msk [vmem:[%s206 + $0x20] sm:$0xff] %vm1816, %v1802
      %1820 = vst.msk [vmem:[%s206 + $0x28] sm:$0xff] %vm1816, %v1803
      %1821 = vst.msk [vmem:[%s206 + $0x40] sm:$0xff] %vm1816, %v1804
      %1822 = vst.msk [vmem:[%s206 + $0x48] sm:$0xff] %vm1816, %v1805
      %1823 = vst.msk [vmem:[%s206 + $0x60] sm:$0xff] %vm1816, %v1806
      %1824 = vst.msk [vmem:[%s206 + $0x68] sm:$0xff] %vm1816, %v1807
      %1825 = vst.msk [vmem:[%s206 + $0x80] sm:$0xff] %vm1816, %v1808
      %1826 = vst.msk [vmem:[%s206 + $0x88] sm:$0xff] %vm1816, %v1809
      %1827 = vst.msk [vmem:[%s206 + $0xa0] sm:$0xff] %vm1816, %v1810
      %1828 = vst.msk [vmem:[%s206 + $0xa8] sm:$0xff] %vm1816, %v1811
      %1829 = vst.msk [vmem:[%s206 + $0xc0] sm:$0xff] %vm1816, %v1812
      %1830 = vst.msk [vmem:[%s206 + $0xc8] sm:$0xff] %vm1816, %v1813
      %1831 = vst.msk [vmem:[%s206 + $0xe0] sm:$0xff] %vm1816, %v1814
      %1832 = vst.msk [vmem:[%s206 + $0xe8] sm:$0xff] %vm1816, %v1815
      %s1833 = scalar_lea.vmem %s1, 32
      %v1834 = vld [vmem:[%s1833] sm:$0xf]
      %s1835 = scalar_lea.vmem %s1, 36
      %v1836 = vld [vmem:[%s1835] sm:$0xf]
      %v1838 = vsel %vm323, %v1836, 0
      %1840 = vmatprep.subr.mxu0 0.0
      %1841 = vmatpush1.msra.mxu0 %v1838
      %1842 = vmatprep.subr.mxu0 0.0
      %1843 = vmatpush1.msra.mxu0 0.0
      %1844 = vmatprep.subr.mxu0 0.0
      %1845 = vmatpush1.msra.mxu0 0.0
      %1846 = vmatprep.subr.mxu0 0.0
      %1847 = vmatpush1.msra.mxu0 0.0
      %1848 = vmatprep.subr.mxu0 0.0
      %1849 = vmatpush1.msra.mxu0 0.0
      %1850 = vmatprep.subr.mxu0 0.0
      %1851 = vmatpush1.msra.mxu0 0.0
      %1852 = vmatprep.subr.mxu0 0.0
      %1853 = vmatpush1.msra.mxu0 0.0
      %1854 = vmatprep.subr.mxu0 0.0
      %1855 = vmatpush1.msra.mxu0 0.0
      %1856 = vmatprep.subr.mxu0 0.0
      %1857 = vmatpush1.msra.mxu0 0.0
      %1858 = vmatprep.subr.mxu0 0.0
      %1859 = vmatpush1.msra.mxu0 0.0
      %1860 = vmatprep.subr.mxu0 0.0
      %1861 = vmatpush1.msra.mxu0 0.0
      %1862 = vmatprep.subr.mxu0 0.0
      %1863 = vmatpush1.msra.mxu0 0.0
      %1864 = vmatprep.subr.mxu0 0.0
      %1865 = vmatpush1.msra.mxu0 0.0
      %1866 = vmatprep.subr.mxu0 0.0
      %1867 = vmatpush1.msra.mxu0 0.0
      %1868 = vmatprep.subr.mxu0 0.0
      %1869 = vmatpush1.msra.mxu0 0.0
      %1870 = vmatprep.subr.mxu0 0.0
      %1871 = vmatpush1.msra.mxu0 0.0
      %1872 = vmatprep.subr.mxu0 0.0
      %1873 = vmatpush1.msra.mxu0 0.0
      %1874 = vmatprep.subr.mxu0 0.0
      %1875 = vmatpush1.msra.mxu0 0.0
      %1876 = vmatprep.subr.mxu0 0.0
      %1877 = vmatpush1.msra.mxu0 0.0
      %1878 = vmatprep.subr.mxu0 0.0
      %1879 = vmatpush1.msra.mxu0 0.0
      %1880 = vmatprep.subr.mxu0 0.0
      %1881 = vmatpush1.msra.mxu0 0.0
      %1882 = vmatprep.subr.mxu0 0.0
      %1883 = vmatpush1.msra.mxu0 0.0
      %1884 = vmatprep.subr.mxu0 0.0
      %1885 = vmatpush1.msra.mxu0 0.0
      %1886 = vmatprep.subr.mxu0 0.0
      %1887 = vmatpush1.msra.mxu0 0.0
      %1888 = vmatprep.subr.mxu0 0.0
      %1889 = vmatpush1.msra.mxu0 0.0
      %1890 = vmatprep.subr.mxu0 0.0
      %1891 = vmatpush1.msra.mxu0 0.0
      %1892 = vmatprep.subr.mxu0 0.0
      %1893 = vmatpush1.msra.mxu0 0.0
      %1894 = vmatprep.subr.mxu0 0.0
      %1895 = vmatpush1.msra.mxu0 0.0
      %1896 = vmatprep.subr.mxu0 0.0
      %1897 = vmatpush1.msra.mxu0 0.0
      %1898 = vmatprep.subr.mxu0 0.0
      %1899 = vmatpush1.msra.mxu0 0.0
      %1900 = vmatprep.subr.mxu0 0.0
      %1901 = vmatpush1.msra.mxu0 0.0
      %1902 = vmatprep.subr.mxu0 0.0
      %1903 = vmatpush1.msra.mxu0 0.0
      %1904 = vmatprep.mubr.f32.mxu0 0.0
      %1905 = vmatmul.mubr.f32.gmra.mrb[0].mxu0 %v282
      %v1906 = vpop.f32.mrb[0].mxu0
      %v1907 = vadd.f32 0.0, %v1906
      %v1908 = vpop.f32.mrb[0].mxu0
      %1909 = vmatprep.mubr.f32.mxu0 0.0
      %1910 = vmatmul.mubr.f32.gmra.mrb[0].mxu0 %v285
      %v1911 = vpop.f32.mrb[0].mxu0
      %v1912 = vadd.f32 0.0, %v1911
      %v1913 = vpop.f32.mrb[0].mxu0
      %1914 = vmatprep.mubr.f32.mxu0 0.0
      %1915 = vmatmul.mubr.f32.gmra.mrb[0].mxu0 %v288
      %v1916 = vpop.f32.mrb[0].mxu0
      %v1917 = vadd.f32 0.0, %v1916
      %v1918 = vpop.f32.mrb[0].mxu0
      %1919 = vmatprep.mubr.f32.mxu0 0.0
      %1920 = vmatmul.mubr.f32.gmra.mrb[0].mxu0 %v291
      %v1921 = vpop.f32.mrb[0].mxu0
      %v1922 = vadd.f32 0.0, %v1921
      %v1923 = vpop.f32.mrb[0].mxu0
      %1924 = vmatprep.mubr.f32.mxu0 0.0
      %1925 = vmatmul.mubr.f32.gmra.mrb[0].mxu0 %v294
      %v1926 = vpop.f32.mrb[0].mxu0
      %v1927 = vadd.f32 0.0, %v1926
      %v1928 = vpop.f32.mrb[0].mxu0
      %1929 = vmatprep.mubr.f32.mxu0 0.0
      %1930 = vmatmul.mubr.f32.gmra.mrb[0].mxu0 %v297
      %v1931 = vpop.f32.mrb[0].mxu0
      %v1932 = vadd.f32 0.0, %v1931
      %v1933 = vpop.f32.mrb[0].mxu0
      %1934 = vmatprep.mubr.f32.mxu0 0.0
      %1935 = vmatmul.mubr.f32.gmra.mrb[0].mxu0 %v300
      %v1936 = vpop.f32.mrb[0].mxu0
      %v1937 = vadd.f32 0.0, %v1936
      %v1938 = vpop.f32.mrb[0].mxu0
      %1939 = vmatprep.mubr.f32.mxu0 0.0
      %1940 = vmatmul.mubr.f32.gmra.mrb[0].mxu0 %v303
      %v1941 = vpop.f32.mrb[0].mxu0
      %v1942 = vadd.f32 0.0, %v1941
      %v1943 = vpop.f32.mrb[0].mxu0
      %1944 = vmatprep.mubr.f32.mxu0 0.0
      %1945 = vmatmul.mubr.f32.gmra.mrb[0].mxu0 %v306
      %v1946 = vpop.f32.mrb[0].mxu0
      %v1947 = vadd.f32 0.0, %v1946
      %v1948 = vpop.f32.mrb[0].mxu0
      %1949 = vmatprep.mubr.f32.mxu0 0.0
      %1950 = vmatmul.mubr.f32.gmra.mrb[0].mxu0 %v309
      %v1951 = vpop.f32.mrb[0].mxu0
      %v1952 = vadd.f32 0.0, %v1951
      %v1953 = vpop.f32.mrb[0].mxu0
      %1954 = vmatprep.mubr.f32.mxu0 0.0
      %1955 = vmatmul.mubr.f32.gmra.mrb[0].mxu0 %v312
      %v1956 = vpop.f32.mrb[0].mxu0
      %v1957 = vadd.f32 0.0, %v1956
      %v1958 = vpop.f32.mrb[0].mxu0
      %1959 = vmatprep.mubr.f32.mxu0 0.0
      %1960 = vmatmul.mubr.f32.gmra.mrb[0].mxu0 %v315
      %v1961 = vpop.f32.mrb[0].mxu0
      %v1962 = vadd.f32 0.0, %v1961
      %v1963 = vpop.f32.mrb[0].mxu0
      %1964 = vmatprep.mubr.f32.mxu0 0.0
      %1965 = vmatmul.mubr.f32.gmra.mrb[0].mxu0 %v318
      %v1966 = vpop.f32.mrb[0].mxu0
      %v1967 = vadd.f32 0.0, %v1966
      %v1968 = vpop.f32.mrb[0].mxu0
      %1969 = vmatprep.mubr.f32.mxu0 0.0
      %1970 = vmatmul.mubr.f32.gmra.mrb[0].mxu0 %v321
      %v1971 = vpop.f32.mrb[0].mxu0
      %v1972 = vadd.f32 0.0, %v1971
      %v1973 = vpop.f32.mrb[0].mxu0
      %1974 = vmatprep.mubr.f32.mxu0 0.0
      %1975 = vmatmul.mubr.f32.gmra.mrb[0].mxu0 %v843
      %v1976 = vpop.f32.mrb[0].mxu0
      %v1977 = vadd.f32 0.0, %v1976
      %v1978 = vpop.f32.mrb[0].mxu0
      %1979 = vmatprep.mubr.f32.mxu0 0.0
      %1980 = vmatmul.mubr.f32.gmra.mrb[0].mxu0 %v846
      %v1981 = vpop.f32.mrb[0].mxu0
      %v1982 = vadd.f32 0.0, %v1981
      %v1983 = vpop.f32.mrb[0].mxu0
      %1984 = vdwg.mxu0
      %v1986 = vsel %vm323, %v1834, 0
      %1988 = vmatprep.subr.mxu0 0.0
      %1989 = vmatpush1.msra.mxu0 %v1986
      %1990 = vmatprep.subr.mxu0 0.0
      %1991 = vmatpush1.msra.mxu0 0.0
      %1992 = vmatprep.subr.mxu0 0.0
      %1993 = vmatpush1.msra.mxu0 0.0
      %1994 = vmatprep.subr.mxu0 0.0
      %1995 = vmatpush1.msra.mxu0 0.0
      %1996 = vmatprep.subr.mxu0 0.0
      %1997 = vmatpush1.msra.mxu0 0.0
      %1998 = vmatprep.subr.mxu0 0.0
      %1999 = vmatpush1.msra.mxu0 0.0
      %2000 = vmatprep.subr.mxu0 0.0
      %2001 = vmatpush1.msra.mxu0 0.0
      %2002 = vmatprep.subr.mxu0 0.0
      %2003 = vmatpush1.msra.mxu0 0.0
      %2004 = vmatprep.subr.mxu0 0.0
      %2005 = vmatpush1.msra.mxu0 0.0
      %2006 = vmatprep.subr.mxu0 0.0
      %2007 = vmatpush1.msra.mxu0 0.0
      %2008 = vmatprep.subr.mxu0 0.0
      %2009 = vmatpush1.msra.mxu0 0.0
      %2010 = vmatprep.subr.mxu0 0.0
      %2011 = vmatpush1.msra.mxu0 0.0
      %2012 = vmatprep.subr.mxu0 0.0
      %2013 = vmatpush1.msra.mxu0 0.0
      %2014 = vmatprep.subr.mxu0 0.0
      %2015 = vmatpush1.msra.mxu0 0.0
      %2016 = vmatprep.subr.mxu0 0.0
      %2017 = vmatpush1.msra.mxu0 0.0
      %2018 = vmatprep.subr.mxu0 0.0
      %2019 = vmatpush1.msra.mxu0 0.0
      %2020 = vmatprep.subr.mxu0 0.0
      %2021 = vmatpush1.msra.mxu0 0.0
      %2022 = vmatprep.subr.mxu0 0.0
      %2023 = vmatpush1.msra.mxu0 0.0
      %2024 = vmatprep.subr.mxu0 0.0
      %2025 = vmatpush1.msra.mxu0 0.0
      %2026 = vmatprep.subr.mxu0 0.0
      %2027 = vmatpush1.msra.mxu0 0.0
      %2028 = vmatprep.subr.mxu0 0.0
      %2029 = vmatpush1.msra.mxu0 0.0
      %2030 = vmatprep.subr.mxu0 0.0
      %2031 = vmatpush1.msra.mxu0 0.0
      %2032 = vmatprep.subr.mxu0 0.0
      %2033 = vmatpush1.msra.mxu0 0.0
      %2034 = vmatprep.subr.mxu0 0.0
      %2035 = vmatpush1.msra.mxu0 0.0
      %2036 = vmatprep.subr.mxu0 0.0
      %2037 = vmatpush1.msra.mxu0 0.0
      %2038 = vmatprep.subr.mxu0 0.0
      %2039 = vmatpush1.msra.mxu0 0.0
      %2040 = vmatprep.subr.mxu0 0.0
      %2041 = vmatpush1.msra.mxu0 0.0
      %2042 = vmatprep.subr.mxu0 0.0
      %2043 = vmatpush1.msra.mxu0 0.0
      %2044 = vmatprep.subr.mxu0 0.0
      %2045 = vmatpush1.msra.mxu0 0.0
      %2046 = vmatprep.subr.mxu0 0.0
      %2047 = vmatpush1.msra.mxu0 0.0
      %2048 = vmatprep.subr.mxu0 0.0
      %2049 = vmatpush1.msra.mxu0 0.0
      %2050 = vmatprep.subr.mxu0 0.0
      %2051 = vmatpush1.msra.mxu0 0.0
      %2052 = vmatprep.mubr.f32.mxu0 0.0
      %2053 = vmatmul.mubr.f32.gmra.mrb[0].mxu0 %v479
      %v2054 = vpop.f32.mrb[0].mxu0
      %v2055 = vadd.f32 %v1907, %v2054
      %v2056 = vpop.f32.mrb[0].mxu0
      %2057 = vmatprep.mubr.f32.mxu0 0.0
      %2058 = vmatmul.mubr.f32.gmra.mrb[0].mxu0 %v482
      %v2059 = vpop.f32.mrb[0].mxu0
      %v2060 = vadd.f32 %v1912, %v2059
      %v2061 = vpop.f32.mrb[0].mxu0
      %2062 = vmatprep.mubr.f32.mxu0 0.0
      %2063 = vmatmul.mubr.f32.gmra.mrb[0].mxu0 %v485
      %v2064 = vpop.f32.mrb[0].mxu0
      %v2065 = vadd.f32 %v1917, %v2064
      %v2066 = vpop.f32.mrb[0].mxu0
      %2067 = vmatprep.mubr.f32.mxu0 0.0
      %2068 = vmatmul.mubr.f32.gmra.mrb[0].mxu0 %v488
      %v2069 = vpop.f32.mrb[0].mxu0
      %v2070 = vadd.f32 %v1922, %v2069
      %v2071 = vpop.f32.mrb[0].mxu0
      %2072 = vmatprep.mubr.f32.mxu0 0.0
      %2073 = vmatmul.mubr.f32.gmra.mrb[0].mxu0 %v491
      %v2074 = vpop.f32.mrb[0].mxu0
      %v2075 = vadd.f32 %v1927, %v2074
      %v2076 = vpop.f32.mrb[0].mxu0
      %2077 = vmatprep.mubr.f32.mxu0 0.0
      %2078 = vmatmul.mubr.f32.gmra.mrb[0].mxu0 %v494
      %v2079 = vpop.f32.mrb[0].mxu0
      %v2080 = vadd.f32 %v1932, %v2079
      %v2081 = vpop.f32.mrb[0].mxu0
      %2082 = vmatprep.mubr.f32.mxu0 0.0
      %2083 = vmatmul.mubr.f32.gmra.mrb[0].mxu0 %v497
      %v2084 = vpop.f32.mrb[0].mxu0
      %v2085 = vadd.f32 %v1937, %v2084
      %v2086 = vpop.f32.mrb[0].mxu0
      %2087 = vmatprep.mubr.f32.mxu0 0.0
      %2088 = vmatmul.mubr.f32.gmra.mrb[0].mxu0 %v500
      %v2089 = vpop.f32.mrb[0].mxu0
      %v2090 = vadd.f32 %v1942, %v2089
      %v2091 = vpop.f32.mrb[0].mxu0
      %2092 = vmatprep.mubr.f32.mxu0 0.0
      %2093 = vmatmul.mubr.f32.gmra.mrb[0].mxu0 %v503
      %v2094 = vpop.f32.mrb[0].mxu0
      %v2095 = vadd.f32 %v1947, %v2094
      %v2096 = vpop.f32.mrb[0].mxu0
      %2097 = vmatprep.mubr.f32.mxu0 0.0
      %2098 = vmatmul.mubr.f32.gmra.mrb[0].mxu0 %v506
      %v2099 = vpop.f32.mrb[0].mxu0
      %v2100 = vadd.f32 %v1952, %v2099
      %v2101 = vpop.f32.mrb[0].mxu0
      %2102 = vmatprep.mubr.f32.mxu0 0.0
      %2103 = vmatmul.mubr.f32.gmra.mrb[0].mxu0 %v509
      %v2104 = vpop.f32.mrb[0].mxu0
      %v2105 = vadd.f32 %v1957, %v2104
      %v2106 = vpop.f32.mrb[0].mxu0
      %2107 = vmatprep.mubr.f32.mxu0 0.0
      %2108 = vmatmul.mubr.f32.gmra.mrb[0].mxu0 %v512
      %v2109 = vpop.f32.mrb[0].mxu0
      %v2110 = vadd.f32 %v1962, %v2109
      %v2111 = vpop.f32.mrb[0].mxu0
      %2112 = vmatprep.mubr.f32.mxu0 0.0
      %2113 = vmatmul.mubr.f32.gmra.mrb[0].mxu0 %v515
      %v2114 = vpop.f32.mrb[0].mxu0
      %v2115 = vadd.f32 %v1967, %v2114
      %v2116 = vpop.f32.mrb[0].mxu0
      %2117 = vmatprep.mubr.f32.mxu0 0.0
      %2118 = vmatmul.mubr.f32.gmra.mrb[0].mxu0 %v518
      %v2119 = vpop.f32.mrb[0].mxu0
      %v2120 = vadd.f32 %v1972, %v2119
      %v2121 = vpop.f32.mrb[0].mxu0
      %2122 = vmatprep.mubr.f32.mxu0 0.0
      %2123 = vmatmul.mubr.f32.gmra.mrb[0].mxu0 %v671
      %v2124 = vpop.f32.mrb[0].mxu0
      %v2125 = vadd.f32 %v1977, %v2124
      %v2126 = vpop.f32.mrb[0].mxu0
      %2127 = vmatprep.mubr.f32.mxu0 0.0
      %2128 = vmatmul.mubr.f32.gmra.mrb[0].mxu0 %v674
      %v2129 = vpop.f32.mrb[0].mxu0
      %v2130 = vadd.f32 %v1982, %v2129
      %v2131 = vpop.f32.mrb[0].mxu0
      %2132 = vdwg.mxu0
      %s2133 = scalar_lea.vmem %s1, 40
      %v2134 = vld [vmem:[%s2133] sm:$0xf]
      %v2136 = vsel %vm274, %v228, 0
      %v2139 = vsel %vm274, %v229, 0
      %v2142 = vsel %vm323, %v2134, 0
      %2144 = vmatprep.subr.mxu0 0.0
      %2145 = vmatpush1.msra.mxu0 %v2142
      %2146 = vmatprep.subr.mxu0 0.0
      %2147 = vmatpush1.msra.mxu0 0.0
      %2148 = vmatprep.subr.mxu0 0.0
      %2149 = vmatpush1.msra.mxu0 0.0
      %2150 = vmatprep.subr.mxu0 0.0
      %2151 = vmatpush1.msra.mxu0 0.0
      %2152 = vmatprep.subr.mxu0 0.0
      %2153 = vmatpush1.msra.mxu0 0.0
      %2154 = vmatprep.subr.mxu0 0.0
      %2155 = vmatpush1.msra.mxu0 0.0
      %2156 = vmatprep.subr.mxu0 0.0
      %2157 = vmatpush1.msra.mxu0 0.0
      %2158 = vmatprep.subr.mxu0 0.0
      %2159 = vmatpush1.msra.mxu0 0.0
      %2160 = vmatprep.subr.mxu0 0.0
      %2161 = vmatpush1.msra.mxu0 0.0
      %2162 = vmatprep.subr.mxu0 0.0
      %2163 = vmatpush1.msra.mxu0 0.0
      %2164 = vmatprep.subr.mxu0 0.0
      %2165 = vmatpush1.msra.mxu0 0.0
      %2166 = vmatprep.subr.mxu0 0.0
      %2167 = vmatpush1.msra.mxu0 0.0
      %2168 = vmatprep.subr.mxu0 0.0
      %2169 = vmatpush1.msra.mxu0 0.0
      %2170 = vmatprep.subr.mxu0 0.0
      %2171 = vmatpush1.msra.mxu0 0.0
      %2172 = vmatprep.subr.mxu0 0.0
      %2173 = vmatpush1.msra.mxu0 0.0
      %2174 = vmatprep.subr.mxu0 0.0
      %2175 = vmatpush1.msra.mxu0 0.0
      %2176 = vmatprep.subr.mxu0 0.0
      %2177 = vmatpush1.msra.mxu0 0.0
      %2178 = vmatprep.subr.mxu0 0.0
      %2179 = vmatpush1.msra.mxu0 0.0
      %2180 = vmatprep.subr.mxu0 0.0
      %2181 = vmatpush1.msra.mxu0 0.0
      %2182 = vmatprep.subr.mxu0 0.0
      %2183 = vmatpush1.msra.mxu0 0.0
      %2184 = vmatprep.subr.mxu0 0.0
      %2185 = vmatpush1.msra.mxu0 0.0
      %2186 = vmatprep.subr.mxu0 0.0
      %2187 = vmatpush1.msra.mxu0 0.0
      %2188 = vmatprep.subr.mxu0 0.0
      %2189 = vmatpush1.msra.mxu0 0.0
      %2190 = vmatprep.subr.mxu0 0.0
      %2191 = vmatpush1.msra.mxu0 0.0
      %2192 = vmatprep.subr.mxu0 0.0
      %2193 = vmatpush1.msra.mxu0 0.0
      %2194 = vmatprep.subr.mxu0 0.0
      %2195 = vmatpush1.msra.mxu0 0.0
      %2196 = vmatprep.subr.mxu0 0.0
      %2197 = vmatpush1.msra.mxu0 0.0
      %2198 = vmatprep.subr.mxu0 0.0
      %2199 = vmatpush1.msra.mxu0 0.0
      %2200 = vmatprep.subr.mxu0 0.0
      %2201 = vmatpush1.msra.mxu0 0.0
      %2202 = vmatprep.subr.mxu0 0.0
      %2203 = vmatpush1.msra.mxu0 0.0
      %2204 = vmatprep.subr.mxu0 0.0
      %2205 = vmatpush1.msra.mxu0 0.0
      %2206 = vmatprep.subr.mxu0 0.0
      %2207 = vmatpush1.msra.mxu0 0.0
      %2208 = vmatprep.mubr.f32.mxu0 0.0
      %2209 = vmatmul.mubr.f32.gmra.mrb[0].mxu0 %v485
      %v2210 = vpop.f32.mrb[0].mxu0
      %v2211 = vadd.f32 0.0, %v2210
      %v2212 = vpop.f32.mrb[0].mxu0
      %2213 = vmatprep.mubr.f32.mxu0 0.0
      %2214 = vmatmul.mubr.f32.gmra.mrb[0].mxu0 %v488
      %v2215 = vpop.f32.mrb[0].mxu0
      %v2216 = vadd.f32 0.0, %v2215
      %v2217 = vpop.f32.mrb[0].mxu0
      %2218 = vmatprep.mubr.f32.mxu0 0.0
      %2219 = vmatmul.mubr.f32.gmra.mrb[0].mxu0 %v491
      %v2220 = vpop.f32.mrb[0].mxu0
      %v2221 = vadd.f32 0.0, %v2220
      %v2222 = vpop.f32.mrb[0].mxu0
      %2223 = vmatprep.mubr.f32.mxu0 0.0
      %2224 = vmatmul.mubr.f32.gmra.mrb[0].mxu0 %v494
      %v2225 = vpop.f32.mrb[0].mxu0
      %v2226 = vadd.f32 0.0, %v2225
      %v2227 = vpop.f32.mrb[0].mxu0
      %2228 = vmatprep.mubr.f32.mxu0 0.0
      %2229 = vmatmul.mubr.f32.gmra.mrb[0].mxu0 %v497
      %v2230 = vpop.f32.mrb[0].mxu0
      %v2231 = vadd.f32 0.0, %v2230
      %v2232 = vpop.f32.mrb[0].mxu0
      %2233 = vmatprep.mubr.f32.mxu0 0.0
      %2234 = vmatmul.mubr.f32.gmra.mrb[0].mxu0 %v500
      %v2235 = vpop.f32.mrb[0].mxu0
      %v2236 = vadd.f32 0.0, %v2235
      %v2237 = vpop.f32.mrb[0].mxu0
      %2238 = vmatprep.mubr.f32.mxu0 0.0
      %2239 = vmatmul.mubr.f32.gmra.mrb[0].mxu0 %v503
      %v2240 = vpop.f32.mrb[0].mxu0
      %v2241 = vadd.f32 0.0, %v2240
      %v2242 = vpop.f32.mrb[0].mxu0
      %2243 = vmatprep.mubr.f32.mxu0 0.0
      %2244 = vmatmul.mubr.f32.gmra.mrb[0].mxu0 %v506
      %v2245 = vpop.f32.mrb[0].mxu0
      %v2246 = vadd.f32 0.0, %v2245
      %v2247 = vpop.f32.mrb[0].mxu0
      %2248 = vmatprep.mubr.f32.mxu0 0.0
      %2249 = vmatmul.mubr.f32.gmra.mrb[0].mxu0 %v509
      %v2250 = vpop.f32.mrb[0].mxu0
      %v2251 = vadd.f32 0.0, %v2250
      %v2252 = vpop.f32.mrb[0].mxu0
      %2253 = vmatprep.mubr.f32.mxu0 0.0
      %2254 = vmatmul.mubr.f32.gmra.mrb[0].mxu0 %v512
      %v2255 = vpop.f32.mrb[0].mxu0
      %v2256 = vadd.f32 0.0, %v2255
      %v2257 = vpop.f32.mrb[0].mxu0
      %2258 = vmatprep.mubr.f32.mxu0 0.0
      %2259 = vmatmul.mubr.f32.gmra.mrb[0].mxu0 %v515
      %v2260 = vpop.f32.mrb[0].mxu0
      %v2261 = vadd.f32 0.0, %v2260
      %v2262 = vpop.f32.mrb[0].mxu0
      %2263 = vmatprep.mubr.f32.mxu0 0.0
      %2264 = vmatmul.mubr.f32.gmra.mrb[0].mxu0 %v518
      %v2265 = vpop.f32.mrb[0].mxu0
      %v2266 = vadd.f32 0.0, %v2265
      %v2267 = vpop.f32.mrb[0].mxu0
      %2268 = vmatprep.mubr.f32.mxu0 0.0
      %2269 = vmatmul.mubr.f32.gmra.mrb[0].mxu0 %v671
      %v2270 = vpop.f32.mrb[0].mxu0
      %v2271 = vadd.f32 0.0, %v2270
      %v2272 = vpop.f32.mrb[0].mxu0
      %2273 = vmatprep.mubr.f32.mxu0 0.0
      %2274 = vmatmul.mubr.f32.gmra.mrb[0].mxu0 %v674
      %v2275 = vpop.f32.mrb[0].mxu0
      %v2276 = vadd.f32 0.0, %v2275
      %v2277 = vpop.f32.mrb[0].mxu0
      %2278 = vmatprep.mubr.f32.mxu0 0.0
      %2279 = vmatmul.mubr.f32.gmra.mrb[0].mxu0 %v2136
      %v2280 = vpop.f32.mrb[0].mxu0
      %v2281 = vadd.f32 0.0, %v2280
      %v2282 = vpop.f32.mrb[0].mxu0
      %2283 = vmatprep.mubr.f32.mxu0 0.0
      %2284 = vmatmul.mubr.f32.gmra.mrb[0].mxu0 %v2139
      %v2285 = vpop.f32.mrb[0].mxu0
      %v2286 = vadd.f32 0.0, %v2285
      %v2287 = vpop.f32.mrb[0].mxu0
      %2288 = vdwg.mxu0
      %v2289 = vadd.f32 %v2055, %v2211
      %v2290 = vadd.f32 %v2060, %v2216
      %v2291 = vadd.f32 %v2065, %v2221
      %v2292 = vadd.f32 %v2070, %v2226
      %v2293 = vadd.f32 %v2075, %v2231
      %v2294 = vadd.f32 %v2080, %v2236
      %v2295 = vadd.f32 %v2085, %v2241
      %v2296 = vadd.f32 %v2090, %v2246
      %v2297 = vadd.f32 %v2095, %v2251
      %v2298 = vadd.f32 %v2100, %v2256
      %v2299 = vadd.f32 %v2105, %v2261
      %v2300 = vadd.f32 %v2110, %v2266
      %v2301 = vadd.f32 %v2115, %v2271
      %v2302 = vadd.f32 %v2120, %v2276
      %v2303 = vadd.f32 %v2125, %v2281
      %v2304 = vadd.f32 %v2130, %v2286
      %s2305 = scalar_lea.vmem %s1, 44
      %v2306 = vld [vmem:[%s2305] sm:$0xf]
      %v2308 = vsel %vm274, %v248, 0
      %v2311 = vsel %vm274, %v249, 0
      %v2314 = vsel %vm323, %v2306, 0
      %2316 = vmatprep.subr.mxu0 0.0
      %2317 = vmatpush1.msra.mxu0 %v2314
      %2318 = vmatprep.subr.mxu0 0.0
      %2319 = vmatpush1.msra.mxu0 0.0
      %2320 = vmatprep.subr.mxu0 0.0
      %2321 = vmatpush1.msra.mxu0 0.0
      %2322 = vmatprep.subr.mxu0 0.0
      %2323 = vmatpush1.msra.mxu0 0.0
      %2324 = vmatprep.subr.mxu0 0.0
      %2325 = vmatpush1.msra.mxu0 0.0
      %2326 = vmatprep.subr.mxu0 0.0
      %2327 = vmatpush1.msra.mxu0 0.0
      %2328 = vmatprep.subr.mxu0 0.0
      %2329 = vmatpush1.msra.mxu0 0.0
      %2330 = vmatprep.subr.mxu0 0.0
      %2331 = vmatpush1.msra.mxu0 0.0
      %2332 = vmatprep.subr.mxu0 0.0
      %2333 = vmatpush1.msra.mxu0 0.0
      %2334 = vmatprep.subr.mxu0 0.0
      %2335 = vmatpush1.msra.mxu0 0.0
      %2336 = vmatprep.subr.mxu0 0.0
      %2337 = vmatpush1.msra.mxu0 0.0
      %2338 = vmatprep.subr.mxu0 0.0
      %2339 = vmatpush1.msra.mxu0 0.0
      %2340 = vmatprep.subr.mxu0 0.0
      %2341 = vmatpush1.msra.mxu0 0.0
      %2342 = vmatprep.subr.mxu0 0.0
      %2343 = vmatpush1.msra.mxu0 0.0
      %2344 = vmatprep.subr.mxu0 0.0
      %2345 = vmatpush1.msra.mxu0 0.0
      %2346 = vmatprep.subr.mxu0 0.0
      %2347 = vmatpush1.msra.mxu0 0.0
      %2348 = vmatprep.subr.mxu0 0.0
      %2349 = vmatpush1.msra.mxu0 0.0
      %2350 = vmatprep.subr.mxu0 0.0
      %2351 = vmatpush1.msra.mxu0 0.0
      %2352 = vmatprep.subr.mxu0 0.0
      %2353 = vmatpush1.msra.mxu0 0.0
      %2354 = vmatprep.subr.mxu0 0.0
      %2355 = vmatpush1.msra.mxu0 0.0
      %2356 = vmatprep.subr.mxu0 0.0
      %2357 = vmatpush1.msra.mxu0 0.0
      %2358 = vmatprep.subr.mxu0 0.0
      %2359 = vmatpush1.msra.mxu0 0.0
      %2360 = vmatprep.subr.mxu0 0.0
      %2361 = vmatpush1.msra.mxu0 0.0
      %2362 = vmatprep.subr.mxu0 0.0
      %2363 = vmatpush1.msra.mxu0 0.0
      %2364 = vmatprep.subr.mxu0 0.0
      %2365 = vmatpush1.msra.mxu0 0.0
      %2366 = vmatprep.subr.mxu0 0.0
      %2367 = vmatpush1.msra.mxu0 0.0
      %2368 = vmatprep.subr.mxu0 0.0
      %2369 = vmatpush1.msra.mxu0 0.0
      %2370 = vmatprep.subr.mxu0 0.0
      %2371 = vmatpush1.msra.mxu0 0.0
      %2372 = vmatprep.subr.mxu0 0.0
      %2373 = vmatpush1.msra.mxu0 0.0
      %2374 = vmatprep.subr.mxu0 0.0
      %2375 = vmatpush1.msra.mxu0 0.0
      %2376 = vmatprep.subr.mxu0 0.0
      %2377 = vmatpush1.msra.mxu0 0.0
      %2378 = vmatprep.subr.mxu0 0.0
      %2379 = vmatpush1.msra.mxu0 0.0
      %2380 = vmatprep.mubr.f32.mxu0 0.0
      %2381 = vmatmul.mubr.f32.gmra.mrb[0].mxu0 %v288
      %v2382 = vpop.f32.mrb[0].mxu0
      %v2383 = vadd.f32 0.0, %v2382
      %v2384 = vpop.f32.mrb[0].mxu0
      %2385 = vmatprep.mubr.f32.mxu0 0.0
      %2386 = vmatmul.mubr.f32.gmra.mrb[0].mxu0 %v291
      %v2387 = vpop.f32.mrb[0].mxu0
      %v2388 = vadd.f32 0.0, %v2387
      %v2389 = vpop.f32.mrb[0].mxu0
      %2390 = vmatprep.mubr.f32.mxu0 0.0
      %2391 = vmatmul.mubr.f32.gmra.mrb[0].mxu0 %v294
      %v2392 = vpop.f32.mrb[0].mxu0
      %v2393 = vadd.f32 0.0, %v2392
      %v2394 = vpop.f32.mrb[0].mxu0
      %2395 = vmatprep.mubr.f32.mxu0 0.0
      %2396 = vmatmul.mubr.f32.gmra.mrb[0].mxu0 %v297
      %v2397 = vpop.f32.mrb[0].mxu0
      %v2398 = vadd.f32 0.0, %v2397
      %v2399 = vpop.f32.mrb[0].mxu0
      %2400 = vmatprep.mubr.f32.mxu0 0.0
      %2401 = vmatmul.mubr.f32.gmra.mrb[0].mxu0 %v300
      %v2402 = vpop.f32.mrb[0].mxu0
      %v2403 = vadd.f32 0.0, %v2402
      %v2404 = vpop.f32.mrb[0].mxu0
      %2405 = vmatprep.mubr.f32.mxu0 0.0
      %2406 = vmatmul.mubr.f32.gmra.mrb[0].mxu0 %v303
      %v2407 = vpop.f32.mrb[0].mxu0
      %v2408 = vadd.f32 0.0, %v2407
      %v2409 = vpop.f32.mrb[0].mxu0
      %2410 = vmatprep.mubr.f32.mxu0 0.0
      %2411 = vmatmul.mubr.f32.gmra.mrb[0].mxu0 %v306
      %v2412 = vpop.f32.mrb[0].mxu0
      %v2413 = vadd.f32 0.0, %v2412
      %v2414 = vpop.f32.mrb[0].mxu0
      %2415 = vmatprep.mubr.f32.mxu0 0.0
      %2416 = vmatmul.mubr.f32.gmra.mrb[0].mxu0 %v309
      %v2417 = vpop.f32.mrb[0].mxu0
      %v2418 = vadd.f32 0.0, %v2417
      %v2419 = vpop.f32.mrb[0].mxu0
      %2420 = vmatprep.mubr.f32.mxu0 0.0
      %2421 = vmatmul.mubr.f32.gmra.mrb[0].mxu0 %v312
      %v2422 = vpop.f32.mrb[0].mxu0
      %v2423 = vadd.f32 0.0, %v2422
      %v2424 = vpop.f32.mrb[0].mxu0
      %2425 = vmatprep.mubr.f32.mxu0 0.0
      %2426 = vmatmul.mubr.f32.gmra.mrb[0].mxu0 %v315
      %v2427 = vpop.f32.mrb[0].mxu0
      %v2428 = vadd.f32 0.0, %v2427
      %v2429 = vpop.f32.mrb[0].mxu0
      %2430 = vmatprep.mubr.f32.mxu0 0.0
      %2431 = vmatmul.mubr.f32.gmra.mrb[0].mxu0 %v318
      %v2432 = vpop.f32.mrb[0].mxu0
      %v2433 = vadd.f32 0.0, %v2432
      %v2434 = vpop.f32.mrb[0].mxu0
      %2435 = vmatprep.mubr.f32.mxu0 0.0
      %2436 = vmatmul.mubr.f32.gmra.mrb[0].mxu0 %v321
      %v2437 = vpop.f32.mrb[0].mxu0
      %v2438 = vadd.f32 0.0, %v2437
      %v2439 = vpop.f32.mrb[0].mxu0
      %2440 = vmatprep.mubr.f32.mxu0 0.0
      %2441 = vmatmul.mubr.f32.gmra.mrb[0].mxu0 %v843
      %v2442 = vpop.f32.mrb[0].mxu0
      %v2443 = vadd.f32 0.0, %v2442
      %v2444 = vpop.f32.mrb[0].mxu0
      %2445 = vmatprep.mubr.f32.mxu0 0.0
      %2446 = vmatmul.mubr.f32.gmra.mrb[0].mxu0 %v846
      %v2447 = vpop.f32.mrb[0].mxu0
      %v2448 = vadd.f32 0.0, %v2447
      %v2449 = vpop.f32.mrb[0].mxu0
      %2450 = vmatprep.mubr.f32.mxu0 0.0
      %2451 = vmatmul.mubr.f32.gmra.mrb[0].mxu0 %v2308
      %v2452 = vpop.f32.mrb[0].mxu0
      %v2453 = vadd.f32 0.0, %v2452
      %v2454 = vpop.f32.mrb[0].mxu0
      %2455 = vmatprep.mubr.f32.mxu0 0.0
      %2456 = vmatmul.mubr.f32.gmra.mrb[0].mxu0 %v2311
      %v2457 = vpop.f32.mrb[0].mxu0
      %v2458 = vadd.f32 0.0, %v2457
      %v2459 = vpop.f32.mrb[0].mxu0
      %2460 = vdwg.mxu0
      %v2461 = vadd.f32 %v2289, %v2383
      %v2462 = vadd.f32 %v2290, %v2388
      %v2463 = vadd.f32 %v2291, %v2393
      %v2464 = vadd.f32 %v2292, %v2398
      %v2465 = vadd.f32 %v2293, %v2403
      %v2466 = vadd.f32 %v2294, %v2408
      %v2467 = vadd.f32 %v2295, %v2413
      %v2468 = vadd.f32 %v2296, %v2418
      %v2469 = vadd.f32 %v2297, %v2423
      %v2470 = vadd.f32 %v2298, %v2428
      %v2471 = vadd.f32 %v2299, %v2433
      %v2472 = vadd.f32 %v2300, %v2438
      %v2473 = vadd.f32 %v2301, %v2443
      %v2474 = vadd.f32 %v2302, %v2448
      %v2475 = vadd.f32 %v2303, %v2453
      %v2476 = vadd.f32 %v2304, %v2458
      %v2477 = vadd.f32 %v2461, %v1016
      %v2478 = vadd.f32 %v2462, %v1016
      %v2479 = vadd.f32 %v2463, %v1016
      %v2480 = vadd.f32 %v2464, %v1016
      %v2481 = vadd.f32 %v2465, %v1016
      %v2482 = vadd.f32 %v2466, %v1016
      %v2483 = vadd.f32 %v2467, %v1016
      %v2484 = vadd.f32 %v2468, %v1016
      %v2485 = vadd.f32 %v2469, %v1016
      %v2486 = vadd.f32 %v2470, %v1016
      %v2487 = vadd.f32 %v2471, %v1016
      %v2488 = vadd.f32 %v2472, %v1016
      %v2489 = vadd.f32 %v2473, %v1016
      %v2490 = vadd.f32 %v2474, %v1016
      %v2491 = vadd.f32 %v2475, %v1016
      %v2492 = vadd.f32 %v2476, %v1016
      %s2493 = scalar_lea.vmem %s1, 48
      %v2494 = vld [vmem:[%s2493] sm:$0xf]
      %s2495 = scalar_lea.vmem %s1, 52
      %v2496 = vld [vmem:[%s2495] sm:$0xf]
      %v2498 = vsel %vm323, %v2496, 0
      %2500 = vmatprep.subr.mxu0 0.0
      %2501 = vmatpush1.msra.mxu0 %v2498
      %2502 = vmatprep.subr.mxu0 0.0
      %2503 = vmatpush1.msra.mxu0 0.0
      %2504 = vmatprep.subr.mxu0 0.0
      %2505 = vmatpush1.msra.mxu0 0.0
      %2506 = vmatprep.subr.mxu0 0.0
      %2507 = vmatpush1.msra.mxu0 0.0
      %2508 = vmatprep.subr.mxu0 0.0
      %2509 = vmatpush1.msra.mxu0 0.0
      %2510 = vmatprep.subr.mxu0 0.0
      %2511 = vmatpush1.msra.mxu0 0.0
      %2512 = vmatprep.subr.mxu0 0.0
      %2513 = vmatpush1.msra.mxu0 0.0
      %2514 = vmatprep.subr.mxu0 0.0
      %2515 = vmatpush1.msra.mxu0 0.0
      %2516 = vmatprep.subr.mxu0 0.0
      %2517 = vmatpush1.msra.mxu0 0.0
      %2518 = vmatprep.subr.mxu0 0.0
      %2519 = vmatpush1.msra.mxu0 0.0
      %2520 = vmatprep.subr.mxu0 0.0
      %2521 = vmatpush1.msra.mxu0 0.0
      %2522 = vmatprep.subr.mxu0 0.0
      %2523 = vmatpush1.msra.mxu0 0.0
      %2524 = vmatprep.subr.mxu0 0.0
      %2525 = vmatpush1.msra.mxu0 0.0
      %2526 = vmatprep.subr.mxu0 0.0
      %2527 = vmatpush1.msra.mxu0 0.0
      %2528 = vmatprep.subr.mxu0 0.0
      %2529 = vmatpush1.msra.mxu0 0.0
      %2530 = vmatprep.subr.mxu0 0.0
      %2531 = vmatpush1.msra.mxu0 0.0
      %2532 = vmatprep.subr.mxu0 0.0
      %2533 = vmatpush1.msra.mxu0 0.0
      %2534 = vmatprep.subr.mxu0 0.0
      %2535 = vmatpush1.msra.mxu0 0.0
      %2536 = vmatprep.subr.mxu0 0.0
      %2537 = vmatpush1.msra.mxu0 0.0
      %2538 = vmatprep.subr.mxu0 0.0
      %2539 = vmatpush1.msra.mxu0 0.0
      %2540 = vmatprep.subr.mxu0 0.0
      %2541 = vmatpush1.msra.mxu0 0.0
      %2542 = vmatprep.subr.mxu0 0.0
      %2543 = vmatpush1.msra.mxu0 0.0
      %2544 = vmatprep.subr.mxu0 0.0
      %2545 = vmatpush1.msra.mxu0 0.0
      %2546 = vmatprep.subr.mxu0 0.0
      %2547 = vmatpush1.msra.mxu0 0.0
      %2548 = vmatprep.subr.mxu0 0.0
      %2549 = vmatpush1.msra.mxu0 0.0
      %2550 = vmatprep.subr.mxu0 0.0
      %2551 = vmatpush1.msra.mxu0 0.0
      %2552 = vmatprep.subr.mxu0 0.0
      %2553 = vmatpush1.msra.mxu0 0.0
      %2554 = vmatprep.subr.mxu0 0.0
      %2555 = vmatpush1.msra.mxu0 0.0
      %2556 = vmatprep.subr.mxu0 0.0
      %2557 = vmatpush1.msra.mxu0 0.0
      %2558 = vmatprep.subr.mxu0 0.0
      %2559 = vmatpush1.msra.mxu0 0.0
      %2560 = vmatprep.subr.mxu0 0.0
      %2561 = vmatpush1.msra.mxu0 0.0
      %2562 = vmatprep.subr.mxu0 0.0
      %2563 = vmatpush1.msra.mxu0 0.0
      %2564 = vmatprep.mubr.f32.mxu0 0.0
      %2565 = vmatmul.mubr.f32.gmra.mrb[0].mxu0 %v1045
      %v2566 = vpop.f32.mrb[0].mxu0
      %v2567 = vadd.f32 0.0, %v2566
      %v2568 = vpop.f32.mrb[0].mxu0
      %2569 = vmatprep.mubr.f32.mxu0 0.0
      %2570 = vmatmul.mubr.f32.gmra.mrb[0].mxu0 %v1048
      %v2571 = vpop.f32.mrb[0].mxu0
      %v2572 = vadd.f32 0.0, %v2571
      %v2573 = vpop.f32.mrb[0].mxu0
      %2574 = vmatprep.mubr.f32.mxu0 0.0
      %2575 = vmatmul.mubr.f32.gmra.mrb[0].mxu0 %v1051
      %v2576 = vpop.f32.mrb[0].mxu0
      %v2577 = vadd.f32 0.0, %v2576
      %v2578 = vpop.f32.mrb[0].mxu0
      %2579 = vmatprep.mubr.f32.mxu0 0.0
      %2580 = vmatmul.mubr.f32.gmra.mrb[0].mxu0 %v1054
      %v2581 = vpop.f32.mrb[0].mxu0
      %v2582 = vadd.f32 0.0, %v2581
      %v2583 = vpop.f32.mrb[0].mxu0
      %2584 = vmatprep.mubr.f32.mxu0 0.0
      %2585 = vmatmul.mubr.f32.gmra.mrb[0].mxu0 %v1057
      %v2586 = vpop.f32.mrb[0].mxu0
      %v2587 = vadd.f32 0.0, %v2586
      %v2588 = vpop.f32.mrb[0].mxu0
      %2589 = vmatprep.mubr.f32.mxu0 0.0
      %2590 = vmatmul.mubr.f32.gmra.mrb[0].mxu0 %v1060
      %v2591 = vpop.f32.mrb[0].mxu0
      %v2592 = vadd.f32 0.0, %v2591
      %v2593 = vpop.f32.mrb[0].mxu0
      %2594 = vmatprep.mubr.f32.mxu0 0.0
      %2595 = vmatmul.mubr.f32.gmra.mrb[0].mxu0 %v1063
      %v2596 = vpop.f32.mrb[0].mxu0
      %v2597 = vadd.f32 0.0, %v2596
      %v2598 = vpop.f32.mrb[0].mxu0
      %2599 = vmatprep.mubr.f32.mxu0 0.0
      %2600 = vmatmul.mubr.f32.gmra.mrb[0].mxu0 %v1066
      %v2601 = vpop.f32.mrb[0].mxu0
      %v2602 = vadd.f32 0.0, %v2601
      %v2603 = vpop.f32.mrb[0].mxu0
      %2604 = vmatprep.mubr.f32.mxu0 0.0
      %2605 = vmatmul.mubr.f32.gmra.mrb[0].mxu0 %v1069
      %v2606 = vpop.f32.mrb[0].mxu0
      %v2607 = vadd.f32 0.0, %v2606
      %v2608 = vpop.f32.mrb[0].mxu0
      %2609 = vmatprep.mubr.f32.mxu0 0.0
      %2610 = vmatmul.mubr.f32.gmra.mrb[0].mxu0 %v1072
      %v2611 = vpop.f32.mrb[0].mxu0
      %v2612 = vadd.f32 0.0, %v2611
      %v2613 = vpop.f32.mrb[0].mxu0
      %2614 = vmatprep.mubr.f32.mxu0 0.0
      %2615 = vmatmul.mubr.f32.gmra.mrb[0].mxu0 %v1075
      %v2616 = vpop.f32.mrb[0].mxu0
      %v2617 = vadd.f32 0.0, %v2616
      %v2618 = vpop.f32.mrb[0].mxu0
      %2619 = vmatprep.mubr.f32.mxu0 0.0
      %2620 = vmatmul.mubr.f32.gmra.mrb[0].mxu0 %v1078
      %v2621 = vpop.f32.mrb[0].mxu0
      %v2622 = vadd.f32 0.0, %v2621
      %v2623 = vpop.f32.mrb[0].mxu0
      %2624 = vmatprep.mubr.f32.mxu0 0.0
      %2625 = vmatmul.mubr.f32.gmra.mrb[0].mxu0 %v1081
      %v2626 = vpop.f32.mrb[0].mxu0
      %v2627 = vadd.f32 0.0, %v2626
      %v2628 = vpop.f32.mrb[0].mxu0
      %2629 = vmatprep.mubr.f32.mxu0 0.0
      %2630 = vmatmul.mubr.f32.gmra.mrb[0].mxu0 %v1084
      %v2631 = vpop.f32.mrb[0].mxu0
      %v2632 = vadd.f32 0.0, %v2631
      %v2633 = vpop.f32.mrb[0].mxu0
      %2634 = vmatprep.mubr.f32.mxu0 0.0
      %2635 = vmatmul.mubr.f32.gmra.mrb[0].mxu0 %v1551
      %v2636 = vpop.f32.mrb[0].mxu0
      %v2637 = vadd.f32 0.0, %v2636
      %v2638 = vpop.f32.mrb[0].mxu0
      %2639 = vmatprep.mubr.f32.mxu0 0.0
      %2640 = vmatmul.mubr.f32.gmra.mrb[0].mxu0 %v1554
      %v2641 = vpop.f32.mrb[0].mxu0
      %v2642 = vadd.f32 0.0, %v2641
      %v2643 = vpop.f32.mrb[0].mxu0
      %2644 = vdwg.mxu0
      %v2646 = vsel %vm323, %v2494, 0
      %2648 = vmatprep.subr.mxu0 0.0
      %2649 = vmatpush1.msra.mxu0 %v2646
      %2650 = vmatprep.subr.mxu0 0.0
      %2651 = vmatpush1.msra.mxu0 0.0
      %2652 = vmatprep.subr.mxu0 0.0
      %2653 = vmatpush1.msra.mxu0 0.0
      %2654 = vmatprep.subr.mxu0 0.0
      %2655 = vmatpush1.msra.mxu0 0.0
      %2656 = vmatprep.subr.mxu0 0.0
      %2657 = vmatpush1.msra.mxu0 0.0
      %2658 = vmatprep.subr.mxu0 0.0
      %2659 = vmatpush1.msra.mxu0 0.0
      %2660 = vmatprep.subr.mxu0 0.0
      %2661 = vmatpush1.msra.mxu0 0.0
      %2662 = vmatprep.subr.mxu0 0.0
      %2663 = vmatpush1.msra.mxu0 0.0
      %2664 = vmatprep.subr.mxu0 0.0
      %2665 = vmatpush1.msra.mxu0 0.0
      %2666 = vmatprep.subr.mxu0 0.0
      %2667 = vmatpush1.msra.mxu0 0.0
      %2668 = vmatprep.subr.mxu0 0.0
      %2669 = vmatpush1.msra.mxu0 0.0
      %2670 = vmatprep.subr.mxu0 0.0
      %2671 = vmatpush1.msra.mxu0 0.0
      %2672 = vmatprep.subr.mxu0 0.0
      %2673 = vmatpush1.msra.mxu0 0.0
      %2674 = vmatprep.subr.mxu0 0.0
      %2675 = vmatpush1.msra.mxu0 0.0
      %2676 = vmatprep.subr.mxu0 0.0
      %2677 = vmatpush1.msra.mxu0 0.0
      %2678 = vmatprep.subr.mxu0 0.0
      %2679 = vmatpush1.msra.mxu0 0.0
      %2680 = vmatprep.subr.mxu0 0.0
      %2681 = vmatpush1.msra.mxu0 0.0
      %2682 = vmatprep.subr.mxu0 0.0
      %2683 = vmatpush1.msra.mxu0 0.0
      %2684 = vmatprep.subr.mxu0 0.0
      %2685 = vmatpush1.msra.mxu0 0.0
      %2686 = vmatprep.subr.mxu0 0.0
      %2687 = vmatpush1.msra.mxu0 0.0
      %2688 = vmatprep.subr.mxu0 0.0
      %2689 = vmatpush1.msra.mxu0 0.0
      %2690 = vmatprep.subr.mxu0 0.0
      %2691 = vmatpush1.msra.mxu0 0.0
      %2692 = vmatprep.subr.mxu0 0.0
      %2693 = vmatpush1.msra.mxu0 0.0
      %2694 = vmatprep.subr.mxu0 0.0
      %2695 = vmatpush1.msra.mxu0 0.0
      %2696 = vmatprep.subr.mxu0 0.0
      %2697 = vmatpush1.msra.mxu0 0.0
      %2698 = vmatprep.subr.mxu0 0.0
      %2699 = vmatpush1.msra.mxu0 0.0
      %2700 = vmatprep.subr.mxu0 0.0
      %2701 = vmatpush1.msra.mxu0 0.0
      %2702 = vmatprep.subr.mxu0 0.0
      %2703 = vmatpush1.msra.mxu0 0.0
      %2704 = vmatprep.subr.mxu0 0.0
      %2705 = vmatpush1.msra.mxu0 0.0
      %2706 = vmatprep.subr.mxu0 0.0
      %2707 = vmatpush1.msra.mxu0 0.0
      %2708 = vmatprep.subr.mxu0 0.0
      %2709 = vmatpush1.msra.mxu0 0.0
      %2710 = vmatprep.subr.mxu0 0.0
      %2711 = vmatpush1.msra.mxu0 0.0
      %2712 = vmatprep.mubr.f32.mxu0 0.0
      %2713 = vmatmul.mubr.f32.gmra.mrb[0].mxu0 %v282
      %v2714 = vpop.f32.mrb[0].mxu0
      %v2715 = vadd.f32 %v2567, %v2714
      %v2716 = vpop.f32.mrb[0].mxu0
      %2717 = vmatprep.mubr.f32.mxu0 0.0
      %2718 = vmatmul.mubr.f32.gmra.mrb[0].mxu0 %v285
      %v2719 = vpop.f32.mrb[0].mxu0
      %v2720 = vadd.f32 %v2572, %v2719
      %v2721 = vpop.f32.mrb[0].mxu0
      %2722 = vmatprep.mubr.f32.mxu0 0.0
      %2723 = vmatmul.mubr.f32.gmra.mrb[0].mxu0 %v288
      %v2724 = vpop.f32.mrb[0].mxu0
      %v2725 = vadd.f32 %v2577, %v2724
      %v2726 = vpop.f32.mrb[0].mxu0
      %2727 = vmatprep.mubr.f32.mxu0 0.0
      %2728 = vmatmul.mubr.f32.gmra.mrb[0].mxu0 %v291
      %v2729 = vpop.f32.mrb[0].mxu0
      %v2730 = vadd.f32 %v2582, %v2729
      %v2731 = vpop.f32.mrb[0].mxu0
      %2732 = vmatprep.mubr.f32.mxu0 0.0
      %2733 = vmatmul.mubr.f32.gmra.mrb[0].mxu0 %v294
      %v2734 = vpop.f32.mrb[0].mxu0
      %v2735 = vadd.f32 %v2587, %v2734
      %v2736 = vpop.f32.mrb[0].mxu0
      %2737 = vmatprep.mubr.f32.mxu0 0.0
      %2738 = vmatmul.mubr.f32.gmra.mrb[0].mxu0 %v297
      %v2739 = vpop.f32.mrb[0].mxu0
      %v2740 = vadd.f32 %v2592, %v2739
      %v2741 = vpop.f32.mrb[0].mxu0
      %2742 = vmatprep.mubr.f32.mxu0 0.0
      %2743 = vmatmul.mubr.f32.gmra.mrb[0].mxu0 %v300
      %v2744 = vpop.f32.mrb[0].mxu0
      %v2745 = vadd.f32 %v2597, %v2744
      %v2746 = vpop.f32.mrb[0].mxu0
      %2747 = vmatprep.mubr.f32.mxu0 0.0
      %2748 = vmatmul.mubr.f32.gmra.mrb[0].mxu0 %v303
      %v2749 = vpop.f32.mrb[0].mxu0
      %v2750 = vadd.f32 %v2602, %v2749
      %v2751 = vpop.f32.mrb[0].mxu0
      %2752 = vmatprep.mubr.f32.mxu0 0.0
      %2753 = vmatmul.mubr.f32.gmra.mrb[0].mxu0 %v306
      %v2754 = vpop.f32.mrb[0].mxu0
      %v2755 = vadd.f32 %v2607, %v2754
      %v2756 = vpop.f32.mrb[0].mxu0
      %2757 = vmatprep.mubr.f32.mxu0 0.0
      %2758 = vmatmul.mubr.f32.gmra.mrb[0].mxu0 %v309
      %v2759 = vpop.f32.mrb[0].mxu0
      %v2760 = vadd.f32 %v2612, %v2759
      %v2761 = vpop.f32.mrb[0].mxu0
      %2762 = vmatprep.mubr.f32.mxu0 0.0
      %2763 = vmatmul.mubr.f32.gmra.mrb[0].mxu0 %v312
      %v2764 = vpop.f32.mrb[0].mxu0
      %v2765 = vadd.f32 %v2617, %v2764
      %v2766 = vpop.f32.mrb[0].mxu0
      %2767 = vmatprep.mubr.f32.mxu0 0.0
      %2768 = vmatmul.mubr.f32.gmra.mrb[0].mxu0 %v315
      %v2769 = vpop.f32.mrb[0].mxu0
      %v2770 = vadd.f32 %v2622, %v2769
      %v2771 = vpop.f32.mrb[0].mxu0
      %2772 = vmatprep.mubr.f32.mxu0 0.0
      %2773 = vmatmul.mubr.f32.gmra.mrb[0].mxu0 %v318
      %v2774 = vpop.f32.mrb[0].mxu0
      %v2775 = vadd.f32 %v2627, %v2774
      %v2776 = vpop.f32.mrb[0].mxu0
      %2777 = vmatprep.mubr.f32.mxu0 0.0
      %2778 = vmatmul.mubr.f32.gmra.mrb[0].mxu0 %v321
      %v2779 = vpop.f32.mrb[0].mxu0
      %v2780 = vadd.f32 %v2632, %v2779
      %v2781 = vpop.f32.mrb[0].mxu0
      %2782 = vmatprep.mubr.f32.mxu0 0.0
      %2783 = vmatmul.mubr.f32.gmra.mrb[0].mxu0 %v843
      %v2784 = vpop.f32.mrb[0].mxu0
      %v2785 = vadd.f32 %v2637, %v2784
      %v2786 = vpop.f32.mrb[0].mxu0
      %2787 = vmatprep.mubr.f32.mxu0 0.0
      %2788 = vmatmul.mubr.f32.gmra.mrb[0].mxu0 %v846
      %v2789 = vpop.f32.mrb[0].mxu0
      %v2790 = vadd.f32 %v2642, %v2789
      %v2791 = vpop.f32.mrb[0].mxu0
      %2792 = vdwg.mxu0
      %s2793 = scalar_lea.vmem %s1, 56
      %v2794 = vld [vmem:[%s2793] sm:$0xf]
      %v2796 = vsel %vm323, %v2794, 0
      %2798 = vmatprep.subr.mxu0 0.0
      %2799 = vmatpush1.msra.mxu0 %v2796
      %2800 = vmatprep.subr.mxu0 0.0
      %2801 = vmatpush1.msra.mxu0 0.0
      %2802 = vmatprep.subr.mxu0 0.0
      %2803 = vmatpush1.msra.mxu0 0.0
      %2804 = vmatprep.subr.mxu0 0.0
      %2805 = vmatpush1.msra.mxu0 0.0
      %2806 = vmatprep.subr.mxu0 0.0
      %2807 = vmatpush1.msra.mxu0 0.0
      %2808 = vmatprep.subr.mxu0 0.0
      %2809 = vmatpush1.msra.mxu0 0.0
      %2810 = vmatprep.subr.mxu0 0.0
      %2811 = vmatpush1.msra.mxu0 0.0
      %2812 = vmatprep.subr.mxu0 0.0
      %2813 = vmatpush1.msra.mxu0 0.0
      %2814 = vmatprep.subr.mxu0 0.0
      %2815 = vmatpush1.msra.mxu0 0.0
      %2816 = vmatprep.subr.mxu0 0.0
      %2817 = vmatpush1.msra.mxu0 0.0
      %2818 = vmatprep.subr.mxu0 0.0
      %2819 = vmatpush1.msra.mxu0 0.0
      %2820 = vmatprep.subr.mxu0 0.0
      %2821 = vmatpush1.msra.mxu0 0.0
      %2822 = vmatprep.subr.mxu0 0.0
      %2823 = vmatpush1.msra.mxu0 0.0
      %2824 = vmatprep.subr.mxu0 0.0
      %2825 = vmatpush1.msra.mxu0 0.0
      %2826 = vmatprep.subr.mxu0 0.0
      %2827 = vmatpush1.msra.mxu0 0.0
      %2828 = vmatprep.subr.mxu0 0.0
      %2829 = vmatpush1.msra.mxu0 0.0
      %2830 = vmatprep.subr.mxu0 0.0
      %2831 = vmatpush1.msra.mxu0 0.0
      %2832 = vmatprep.subr.mxu0 0.0
      %2833 = vmatpush1.msra.mxu0 0.0
      %2834 = vmatprep.subr.mxu0 0.0
      %2835 = vmatpush1.msra.mxu0 0.0
      %2836 = vmatprep.subr.mxu0 0.0
      %2837 = vmatpush1.msra.mxu0 0.0
      %2838 = vmatprep.subr.mxu0 0.0
      %2839 = vmatpush1.msra.mxu0 0.0
      %2840 = vmatprep.subr.mxu0 0.0
      %2841 = vmatpush1.msra.mxu0 0.0
      %2842 = vmatprep.subr.mxu0 0.0
      %2843 = vmatpush1.msra.mxu0 0.0
      %2844 = vmatprep.subr.mxu0 0.0
      %2845 = vmatpush1.msra.mxu0 0.0
      %2846 = vmatprep.subr.mxu0 0.0
      %2847 = vmatpush1.msra.mxu0 0.0
      %2848 = vmatprep.subr.mxu0 0.0
      %2849 = vmatpush1.msra.mxu0 0.0
      %2850 = vmatprep.subr.mxu0 0.0
      %2851 = vmatpush1.msra.mxu0 0.0
      %2852 = vmatprep.subr.mxu0 0.0
      %2853 = vmatpush1.msra.mxu0 0.0
      %2854 = vmatprep.subr.mxu0 0.0
      %2855 = vmatpush1.msra.mxu0 0.0
      %2856 = vmatprep.subr.mxu0 0.0
      %2857 = vmatpush1.msra.mxu0 0.0
      %2858 = vmatprep.subr.mxu0 0.0
      %2859 = vmatpush1.msra.mxu0 0.0
      %2860 = vmatprep.subr.mxu0 0.0
      %2861 = vmatpush1.msra.mxu0 0.0
      %2862 = vmatprep.mubr.f32.mxu0 0.0
      %2863 = vmatmul.mubr.f32.gmra.mrb[0].mxu0 %v288
      %v2864 = vpop.f32.mrb[0].mxu0
      %v2865 = vadd.f32 0.0, %v2864
      %v2866 = vpop.f32.mrb[0].mxu0
      %2867 = vmatprep.mubr.f32.mxu0 0.0
      %2868 = vmatmul.mubr.f32.gmra.mrb[0].mxu0 %v291
      %v2869 = vpop.f32.mrb[0].mxu0
      %v2870 = vadd.f32 0.0, %v2869
      %v2871 = vpop.f32.mrb[0].mxu0
      %2872 = vmatprep.mubr.f32.mxu0 0.0
      %2873 = vmatmul.mubr.f32.gmra.mrb[0].mxu0 %v294
      %v2874 = vpop.f32.mrb[0].mxu0
      %v2875 = vadd.f32 0.0, %v2874
      %v2876 = vpop.f32.mrb[0].mxu0
      %2877 = vmatprep.mubr.f32.mxu0 0.0
      %2878 = vmatmul.mubr.f32.gmra.mrb[0].mxu0 %v297
      %v2879 = vpop.f32.mrb[0].mxu0
      %v2880 = vadd.f32 0.0, %v2879
      %v2881 = vpop.f32.mrb[0].mxu0
      %2882 = vmatprep.mubr.f32.mxu0 0.0
      %2883 = vmatmul.mubr.f32.gmra.mrb[0].mxu0 %v300
      %v2884 = vpop.f32.mrb[0].mxu0
      %v2885 = vadd.f32 0.0, %v2884
      %v2886 = vpop.f32.mrb[0].mxu0
      %2887 = vmatprep.mubr.f32.mxu0 0.0
      %2888 = vmatmul.mubr.f32.gmra.mrb[0].mxu0 %v303
      %v2889 = vpop.f32.mrb[0].mxu0
      %v2890 = vadd.f32 0.0, %v2889
      %v2891 = vpop.f32.mrb[0].mxu0
      %2892 = vmatprep.mubr.f32.mxu0 0.0
      %2893 = vmatmul.mubr.f32.gmra.mrb[0].mxu0 %v306
      %v2894 = vpop.f32.mrb[0].mxu0
      %v2895 = vadd.f32 0.0, %v2894
      %v2896 = vpop.f32.mrb[0].mxu0
      %2897 = vmatprep.mubr.f32.mxu0 0.0
      %2898 = vmatmul.mubr.f32.gmra.mrb[0].mxu0 %v309
      %v2899 = vpop.f32.mrb[0].mxu0
      %v2900 = vadd.f32 0.0, %v2899
      %v2901 = vpop.f32.mrb[0].mxu0
      %2902 = vmatprep.mubr.f32.mxu0 0.0
      %2903 = vmatmul.mubr.f32.gmra.mrb[0].mxu0 %v312
      %v2904 = vpop.f32.mrb[0].mxu0
      %v2905 = vadd.f32 0.0, %v2904
      %v2906 = vpop.f32.mrb[0].mxu0
      %2907 = vmatprep.mubr.f32.mxu0 0.0
      %2908 = vmatmul.mubr.f32.gmra.mrb[0].mxu0 %v315
      %v2909 = vpop.f32.mrb[0].mxu0
      %v2910 = vadd.f32 0.0, %v2909
      %v2911 = vpop.f32.mrb[0].mxu0
      %2912 = vmatprep.mubr.f32.mxu0 0.0
      %2913 = vmatmul.mubr.f32.gmra.mrb[0].mxu0 %v318
      %v2914 = vpop.f32.mrb[0].mxu0
      %v2915 = vadd.f32 0.0, %v2914
      %v2916 = vpop.f32.mrb[0].mxu0
      %2917 = vmatprep.mubr.f32.mxu0 0.0
      %2918 = vmatmul.mubr.f32.gmra.mrb[0].mxu0 %v321
      %v2919 = vpop.f32.mrb[0].mxu0
      %v2920 = vadd.f32 0.0, %v2919
      %v2921 = vpop.f32.mrb[0].mxu0
      %2922 = vmatprep.mubr.f32.mxu0 0.0
      %2923 = vmatmul.mubr.f32.gmra.mrb[0].mxu0 %v843
      %v2924 = vpop.f32.mrb[0].mxu0
      %v2925 = vadd.f32 0.0, %v2924
      %v2926 = vpop.f32.mrb[0].mxu0
      %2927 = vmatprep.mubr.f32.mxu0 0.0
      %2928 = vmatmul.mubr.f32.gmra.mrb[0].mxu0 %v846
      %v2929 = vpop.f32.mrb[0].mxu0
      %v2930 = vadd.f32 0.0, %v2929
      %v2931 = vpop.f32.mrb[0].mxu0
      %2932 = vmatprep.mubr.f32.mxu0 0.0
      %2933 = vmatmul.mubr.f32.gmra.mrb[0].mxu0 %v2308
      %v2934 = vpop.f32.mrb[0].mxu0
      %v2935 = vadd.f32 0.0, %v2934
      %v2936 = vpop.f32.mrb[0].mxu0
      %2937 = vmatprep.mubr.f32.mxu0 0.0
      %2938 = vmatmul.mubr.f32.gmra.mrb[0].mxu0 %v2311
      %v2939 = vpop.f32.mrb[0].mxu0
      %v2940 = vadd.f32 0.0, %v2939
      %v2941 = vpop.f32.mrb[0].mxu0
      %2942 = vdwg.mxu0
      %v2943 = vadd.f32 %v2715, %v2865
      %v2944 = vadd.f32 %v2720, %v2870
      %v2945 = vadd.f32 %v2725, %v2875
      %v2946 = vadd.f32 %v2730, %v2880
      %v2947 = vadd.f32 %v2735, %v2885
      %v2948 = vadd.f32 %v2740, %v2890
      %v2949 = vadd.f32 %v2745, %v2895
      %v2950 = vadd.f32 %v2750, %v2900
      %v2951 = vadd.f32 %v2755, %v2905
      %v2952 = vadd.f32 %v2760, %v2910
      %v2953 = vadd.f32 %v2765, %v2915
      %v2954 = vadd.f32 %v2770, %v2920
      %v2955 = vadd.f32 %v2775, %v2925
      %v2956 = vadd.f32 %v2780, %v2930
      %v2957 = vadd.f32 %v2785, %v2935
      %v2958 = vadd.f32 %v2790, %v2940
      %s2959 = scalar_lea.vmem %s1, 60
      %v2960 = vld [vmem:[%s2959] sm:$0xf]
      %v2962 = vsel %vm274, %v268, 0
      %v2965 = vsel %vm274, %v269, 0
      %v2968 = vsel %vm323, %v2960, 0
      %2970 = vmatprep.subr.mxu0 0.0
      %2971 = vmatpush1.msra.mxu0 %v2968
      %2972 = vmatprep.subr.mxu0 0.0
      %2973 = vmatpush1.msra.mxu0 0.0
      %2974 = vmatprep.subr.mxu0 0.0
      %2975 = vmatpush1.msra.mxu0 0.0
      %2976 = vmatprep.subr.mxu0 0.0
      %2977 = vmatpush1.msra.mxu0 0.0
      %2978 = vmatprep.subr.mxu0 0.0
      %2979 = vmatpush1.msra.mxu0 0.0
      %2980 = vmatprep.subr.mxu0 0.0
      %2981 = vmatpush1.msra.mxu0 0.0
      %2982 = vmatprep.subr.mxu0 0.0
      %2983 = vmatpush1.msra.mxu0 0.0
      %2984 = vmatprep.subr.mxu0 0.0
      %2985 = vmatpush1.msra.mxu0 0.0
      %2986 = vmatprep.subr.mxu0 0.0
      %2987 = vmatpush1.msra.mxu0 0.0
      %2988 = vmatprep.subr.mxu0 0.0
      %2989 = vmatpush1.msra.mxu0 0.0
      %2990 = vmatprep.subr.mxu0 0.0
      %2991 = vmatpush1.msra.mxu0 0.0
      %2992 = vmatprep.subr.mxu0 0.0
      %2993 = vmatpush1.msra.mxu0 0.0
      %2994 = vmatprep.subr.mxu0 0.0
      %2995 = vmatpush1.msra.mxu0 0.0
      %2996 = vmatprep.subr.mxu0 0.0
      %2997 = vmatpush1.msra.mxu0 0.0
      %2998 = vmatprep.subr.mxu0 0.0
      %2999 = vmatpush1.msra.mxu0 0.0
      %3000 = vmatprep.subr.mxu0 0.0
      %3001 = vmatpush1.msra.mxu0 0.0
      %3002 = vmatprep.subr.mxu0 0.0
      %3003 = vmatpush1.msra.mxu0 0.0
      %3004 = vmatprep.subr.mxu0 0.0
      %3005 = vmatpush1.msra.mxu0 0.0
      %3006 = vmatprep.subr.mxu0 0.0
      %3007 = vmatpush1.msra.mxu0 0.0
      %3008 = vmatprep.subr.mxu0 0.0
      %3009 = vmatpush1.msra.mxu0 0.0
      %3010 = vmatprep.subr.mxu0 0.0
      %3011 = vmatpush1.msra.mxu0 0.0
      %3012 = vmatprep.subr.mxu0 0.0
      %3013 = vmatpush1.msra.mxu0 0.0
      %3014 = vmatprep.subr.mxu0 0.0
      %3015 = vmatpush1.msra.mxu0 0.0
      %3016 = vmatprep.subr.mxu0 0.0
      %3017 = vmatpush1.msra.mxu0 0.0
      %3018 = vmatprep.subr.mxu0 0.0
      %3019 = vmatpush1.msra.mxu0 0.0
      %3020 = vmatprep.subr.mxu0 0.0
      %3021 = vmatpush1.msra.mxu0 0.0
      %3022 = vmatprep.subr.mxu0 0.0
      %3023 = vmatpush1.msra.mxu0 0.0
      %3024 = vmatprep.subr.mxu0 0.0
      %3025 = vmatpush1.msra.mxu0 0.0
      %3026 = vmatprep.subr.mxu0 0.0
      %3027 = vmatpush1.msra.mxu0 0.0
      %3028 = vmatprep.subr.mxu0 0.0
      %3029 = vmatpush1.msra.mxu0 0.0
      %3030 = vmatprep.subr.mxu0 0.0
      %3031 = vmatpush1.msra.mxu0 0.0
      %3032 = vmatprep.subr.mxu0 0.0
      %3033 = vmatpush1.msra.mxu0 0.0
      %3034 = vmatprep.mubr.f32.mxu0 0.0
      %3035 = vmatmul.mubr.f32.gmra.mrb[0].mxu0 %v1051
      %v3036 = vpop.f32.mrb[0].mxu0
      %v3037 = vadd.f32 0.0, %v3036
      %v3038 = vpop.f32.mrb[0].mxu0
      %3039 = vmatprep.mubr.f32.mxu0 0.0
      %3040 = vmatmul.mubr.f32.gmra.mrb[0].mxu0 %v1054
      %v3041 = vpop.f32.mrb[0].mxu0
      %v3042 = vadd.f32 0.0, %v3041
      %v3043 = vpop.f32.mrb[0].mxu0
      %3044 = vmatprep.mubr.f32.mxu0 0.0
      %3045 = vmatmul.mubr.f32.gmra.mrb[0].mxu0 %v1057
      %v3046 = vpop.f32.mrb[0].mxu0
      %v3047 = vadd.f32 0.0, %v3046
      %v3048 = vpop.f32.mrb[0].mxu0
      %3049 = vmatprep.mubr.f32.mxu0 0.0
      %3050 = vmatmul.mubr.f32.gmra.mrb[0].mxu0 %v1060
      %v3051 = vpop.f32.mrb[0].mxu0
      %v3052 = vadd.f32 0.0, %v3051
      %v3053 = vpop.f32.mrb[0].mxu0
      %3054 = vmatprep.mubr.f32.mxu0 0.0
      %3055 = vmatmul.mubr.f32.gmra.mrb[0].mxu0 %v1063
      %v3056 = vpop.f32.mrb[0].mxu0
      %v3057 = vadd.f32 0.0, %v3056
      %v3058 = vpop.f32.mrb[0].mxu0
      %3059 = vmatprep.mubr.f32.mxu0 0.0
      %3060 = vmatmul.mubr.f32.gmra.mrb[0].mxu0 %v1066
      %v3061 = vpop.f32.mrb[0].mxu0
      %v3062 = vadd.f32 0.0, %v3061
      %v3063 = vpop.f32.mrb[0].mxu0
      %3064 = vmatprep.mubr.f32.mxu0 0.0
      %3065 = vmatmul.mubr.f32.gmra.mrb[0].mxu0 %v1069
      %v3066 = vpop.f32.mrb[0].mxu0
      %v3067 = vadd.f32 0.0, %v3066
      %v3068 = vpop.f32.mrb[0].mxu0
      %3069 = vmatprep.mubr.f32.mxu0 0.0
      %3070 = vmatmul.mubr.f32.gmra.mrb[0].mxu0 %v1072
      %v3071 = vpop.f32.mrb[0].mxu0
      %v3072 = vadd.f32 0.0, %v3071
      %v3073 = vpop.f32.mrb[0].mxu0
      %3074 = vmatprep.mubr.f32.mxu0 0.0
      %3075 = vmatmul.mubr.f32.gmra.mrb[0].mxu0 %v1075
      %v3076 = vpop.f32.mrb[0].mxu0
      %v3077 = vadd.f32 0.0, %v3076
      %v3078 = vpop.f32.mrb[0].mxu0
      %3079 = vmatprep.mubr.f32.mxu0 0.0
      %3080 = vmatmul.mubr.f32.gmra.mrb[0].mxu0 %v1078
      %v3081 = vpop.f32.mrb[0].mxu0
      %v3082 = vadd.f32 0.0, %v3081
      %v3083 = vpop.f32.mrb[0].mxu0
      %3084 = vmatprep.mubr.f32.mxu0 0.0
      %3085 = vmatmul.mubr.f32.gmra.mrb[0].mxu0 %v1081
      %v3086 = vpop.f32.mrb[0].mxu0
      %v3087 = vadd.f32 0.0, %v3086
      %v3088 = vpop.f32.mrb[0].mxu0
      %3089 = vmatprep.mubr.f32.mxu0 0.0
      %3090 = vmatmul.mubr.f32.gmra.mrb[0].mxu0 %v1084
      %v3091 = vpop.f32.mrb[0].mxu0
      %v3092 = vadd.f32 0.0, %v3091
      %v3093 = vpop.f32.mrb[0].mxu0
      %3094 = vmatprep.mubr.f32.mxu0 0.0
      %3095 = vmatmul.mubr.f32.gmra.mrb[0].mxu0 %v1551
      %v3096 = vpop.f32.mrb[0].mxu0
      %v3097 = vadd.f32 0.0, %v3096
      %v3098 = vpop.f32.mrb[0].mxu0
      %3099 = vmatprep.mubr.f32.mxu0 0.0
      %3100 = vmatmul.mubr.f32.gmra.mrb[0].mxu0 %v1554
      %v3101 = vpop.f32.mrb[0].mxu0
      %v3102 = vadd.f32 0.0, %v3101
      %v3103 = vpop.f32.mrb[0].mxu0
      %3104 = vmatprep.mubr.f32.mxu0 0.0
      %3105 = vmatmul.mubr.f32.gmra.mrb[0].mxu0 %v2962
      %v3106 = vpop.f32.mrb[0].mxu0
      %v3107 = vadd.f32 0.0, %v3106
      %v3108 = vpop.f32.mrb[0].mxu0
      %3109 = vmatprep.mubr.f32.mxu0 0.0
      %3110 = vmatmul.mubr.f32.gmra.mrb[0].mxu0 %v2965
      %v3111 = vpop.f32.mrb[0].mxu0
      %v3112 = vadd.f32 0.0, %v3111
      %v3113 = vpop.f32.mrb[0].mxu0
      %3114 = vdwg.mxu0
      %v3115 = vadd.f32 %v2943, %v3037
      %v3116 = vadd.f32 %v2944, %v3042
      %v3117 = vadd.f32 %v2945, %v3047
      %v3118 = vadd.f32 %v2946, %v3052
      %v3119 = vadd.f32 %v2947, %v3057
      %v3120 = vadd.f32 %v2948, %v3062
      %v3121 = vadd.f32 %v2949, %v3067
      %v3122 = vadd.f32 %v2950, %v3072
      %v3123 = vadd.f32 %v2951, %v3077
      %v3124 = vadd.f32 %v2952, %v3082
      %v3125 = vadd.f32 %v2953, %v3087
      %v3126 = vadd.f32 %v2954, %v3092
      %v3127 = vadd.f32 %v2955, %v3097
      %v3128 = vadd.f32 %v2956, %v3102
      %v3129 = vadd.f32 %v2957, %v3107
      %v3130 = vadd.f32 %v2958, %v3112
      %v3131 = vadd.f32 %v3115, %v1016
      %v3132 = vadd.f32 %v3116, %v1016
      %v3133 = vadd.f32 %v3117, %v1016
      %v3134 = vadd.f32 %v3118, %v1016
      %v3135 = vadd.f32 %v3119, %v1016
      %v3136 = vadd.f32 %v3120, %v1016
      %v3137 = vadd.f32 %v3121, %v1016
      %v3138 = vadd.f32 %v3122, %v1016
      %v3139 = vadd.f32 %v3123, %v1016
      %v3140 = vadd.f32 %v3124, %v1016
      %v3141 = vadd.f32 %v3125, %v1016
      %v3142 = vadd.f32 %v3126, %v1016
      %v3143 = vadd.f32 %v3127, %v1016
      %v3144 = vadd.f32 %v3128, %v1016
      %v3145 = vadd.f32 %v3129, %v1016
      %v3146 = vadd.f32 %v3130, %v1016
      %3163 = vrot.lane.b32.xlu0 %v3131, 4
      %v3164 = vpop.permute.xlu0 %3163
      %3165 = vrot.lane.b32.xlu0 %v3132, 4
      %v3166 = vpop.permute.xlu0 %3165
      %3167 = vrot.lane.b32.xlu0 %v3133, 4
      %v3168 = vpop.permute.xlu0 %3167
      %3169 = vrot.lane.b32.xlu0 %v3134, 4
      %v3170 = vpop.permute.xlu0 %3169
      %3171 = vrot.lane.b32.xlu0 %v3135, 4
      %v3172 = vpop.permute.xlu0 %3171
      %3173 = vrot.lane.b32.xlu0 %v3136, 4
      %v3174 = vpop.permute.xlu0 %3173
      %3175 = vrot.lane.b32.xlu0 %v3137, 4
      %v3176 = vpop.permute.xlu0 %3175
      %3177 = vrot.lane.b32.xlu0 %v3138, 4
      %v3178 = vpop.permute.xlu0 %3177
      %3179 = vrot.lane.b32.xlu0 %v3139, 4
      %v3180 = vpop.permute.xlu0 %3179
      %3181 = vrot.lane.b32.xlu0 %v3140, 4
      %v3182 = vpop.permute.xlu0 %3181
      %3183 = vrot.lane.b32.xlu0 %v3141, 4
      %v3184 = vpop.permute.xlu0 %3183
      %3185 = vrot.lane.b32.xlu0 %v3142, 4
      %v3186 = vpop.permute.xlu0 %3185
      %3187 = vrot.lane.b32.xlu0 %v3143, 4
      %v3188 = vpop.permute.xlu0 %3187
      %3189 = vrot.lane.b32.xlu0 %v3144, 4
      %v3190 = vpop.permute.xlu0 %3189
      %3191 = vrot.lane.b32.xlu0 %v3145, 4
      %v3192 = vpop.permute.xlu0 %3191
      %3193 = vrot.lane.b32.xlu0 %v3146, 4
      %v3194 = vpop.permute.xlu0 %3193
      %v3211 = vsel %vm274, %v2477, %v3164
      %v3212 = vsel %vm274, %v2478, %v3166
      %v3213 = vsel %vm274, %v2479, %v3168
      %v3214 = vsel %vm274, %v2480, %v3170
      %v3215 = vsel %vm274, %v2481, %v3172
      %v3216 = vsel %vm274, %v2482, %v3174
      %v3217 = vsel %vm274, %v2483, %v3176
      %v3218 = vsel %vm274, %v2484, %v3178
      %v3219 = vsel %vm274, %v2485, %v3180
      %v3220 = vsel %vm274, %v2486, %v3182
      %v3221 = vsel %vm274, %v2487, %v3184
      %v3222 = vsel %vm274, %v2488, %v3186
      %v3223 = vsel %vm274, %v2489, %v3188
      %v3224 = vsel %vm274, %v2490, %v3190
      %v3225 = vsel %vm274, %v2491, %v3192
      %v3226 = vsel %vm274, %v2492, %v3194
      %s3227 = scalar_lea.vmem %s206, 16
      %3228 = vst.msk [vmem:[%s3227] sm:$0xff] %vm1816, %v3211
      %3229 = vst.msk [vmem:[%s3227 + $0x8] sm:$0xff] %vm1816, %v3212
      %3230 = vst.msk [vmem:[%s3227 + $0x20] sm:$0xff] %vm1816, %v3213
      %3231 = vst.msk [vmem:[%s3227 + $0x28] sm:$0xff] %vm1816, %v3214
      %3232 = vst.msk [vmem:[%s3227 + $0x40] sm:$0xff] %vm1816, %v3215
      %3233 = vst.msk [vmem:[%s3227 + $0x48] sm:$0xff] %vm1816, %v3216
      %3234 = vst.msk [vmem:[%s3227 + $0x60] sm:$0xff] %vm1816, %v3217
      %3235 = vst.msk [vmem:[%s3227 + $0x68] sm:$0xff] %vm1816, %v3218
      %3236 = vst.msk [vmem:[%s3227 + $0x80] sm:$0xff] %vm1816, %v3219
      %3237 = vst.msk [vmem:[%s3227 + $0x88] sm:$0xff] %vm1816, %v3220
      %3238 = vst.msk [vmem:[%s3227 + $0xa0] sm:$0xff] %vm1816, %v3221
      %3239 = vst.msk [vmem:[%s3227 + $0xa8] sm:$0xff] %vm1816, %v3222
      %3240 = vst.msk [vmem:[%s3227 + $0xc0] sm:$0xff] %vm1816, %v3223
      %3241 = vst.msk [vmem:[%s3227 + $0xc8] sm:$0xff] %vm1816, %v3224
      %3242 = vst.msk [vmem:[%s3227 + $0xe0] sm:$0xff] %vm1816, %v3225
      %3243 = vst.msk [vmem:[%s3227 + $0xe8] sm:$0xff] %vm1816, %v3226
      %s3244 = smul.u32 %s18, 2
      %s3245 = sadd.s32 %s3244, %s19
      %s3246 = smul.u32 8, %s3245
      %p3247 = scmp.lt.s32.totalorder %s3246, 31
      %s3248 = scalar_select %p3247, %s3246, 31
      %s3249 = smul.addr %s3248, 4
      %s3250 = smul.addr %s3249, 8
      %s3251 = scalar_lea.vmem %s3, %s3250
      // Predicated region
      $region33: #{upsample_forward.1} parent=31 // pred_check
        %p3252 = pneg %p120
      $region34: #{upsample_forward.1} parent=31 // pred_check_branch
        %3254 = sbr.rel (%p3252) target = $region36
      $region35: #{upsample_forward.1} parent=31 // pred_region
        %s3255 = smul.u32 %s18, 2
        %s3256 = sadd.s32 %s3255, %s19
        %s3257 = smul.u32 8, %s3256
      $region36: #{upsample_forward.1} parent=31 // pred_fallthru
        _
    $region32: #{upsample_forward.1} parent=5 // pred_fallthru
      _
    %p3258 = scmp.le.s32.totalorder 2, %s9
    // Predicated region
    $region37: #{upsample_forward.1} parent=5 // pred_check
      %p3259 = pneg %p3258
    $region38: #{upsample_forward.1} parent=5 // pred_check_branch
      %3261 = sbr.rel (%p3259) target = $region40
    $region39: #{upsample_forward.1} parent=5 // pred_region
      %s3262 = ssub.s32 %s9, 2
      // Predicated region
      $region41: #{upsample_forward.1} parent=39 // pred_check
        %p3263 = pneg %p126
      $region42: #{upsample_forward.1} parent=39 // pred_check_branch
        %3265 = sbr.rel (%p3263) target = $region44
      $region43: #{upsample_forward.1} parent=39 // pred_region
        %s3266 = smul.u32 %s20, 2
        %s3267 = sadd.s32 %s3266, %s21
        %s3268 = smul.u32 8, %s3267
        %p3269 = scmp.lt.s32.totalorder %s3268, 31
        %s3270 = scalar_select %p3269, %s3268, 31
        %s3271 = smul.addr %s3270, 4
        %s3272 = smul.addr %s3271, 8
        %s3273 = scalar_lea.vmem %s3, %s3272
      $region44: #{upsample_forward.1} parent=39 // pred_fallthru
        _
    $region40: #{upsample_forward.1} parent=5 // pred_fallthru
      _
  $region6: #{upsample_forward.1} parent=0 // loop_footer
    %s13 = sadd.s32 1, %s9
  $region7: #{upsample_forward.1} parent=0 // loop_footer_branch
    %8 = sbr.rel target = $region3
  $region8: #{upsample_forward.1} parent=0 // loop_exit
    _

</llo_original>
